<compile_context>
chip_gen: v7x
topology: tpu7x:2x2x1
jax: 0.10.0
libtpu: 0.0.40
codegen_flags: <defaults>
</compile_context>

<pallas_src>
import functools

import numpy as np

import jax
import jax.numpy as jnp
from jax.experimental import pallas as pl
from jax.experimental.pallas import tpu as pltpu

BN_EPS = 1e-5
LRELU_SLOPE = 0.2
KSIZE = 4
STRIDE = 2
N_TAPS = KSIZE * KSIZE
C1, C2, C3 = 8, 16, 32

# Row offsets of the packed per-channel parameter column (all 8-row aligned).
_PK_B1, _PK_B2, _PK_G2, _PK_BT2 = 0, 8, 24, 40
_PK_B3, _PK_G3, _PK_BT3, _PK_W4, _PK_B4 = 56, 88, 120, 152, 184
_PK_ROWS = 192


# ---------------------------------------------------------------------------
# Fused Pallas kernel (transposed layout: rows = channels, lanes = pixels)
# ---------------------------------------------------------------------------
def _leaky_relu(y):
    return jnp.where(y >= 0.0, y, LRELU_SLOPE * y)


def _batchnorm_t(y, gamma, beta):
    # Training-mode BatchNorm: per-channel (row) stats over all (n, oh, ow)
    # columns, biased variance, eps=1e-5 -- matches a fresh nn.BatchNorm2d.
    mu = jnp.mean(y, axis=1, keepdims=True)
    var = jnp.mean((y - mu) * (y - mu), axis=1, keepdims=True)
    return (y - mu) * jax.lax.rsqrt(var + BN_EPS) * gamma + beta


def _conv_t(a_bf16, gt_ref, w_ref):
    """Transposed conv.  a: (C_in, M_in) bf16; gt_ref: (taps, M_in, M_out)
    bf16 0/1 selection; w_ref: (C_out, taps*C_in) bf16.  -> (C_out, M_out) f32.
    16 exact gather dots build the patch matrix, then one lane-dense GEMM."""
    blocks = [
        jnp.dot(a_bf16, gt_ref[t], preferred_element_type=jnp.float32)
        for t in range(N_TAPS)
    ]                                                   # taps x (C_in, M_out)
    # f32 blocks are 8-row (sublane-tile) aligned -> cheap concat; values are
    # exact bf16 numbers (0/1 selection), so the single repack is lossless.
    patches = jnp.concatenate(blocks, axis=0).astype(jnp.bfloat16)
    return jnp.dot(w_ref[...], patches, preferred_element_type=jnp.float32)


def _fused_discriminator_kernel(p1_ref, w1_ref, w2_ref, gt2_ref, w3_ref,
                                gt3_ref, pk_ref, out_ref):
    # --- unpack the packed per-channel params (one VMEM tile, sublane slices)
    b1 = pk_ref[_PK_B1:_PK_B1 + C1, :]
    b2 = pk_ref[_PK_B2:_PK_B2 + C2, :]
    g2 = pk_ref[_PK_G2:_PK_G2 + C2, :]
    bt2 = pk_ref[_PK_BT2:_PK_BT2 + C2, :]
    b3 = pk_ref[_PK_B3:_PK_B3 + C3, :]
    g3 = pk_ref[_PK_G3:_PK_G3 + C3, :]
    bt3 = pk_ref[_PK_BT3:_PK_BT3 + C3, :]
    w4 = pk_ref[_PK_W4:_PK_W4 + C3, :]
    b4 = pk_ref[_PK_B4:_PK_B4 + 1, :]

    # Layer 1: Conv(image_nc -> 8, k4, s2) + LeakyReLU (im2col in wrapper).
    y1 = jnp.dot(w1_ref[...], p1_ref[...],
                 preferred_element_type=jnp.float32) + b1
    a1 = _leaky_relu(y1).astype(jnp.bfloat16)            # (8, M1)

    # Layer 2: Conv(8 -> 16, k4, s2) + BN + LeakyReLU.
    y2 = _conv_t(a1, gt2_ref, w2_ref) + b2               # (16, M2) f32
    y2 = _leaky_relu(_batchnorm_t(y2, g2, bt2))
    a2 = y2.astype(jnp.bfloat16)

    # Layer 3: Conv(16 -> 32, k4, s2) + BN + LeakyReLU.
    y3 = _conv_t(a2, gt3_ref, w3_ref) + b3               # (32, M3) f32
    y3 = _leaky_relu(_batchnorm_t(y3, g3, bt3))

    # Layer 4: 1x1 conv (Cout=1) as VPU multiply + sublane reduce, then a
    # numerically stable sigmoid.  Output is lane-dense: (1, M3).
    y4 = jnp.sum(y3 * w4, axis=0, keepdims=True) + b4
    z = jnp.exp(-jnp.abs(y4))
    r = 1.0 / (1.0 + z)
    out_ref[...] = jnp.where(y4 >= 0.0, r, z * r)


# ---------------------------------------------------------------------------
# Trace-time helpers (static shapes only)
# ---------------------------------------------------------------------------
def _im2col_t_nchw(x, k, s):
    """x: (N,C,H,W) -> (k*k*C, N*OH*OW); rows (ky,kx,c), cols (n,oh,ow)."""
    n, c, h, w = x.shape
    oh = (h - k) // s + 1
    ow = (w - k) // s + 1
    taps = []
    for ky in range(k):
        for kx in range(k):
            taps.append(x[:, :, ky:ky + s * (oh - 1) + 1:s,
                          kx:kx + s * (ow - 1) + 1:s])   # (N,C,OH,OW)
    p = jnp.stack(taps, axis=0)                          # (k*k, N, C, OH, OW)
    p = jnp.transpose(p, (0, 2, 1, 3, 4))                # (k*k, C, N, OH, OW)
    return p.reshape(k * k * c, n * oh * ow), oh, ow


@functools.lru_cache(maxsize=None)
def _gather_t_np(n, ih, iw, k, s):
    """Transposed 0/1 tap-selection matrices: act(C, M_in) @ GT[t] gives the
    tap-t patch columns for every output pixel, ordered (n, oh, ow)."""
    oh = (ih - k) // s + 1
    ow = (iw - k) // s + 1
    gt = np.zeros((k * k, n * ih * iw, n * oh * ow), np.float32)
    for ky in range(k):
        for kx in range(k):
            t = ky * k + kx
            for b in range(n):
                for r in range(oh):
                    for c in range(ow):
                        m_out = (b * oh + r) * ow + c
                        m_in = (b * ih + s * r + ky) * iw + s * c + kx
                        gt[t, m_in, m_out] = 1.0
    return gt, oh, ow


def _full_spec(shape):
    rank = len(shape)
    return pl.BlockSpec(shape, lambda i, _r=rank: (0,) * _r)


# ---------------------------------------------------------------------------
# Parameters (deterministic synthetic init); conv weights stored (kH,kW,Cin,Cout)
# ---------------------------------------------------------------------------
def init_params(key, image_nc):
    ks = jax.random.split(key, 8)
    f32 = jnp.float32
    return {
        "w1": jax.random.normal(ks[0], (4, 4, image_nc, C1), f32) * 0.1,
        "b1": jax.random.normal(ks[1], (C1,), f32) * 0.01,
        "w2": jax.random.normal(ks[2], (4, 4, C1, C2), f32) * 0.1,
        "b2": jax.random.normal(ks[3], (C2,), f32) * 0.01,
        "g2": jnp.ones((C2,), f32),
        "bt2": jnp.zeros((C2,), f32),
        "w3": jax.random.normal(ks[4], (4, 4, C2, C3), f32) * 0.1,
        "b3": jax.random.normal(ks[5], (C3,), f32) * 0.01,
        "g3": jnp.ones((C3,), f32),
        "bt3": jnp.zeros((C3,), f32),
        "w4": jax.random.normal(ks[6], (1, 1, C3, 1), f32) * 0.1,
        "b4": jax.random.normal(ks[7], (1,), f32) * 0.01,
    }


def prepare_params(params, image_nc, batch, height, width):
    """One-time packing of parameters (and shape-dependent gather matrices)
    into the exact layouts the kernel consumes.  Keeping this out of the
    jitted forward removes the per-call reshape/cast/transfer ops."""
    oh1 = (height - KSIZE) // STRIDE + 1
    ow1 = (width - KSIZE) // STRIDE + 1
    gt2, oh2, ow2 = _gather_t_np(batch, oh1, ow1, KSIZE, STRIDE)
    gt3, oh3, ow3 = _gather_t_np(batch, oh2, ow2, KSIZE, STRIDE)

    w1 = np.asarray(params["w1"], np.float32)
    w2 = np.asarray(params["w2"], np.float32)
    w3 = np.asarray(params["w3"], np.float32)

    packed = np.zeros((_PK_ROWS, 1), np.float32)
    packed[_PK_B1:_PK_B1 + C1, 0] = np.asarray(params["b1"], np.float32)
    packed[_PK_B2:_PK_B2 + C2, 0] = np.asarray(params["b2"], np.float32)
    packed[_PK_G2:_PK_G2 + C2, 0] = np.asarray(params["g2"], np.float32)
    packed[_PK_BT2:_PK_BT2 + C2, 0] = np.asarray(params["bt2"], np.float32)
    packed[_PK_B3:_PK_B3 + C3, 0] = np.asarray(params["b3"], np.float32)
    packed[_PK_G3:_PK_G3 + C3, 0] = np.asarray(params["g3"], np.float32)
    packed[_PK_BT3:_PK_BT3 + C3, 0] = np.asarray(params["bt3"], np.float32)
    packed[_PK_W4:_PK_W4 + C3, 0] = np.asarray(params["w4"],
                                               np.float32).reshape(C3)
    packed[_PK_B4, 0] = float(np.asarray(params["b4"],
                                         np.float32).reshape(()))

    bf16 = jnp.bfloat16
    prep = {
        # (C_out, taps*C_in) transposed conv weights, tap-major columns.
        "w1t": jnp.asarray(w1.reshape(N_TAPS * image_nc, C1).T, bf16),
        "w2t": jnp.asarray(w2.reshape(N_TAPS * C1, C2).T, bf16),
        "w3t": jnp.asarray(w3.reshape(N_TAPS * C2, C3).T, bf16),
        "gt2": jnp.asarray(gt2, bf16),     # exact 0/1 in bf16
        "gt3": jnp.asarray(gt3, bf16),
        "packed": jnp.asarray(packed),
    }
    return prep, (oh1, ow1, oh2, ow2, oh3, ow3)


# ---------------------------------------------------------------------------
# Full forward pass (matches Discriminator.forward on NCHW input)
# ---------------------------------------------------------------------------
@jax.jit
def discriminator_forward(x_nchw, prep):
    x = x_nchw.astype(jnp.float32)
    n, c_in, h, w = x.shape

    # Layer-1 im2col directly from the NCHW HBM input; later layers are
    # gathered in-kernel from VMEM-resident activations.
    p1t, oh1, ow1 = _im2col_t_nchw(x, KSIZE, STRIDE)
    oh2 = (oh1 - KSIZE) // STRIDE + 1
    ow2 = (ow1 - KSIZE) // STRIDE + 1
    oh3 = (oh2 - KSIZE) // STRIDE + 1
    ow3 = (ow2 - KSIZE) // STRIDE + 1
    m1, m2, m3 = n * oh1 * ow1, n * oh2 * ow2, n * oh3 * ow3
    k1 = N_TAPS * c_in

    inputs = [
        p1t.astype(jnp.bfloat16),          # (taps*Cin, M1)
        prep["w1t"],                       # (8,  taps*Cin)
        prep["w2t"],                       # (16, 128)
        prep["gt2"],                       # (taps, M1, M2)
        prep["w3t"],                       # (32, 256)
        prep["gt3"],                       # (taps, M2, M3)
        prep["packed"],                    # (192, 1)
    ]
    in_specs = [_full_spec(a.shape) for a in inputs]

    flops = (2 * C1 * k1 * m1
             + N_TAPS * 2 * C1 * m1 * m2 + 2 * C2 * (N_TAPS * C1) * m2
             + N_TAPS * 2 * C2 * m2 * m3 + 2 * C3 * (N_TAPS * C2) * m3
             + 2 * C3 * m3)
    bytes_accessed = sum(int(np.prod(a.shape)) * a.dtype.itemsize
                         for a in inputs) + m3 * 4
    cost = pl.CostEstimate(flops=flops,
                           transcendentals=m3 + C2 + C3,
                           bytes_accessed=bytes_accessed)

    out = pl.pallas_call(
        _fused_discriminator_kernel,
        out_shape=jax.ShapeDtypeStruct((1, m3), jnp.float32),
        grid=(1,),
        in_specs=in_specs,
        out_specs=_full_spec((1, m3)),
        compiler_params=pltpu.CompilerParams(
            dimension_semantics=("arbitrary",),
            vmem_limit_bytes=32 * 1024 * 1024),
        cost_estimate=cost,
    )(*inputs)

    # model(x) is (N, 1, OH3, OW3) in NCHW; torch .squeeze() drops singletons.
    return jnp.squeeze(out.reshape(n, oh3, ow3))


if __name__ == "__main__":
    image_nc = 1
    N, H, W = 2, 28, 28   # 28 -> 13 -> 5 -> 1 spatial; final map is 1x1

    key = jax.random.PRNGKey(0)
    k_x, k_p = jax.random.split(key)
    x = jax.random.normal(k_x, (N, image_nc, H, W), jnp.float32)  # NCHW input
    params = init_params(k_p, image_nc)
    prep, _ = prepare_params(params, image_nc, N, H, W)

    out = discriminator_forward(x, prep)
    out = jax.block_until_ready(out)

    assert out.shape == (N,), f"unexpected output shape {out.shape}"
    assert bool(jnp.all((out >= 0.0) & (out <= 1.0))), "sigmoid output out of range"
    print("KERNEL_OK")
</pallas_src>

<mosaic_0001>
module attributes {stable_mosaic.version = 11 : i64} {
  func.func @_fused_discriminator_kernel(%arg0: i32, %arg1: memref<16x338xbf16, #tpu.memory_space<vmem>>, %arg2: memref<8x16xbf16, #tpu.memory_space<vmem>>, %arg3: memref<16x128xbf16, #tpu.memory_space<vmem>>, %arg4: memref<16x338x50xbf16, #tpu.memory_space<vmem>>, %arg5: memref<32x256xbf16, #tpu.memory_space<vmem>>, %arg6: memref<16x50x2xbf16, #tpu.memory_space<vmem>>, %arg7: memref<192x1xf32, #tpu.memory_space<vmem>>, %arg8: memref<1x2xf32, #tpu.memory_space<vmem>>) attributes {dimension_semantics = [#tpu.dimension_semantics<arbitrary>], iteration_bounds = array<i64: 1>, scalar_prefetch = 0 : i64, scratch_operands = 0 : i64, tpu.core_type = #tpu.core_type<tc>, window_params = [{pipeline_mode = #tpu.pipeline_mode<synchronous>, transform_indices = @transform_0, window_bounds = array<i64: 16, 338>}, {pipeline_mode = #tpu.pipeline_mode<synchronous>, transform_indices = @transform_1, window_bounds = array<i64: 8, 16>}, {pipeline_mode = #tpu.pipeline_mode<synchronous>, transform_indices = @transform_2, window_bounds = array<i64: 16, 128>}, {pipeline_mode = #tpu.pipeline_mode<synchronous>, transform_indices = @transform_3, window_bounds = array<i64: 16, 338, 50>}, {pipeline_mode = #tpu.pipeline_mode<synchronous>, transform_indices = @transform_4, window_bounds = array<i64: 32, 256>}, {pipeline_mode = #tpu.pipeline_mode<synchronous>, transform_indices = @transform_5, window_bounds = array<i64: 16, 50, 2>}, {pipeline_mode = #tpu.pipeline_mode<synchronous>, transform_indices = @transform_6, window_bounds = array<i64: 192, 1>}, {pipeline_mode = #tpu.pipeline_mode<synchronous>, transform_indices = @transform_7, window_bounds = array<i64: 1, 2>}]} {
    %c0 = arith.constant 0 : index
    %c0_0 = arith.constant 0 : index
    %0 = vector.load %arg7[%c0, %c0_0] : memref<192x1xf32, #tpu.memory_space<vmem>>, vector<8x1xf32>
    %c8 = arith.constant 8 : index
    %c0_1 = arith.constant 0 : index
    %1 = vector.load %arg7[%c8, %c0_1] : memref<192x1xf32, #tpu.memory_space<vmem>>, vector<16x1xf32>
    %c24 = arith.constant 24 : index
    %c0_2 = arith.constant 0 : index
    %2 = vector.load %arg7[%c24, %c0_2] : memref<192x1xf32, #tpu.memory_space<vmem>>, vector<16x1xf32>
    %c40 = arith.constant 40 : index
    %c0_3 = arith.constant 0 : index
    %3 = vector.load %arg7[%c40, %c0_3] : memref<192x1xf32, #tpu.memory_space<vmem>>, vector<16x1xf32>
    %c56 = arith.constant 56 : index
    %c0_4 = arith.constant 0 : index
    %4 = vector.load %arg7[%c56, %c0_4] : memref<192x1xf32, #tpu.memory_space<vmem>>, vector<32x1xf32>
    %c88 = arith.constant 88 : index
    %c0_5 = arith.constant 0 : index
    %5 = vector.load %arg7[%c88, %c0_5] : memref<192x1xf32, #tpu.memory_space<vmem>>, vector<32x1xf32>
    %c120 = arith.constant 120 : index
    %c0_6 = arith.constant 0 : index
    %6 = vector.load %arg7[%c120, %c0_6] : memref<192x1xf32, #tpu.memory_space<vmem>>, vector<32x1xf32>
    %c152 = arith.constant 152 : index
    %c0_7 = arith.constant 0 : index
    %7 = vector.load %arg7[%c152, %c0_7] : memref<192x1xf32, #tpu.memory_space<vmem>>, vector<32x1xf32>
    %c184 = arith.constant 184 : index
    %c0_8 = arith.constant 0 : index
    %8 = vector.load %arg7[%c184, %c0_8] : memref<192x1xf32, #tpu.memory_space<vmem>>, vector<1x1xf32>
    %c0_9 = arith.constant 0 : index
    %c0_10 = arith.constant 0 : index
    %9 = vector.load %arg2[%c0_9, %c0_10] : memref<8x16xbf16, #tpu.memory_space<vmem>>, vector<8x16xbf16>
    %c0_11 = arith.constant 0 : index
    %c0_12 = arith.constant 0 : index
    %10 = vector.load %arg1[%c0_11, %c0_12] : memref<16x338xbf16, #tpu.memory_space<vmem>>, vector<16x338xbf16>
    %cst = arith.constant dense<0.000000e+00> : vector<8x338xf32>
    %11 = tpu.matmul %9, %10, %cst {dimension_numbers = #tpu.dot_dimension_numbers<[1], [0], [0], [1], [0, 0, 1, 1], [], []>} : vector<8x16xbf16>, vector<16x338xbf16>, vector<8x338xf32> -> vector<8x338xf32>
    %12 = vector.broadcast %0 : vector<8x1xf32> to vector<8x338xf32>
    %13 = arith.addf %11, %12 : vector<8x338xf32>
    %cst_13 = arith.constant 0.000000e+00 : f32
    %14 = vector.broadcast %cst_13 : f32 to vector<8x338xf32>
    %15 = arith.cmpf oge, %13, %14 : vector<8x338xf32>
    %cst_14 = arith.constant 2.000000e-01 : f32
    %16 = vector.broadcast %cst_14 : f32 to vector<8x338xf32>
    %17 = arith.mulf %16, %13 : vector<8x338xf32>
    %18 = arith.select %15, %13, %17 : vector<8x338xi1>, vector<8x338xf32>
    %19 = arith.truncf %18 : vector<8x338xf32> to vector<8x338xbf16>
    %c0_15 = arith.constant 0 : index
    %c0_16 = arith.constant 0 : index
    %c0_17 = arith.constant 0 : index
    %20 = vector.load %arg4[%c0_15, %c0_16, %c0_17] : memref<16x338x50xbf16, #tpu.memory_space<vmem>>, vector<1x338x50xbf16>
    %21 = vector.shape_cast %20 : vector<1x338x50xbf16> to vector<338x50xbf16>
    %cst_18 = arith.constant dense<0.000000e+00> : vector<8x50xf32>
    %22 = tpu.matmul %19, %21, %cst_18 {dimension_numbers = #tpu.dot_dimension_numbers<[1], [0], [0], [1], [0, 0, 1, 1], [], []>} : vector<8x338xbf16>, vector<338x50xbf16>, vector<8x50xf32> -> vector<8x50xf32>
    %c1 = arith.constant 1 : index
    %c0_19 = arith.constant 0 : index
    %c0_20 = arith.constant 0 : index
    %23 = vector.load %arg4[%c1, %c0_19, %c0_20] : memref<16x338x50xbf16, #tpu.memory_space<vmem>>, vector<1x338x50xbf16>
    %24 = vector.shape_cast %23 : vector<1x338x50xbf16> to vector<338x50xbf16>
    %cst_21 = arith.constant dense<0.000000e+00> : vector<8x50xf32>
    %25 = tpu.matmul %19, %24, %cst_21 {dimension_numbers = #tpu.dot_dimension_numbers<[1], [0], [0], [1], [0, 0, 1, 1], [], []>} : vector<8x338xbf16>, vector<338x50xbf16>, vector<8x50xf32> -> vector<8x50xf32>
    %c2 = arith.constant 2 : index
    %c0_22 = arith.constant 0 : index
    %c0_23 = arith.constant 0 : index
    %26 = vector.load %arg4[%c2, %c0_22, %c0_23] : memref<16x338x50xbf16, #tpu.memory_space<vmem>>, vector<1x338x50xbf16>
    %27 = vector.shape_cast %26 : vector<1x338x50xbf16> to vector<338x50xbf16>
    %cst_24 = arith.constant dense<0.000000e+00> : vector<8x50xf32>
    %28 = tpu.matmul %19, %27, %cst_24 {dimension_numbers = #tpu.dot_dimension_numbers<[1], [0], [0], [1], [0, 0, 1, 1], [], []>} : vector<8x338xbf16>, vector<338x50xbf16>, vector<8x50xf32> -> vector<8x50xf32>
    %c3 = arith.constant 3 : index
    %c0_25 = arith.constant 0 : index
    %c0_26 = arith.constant 0 : index
    %29 = vector.load %arg4[%c3, %c0_25, %c0_26] : memref<16x338x50xbf16, #tpu.memory_space<vmem>>, vector<1x338x50xbf16>
    %30 = vector.shape_cast %29 : vector<1x338x50xbf16> to vector<338x50xbf16>
    %cst_27 = arith.constant dense<0.000000e+00> : vector<8x50xf32>
    %31 = tpu.matmul %19, %30, %cst_27 {dimension_numbers = #tpu.dot_dimension_numbers<[1], [0], [0], [1], [0, 0, 1, 1], [], []>} : vector<8x338xbf16>, vector<338x50xbf16>, vector<8x50xf32> -> vector<8x50xf32>
    %c4 = arith.constant 4 : index
    %c0_28 = arith.constant 0 : index
    %c0_29 = arith.constant 0 : index
    %32 = vector.load %arg4[%c4, %c0_28, %c0_29] : memref<16x338x50xbf16, #tpu.memory_space<vmem>>, vector<1x338x50xbf16>
    %33 = vector.shape_cast %32 : vector<1x338x50xbf16> to vector<338x50xbf16>
    %cst_30 = arith.constant dense<0.000000e+00> : vector<8x50xf32>
    %34 = tpu.matmul %19, %33, %cst_30 {dimension_numbers = #tpu.dot_dimension_numbers<[1], [0], [0], [1], [0, 0, 1, 1], [], []>} : vector<8x338xbf16>, vector<338x50xbf16>, vector<8x50xf32> -> vector<8x50xf32>
    %c5 = arith.constant 5 : index
    %c0_31 = arith.constant 0 : index
    %c0_32 = arith.constant 0 : index
    %35 = vector.load %arg4[%c5, %c0_31, %c0_32] : memref<16x338x50xbf16, #tpu.memory_space<vmem>>, vector<1x338x50xbf16>
    %36 = vector.shape_cast %35 : vector<1x338x50xbf16> to vector<338x50xbf16>
    %cst_33 = arith.constant dense<0.000000e+00> : vector<8x50xf32>
    %37 = tpu.matmul %19, %36, %cst_33 {dimension_numbers = #tpu.dot_dimension_numbers<[1], [0], [0], [1], [0, 0, 1, 1], [], []>} : vector<8x338xbf16>, vector<338x50xbf16>, vector<8x50xf32> -> vector<8x50xf32>
    %c6 = arith.constant 6 : index
    %c0_34 = arith.constant 0 : index
    %c0_35 = arith.constant 0 : index
    %38 = vector.load %arg4[%c6, %c0_34, %c0_35] : memref<16x338x50xbf16, #tpu.memory_space<vmem>>, vector<1x338x50xbf16>
    %39 = vector.shape_cast %38 : vector<1x338x50xbf16> to vector<338x50xbf16>
    %cst_36 = arith.constant dense<0.000000e+00> : vector<8x50xf32>
    %40 = tpu.matmul %19, %39, %cst_36 {dimension_numbers = #tpu.dot_dimension_numbers<[1], [0], [0], [1], [0, 0, 1, 1], [], []>} : vector<8x338xbf16>, vector<338x50xbf16>, vector<8x50xf32> -> vector<8x50xf32>
    %c7 = arith.constant 7 : index
    %c0_37 = arith.constant 0 : index
    %c0_38 = arith.constant 0 : index
    %41 = vector.load %arg4[%c7, %c0_37, %c0_38] : memref<16x338x50xbf16, #tpu.memory_space<vmem>>, vector<1x338x50xbf16>
    %42 = vector.shape_cast %41 : vector<1x338x50xbf16> to vector<338x50xbf16>
    %cst_39 = arith.constant dense<0.000000e+00> : vector<8x50xf32>
    %43 = tpu.matmul %19, %42, %cst_39 {dimension_numbers = #tpu.dot_dimension_numbers<[1], [0], [0], [1], [0, 0, 1, 1], [], []>} : vector<8x338xbf16>, vector<338x50xbf16>, vector<8x50xf32> -> vector<8x50xf32>
    %c8_40 = arith.constant 8 : index
    %c0_41 = arith.constant 0 : index
    %c0_42 = arith.constant 0 : index
    %44 = vector.load %arg4[%c8_40, %c0_41, %c0_42] : memref<16x338x50xbf16, #tpu.memory_space<vmem>>, vector<1x338x50xbf16>
    %45 = vector.shape_cast %44 : vector<1x338x50xbf16> to vector<338x50xbf16>
    %cst_43 = arith.constant dense<0.000000e+00> : vector<8x50xf32>
    %46 = tpu.matmul %19, %45, %cst_43 {dimension_numbers = #tpu.dot_dimension_numbers<[1], [0], [0], [1], [0, 0, 1, 1], [], []>} : vector<8x338xbf16>, vector<338x50xbf16>, vector<8x50xf32> -> vector<8x50xf32>
    %c9 = arith.constant 9 : index
    %c0_44 = arith.constant 0 : index
    %c0_45 = arith.constant 0 : index
    %47 = vector.load %arg4[%c9, %c0_44, %c0_45] : memref<16x338x50xbf16, #tpu.memory_space<vmem>>, vector<1x338x50xbf16>
    %48 = vector.shape_cast %47 : vector<1x338x50xbf16> to vector<338x50xbf16>
    %cst_46 = arith.constant dense<0.000000e+00> : vector<8x50xf32>
    %49 = tpu.matmul %19, %48, %cst_46 {dimension_numbers = #tpu.dot_dimension_numbers<[1], [0], [0], [1], [0, 0, 1, 1], [], []>} : vector<8x338xbf16>, vector<338x50xbf16>, vector<8x50xf32> -> vector<8x50xf32>
    %c10 = arith.constant 10 : index
    %c0_47 = arith.constant 0 : index
    %c0_48 = arith.constant 0 : index
    %50 = vector.load %arg4[%c10, %c0_47, %c0_48] : memref<16x338x50xbf16, #tpu.memory_space<vmem>>, vector<1x338x50xbf16>
    %51 = vector.shape_cast %50 : vector<1x338x50xbf16> to vector<338x50xbf16>
    %cst_49 = arith.constant dense<0.000000e+00> : vector<8x50xf32>
    %52 = tpu.matmul %19, %51, %cst_49 {dimension_numbers = #tpu.dot_dimension_numbers<[1], [0], [0], [1], [0, 0, 1, 1], [], []>} : vector<8x338xbf16>, vector<338x50xbf16>, vector<8x50xf32> -> vector<8x50xf32>
    %c11 = arith.constant 11 : index
    %c0_50 = arith.constant 0 : index
    %c0_51 = arith.constant 0 : index
    %53 = vector.load %arg4[%c11, %c0_50, %c0_51] : memref<16x338x50xbf16, #tpu.memory_space<vmem>>, vector<1x338x50xbf16>
    %54 = vector.shape_cast %53 : vector<1x338x50xbf16> to vector<338x50xbf16>
    %cst_52 = arith.constant dense<0.000000e+00> : vector<8x50xf32>
    %55 = tpu.matmul %19, %54, %cst_52 {dimension_numbers = #tpu.dot_dimension_numbers<[1], [0], [0], [1], [0, 0, 1, 1], [], []>} : vector<8x338xbf16>, vector<338x50xbf16>, vector<8x50xf32> -> vector<8x50xf32>
    %c12 = arith.constant 12 : index
    %c0_53 = arith.constant 0 : index
    %c0_54 = arith.constant 0 : index
    %56 = vector.load %arg4[%c12, %c0_53, %c0_54] : memref<16x338x50xbf16, #tpu.memory_space<vmem>>, vector<1x338x50xbf16>
    %57 = vector.shape_cast %56 : vector<1x338x50xbf16> to vector<338x50xbf16>
    %cst_55 = arith.constant dense<0.000000e+00> : vector<8x50xf32>
    %58 = tpu.matmul %19, %57, %cst_55 {dimension_numbers = #tpu.dot_dimension_numbers<[1], [0], [0], [1], [0, 0, 1, 1], [], []>} : vector<8x338xbf16>, vector<338x50xbf16>, vector<8x50xf32> -> vector<8x50xf32>
    %c13 = arith.constant 13 : index
    %c0_56 = arith.constant 0 : index
    %c0_57 = arith.constant 0 : index
    %59 = vector.load %arg4[%c13, %c0_56, %c0_57] : memref<16x338x50xbf16, #tpu.memory_space<vmem>>, vector<1x338x50xbf16>
    %60 = vector.shape_cast %59 : vector<1x338x50xbf16> to vector<338x50xbf16>
    %cst_58 = arith.constant dense<0.000000e+00> : vector<8x50xf32>
    %61 = tpu.matmul %19, %60, %cst_58 {dimension_numbers = #tpu.dot_dimension_numbers<[1], [0], [0], [1], [0, 0, 1, 1], [], []>} : vector<8x338xbf16>, vector<338x50xbf16>, vector<8x50xf32> -> vector<8x50xf32>
    %c14 = arith.constant 14 : index
    %c0_59 = arith.constant 0 : index
    %c0_60 = arith.constant 0 : index
    %62 = vector.load %arg4[%c14, %c0_59, %c0_60] : memref<16x338x50xbf16, #tpu.memory_space<vmem>>, vector<1x338x50xbf16>
    %63 = vector.shape_cast %62 : vector<1x338x50xbf16> to vector<338x50xbf16>
    %cst_61 = arith.constant dense<0.000000e+00> : vector<8x50xf32>
    %64 = tpu.matmul %19, %63, %cst_61 {dimension_numbers = #tpu.dot_dimension_numbers<[1], [0], [0], [1], [0, 0, 1, 1], [], []>} : vector<8x338xbf16>, vector<338x50xbf16>, vector<8x50xf32> -> vector<8x50xf32>
    %c15 = arith.constant 15 : index
    %c0_62 = arith.constant 0 : index
    %c0_63 = arith.constant 0 : index
    %65 = vector.load %arg4[%c15, %c0_62, %c0_63] : memref<16x338x50xbf16, #tpu.memory_space<vmem>>, vector<1x338x50xbf16>
    %66 = vector.shape_cast %65 : vector<1x338x50xbf16> to vector<338x50xbf16>
    %cst_64 = arith.constant dense<0.000000e+00> : vector<8x50xf32>
    %67 = tpu.matmul %19, %66, %cst_64 {dimension_numbers = #tpu.dot_dimension_numbers<[1], [0], [0], [1], [0, 0, 1, 1], [], []>} : vector<8x338xbf16>, vector<338x50xbf16>, vector<8x50xf32> -> vector<8x50xf32>
    %68 = tpu.concatenate %22, %25, %28, %31, %34, %37, %40, %43, %46, %49, %52, %55, %58, %61, %64, %67 in 0 : vector<8x50xf32>, vector<8x50xf32>, vector<8x50xf32>, vector<8x50xf32>, vector<8x50xf32>, vector<8x50xf32>, vector<8x50xf32>, vector<8x50xf32>, vector<8x50xf32>, vector<8x50xf32>, vector<8x50xf32>, vector<8x50xf32>, vector<8x50xf32>, vector<8x50xf32>, vector<8x50xf32>, vector<8x50xf32> -> vector<128x50xf32>
    %69 = arith.truncf %68 : vector<128x50xf32> to vector<128x50xbf16>
    %c0_65 = arith.constant 0 : index
    %c0_66 = arith.constant 0 : index
    %70 = vector.load %arg3[%c0_65, %c0_66] : memref<16x128xbf16, #tpu.memory_space<vmem>>, vector<16x128xbf16>
    %cst_67 = arith.constant dense<0.000000e+00> : vector<16x50xf32>
    %71 = tpu.matmul %70, %69, %cst_67 {dimension_numbers = #tpu.dot_dimension_numbers<[1], [0], [0], [1], [0, 0, 1, 1], [], []>} : vector<16x128xbf16>, vector<128x50xbf16>, vector<16x50xf32> -> vector<16x50xf32>
    %72 = vector.broadcast %1 : vector<16x1xf32> to vector<16x50xf32>
    %73 = arith.addf %71, %72 : vector<16x50xf32>
    %cst_68 = arith.constant dense<0.000000e+00> : vector<16xf32>
    %74 = vector.multi_reduction <add>, %73, %cst_68 [1] : vector<16x50xf32> to vector<16xf32>
    %75 = vector.shape_cast %74 : vector<16xf32> to vector<16x1xf32>
    %cst_69 = arith.constant 5.000000e+01 : f32
    %76 = vector.broadcast %cst_69 : f32 to vector<16x1xf32>
    %77 = arith.divf %75, %76 : vector<16x1xf32>
    %78 = vector.broadcast %77 : vector<16x1xf32> to vector<16x50xf32>
    %79 = arith.subf %73, %78 : vector<16x50xf32>
    %80 = vector.broadcast %77 : vector<16x1xf32> to vector<16x50xf32>
    %81 = arith.subf %73, %80 : vector<16x50xf32>
    %82 = arith.mulf %79, %81 : vector<16x50xf32>
    %cst_70 = arith.constant dense<0.000000e+00> : vector<16xf32>
    %83 = vector.multi_reduction <add>, %82, %cst_70 [1] : vector<16x50xf32> to vector<16xf32>
    %84 = vector.shape_cast %83 : vector<16xf32> to vector<16x1xf32>
    %cst_71 = arith.constant 5.000000e+01 : f32
    %85 = vector.broadcast %cst_71 : f32 to vector<16x1xf32>
    %86 = arith.divf %84, %85 : vector<16x1xf32>
    %87 = vector.broadcast %77 : vector<16x1xf32> to vector<16x50xf32>
    %88 = arith.subf %73, %87 : vector<16x50xf32>
    %cst_72 = arith.constant 9.99999974E-6 : f32
    %89 = vector.broadcast %cst_72 : f32 to vector<16x1xf32>
    %90 = arith.addf %86, %89 : vector<16x1xf32>
    %91 = math.rsqrt %90 : vector<16x1xf32>
    %92 = vector.broadcast %91 : vector<16x1xf32> to vector<16x50xf32>
    %93 = arith.mulf %88, %92 : vector<16x50xf32>
    %94 = vector.broadcast %2 : vector<16x1xf32> to vector<16x50xf32>
    %95 = arith.mulf %93, %94 : vector<16x50xf32>
    %96 = vector.broadcast %3 : vector<16x1xf32> to vector<16x50xf32>
    %97 = arith.addf %95, %96 : vector<16x50xf32>
    %cst_73 = arith.constant 0.000000e+00 : f32
    %98 = vector.broadcast %cst_73 : f32 to vector<16x50xf32>
    %99 = arith.cmpf oge, %97, %98 : vector<16x50xf32>
    %cst_74 = arith.constant 2.000000e-01 : f32
    %100 = vector.broadcast %cst_74 : f32 to vector<16x50xf32>
    %101 = arith.mulf %100, %97 : vector<16x50xf32>
    %102 = arith.select %99, %97, %101 : vector<16x50xi1>, vector<16x50xf32>
    %103 = arith.truncf %102 : vector<16x50xf32> to vector<16x50xbf16>
    %c0_75 = arith.constant 0 : index
    %c0_76 = arith.constant 0 : index
    %c0_77 = arith.constant 0 : index
    %104 = vector.load %arg6[%c0_75, %c0_76, %c0_77] : memref<16x50x2xbf16, #tpu.memory_space<vmem>>, vector<1x50x2xbf16>
    %105 = vector.shape_cast %104 : vector<1x50x2xbf16> to vector<50x2xbf16>
    %cst_78 = arith.constant dense<0.000000e+00> : vector<16x2xf32>
    %106 = tpu.matmul %103, %105, %cst_78 {dimension_numbers = #tpu.dot_dimension_numbers<[1], [0], [0], [1], [0, 0, 1, 1], [], []>} : vector<16x50xbf16>, vector<50x2xbf16>, vector<16x2xf32> -> vector<16x2xf32>
    %c1_79 = arith.constant 1 : index
    %c0_80 = arith.constant 0 : index
    %c0_81 = arith.constant 0 : index
    %107 = vector.load %arg6[%c1_79, %c0_80, %c0_81] : memref<16x50x2xbf16, #tpu.memory_space<vmem>>, vector<1x50x2xbf16>
    %108 = vector.shape_cast %107 : vector<1x50x2xbf16> to vector<50x2xbf16>
    %cst_82 = arith.constant dense<0.000000e+00> : vector<16x2xf32>
    %109 = tpu.matmul %103, %108, %cst_82 {dimension_numbers = #tpu.dot_dimension_numbers<[1], [0], [0], [1], [0, 0, 1, 1], [], []>} : vector<16x50xbf16>, vector<50x2xbf16>, vector<16x2xf32> -> vector<16x2xf32>
    %c2_83 = arith.constant 2 : index
    %c0_84 = arith.constant 0 : index
    %c0_85 = arith.constant 0 : index
    %110 = vector.load %arg6[%c2_83, %c0_84, %c0_85] : memref<16x50x2xbf16, #tpu.memory_space<vmem>>, vector<1x50x2xbf16>
    %111 = vector.shape_cast %110 : vector<1x50x2xbf16> to vector<50x2xbf16>
    %cst_86 = arith.constant dense<0.000000e+00> : vector<16x2xf32>
    %112 = tpu.matmul %103, %111, %cst_86 {dimension_numbers = #tpu.dot_dimension_numbers<[1], [0], [0], [1], [0, 0, 1, 1], [], []>} : vector<16x50xbf16>, vector<50x2xbf16>, vector<16x2xf32> -> vector<16x2xf32>
    %c3_87 = arith.constant 3 : index
    %c0_88 = arith.constant 0 : index
    %c0_89 = arith.constant 0 : index
    %113 = vector.load %arg6[%c3_87, %c0_88, %c0_89] : memref<16x50x2xbf16, #tpu.memory_space<vmem>>, vector<1x50x2xbf16>
    %114 = vector.shape_cast %113 : vector<1x50x2xbf16> to vector<50x2xbf16>
    %cst_90 = arith.constant dense<0.000000e+00> : vector<16x2xf32>
    %115 = tpu.matmul %103, %114, %cst_90 {dimension_numbers = #tpu.dot_dimension_numbers<[1], [0], [0], [1], [0, 0, 1, 1], [], []>} : vector<16x50xbf16>, vector<50x2xbf16>, vector<16x2xf32> -> vector<16x2xf32>
    %c4_91 = arith.constant 4 : index
    %c0_92 = arith.constant 0 : index
    %c0_93 = arith.constant 0 : index
    %116 = vector.load %arg6[%c4_91, %c0_92, %c0_93] : memref<16x50x2xbf16, #tpu.memory_space<vmem>>, vector<1x50x2xbf16>
    %117 = vector.shape_cast %116 : vector<1x50x2xbf16> to vector<50x2xbf16>
    %cst_94 = arith.constant dense<0.000000e+00> : vector<16x2xf32>
    %118 = tpu.matmul %103, %117, %cst_94 {dimension_numbers = #tpu.dot_dimension_numbers<[1], [0], [0], [1], [0, 0, 1, 1], [], []>} : vector<16x50xbf16>, vector<50x2xbf16>, vector<16x2xf32> -> vector<16x2xf32>
    %c5_95 = arith.constant 5 : index
    %c0_96 = arith.constant 0 : index
    %c0_97 = arith.constant 0 : index
    %119 = vector.load %arg6[%c5_95, %c0_96, %c0_97] : memref<16x50x2xbf16, #tpu.memory_space<vmem>>, vector<1x50x2xbf16>
    %120 = vector.shape_cast %119 : vector<1x50x2xbf16> to vector<50x2xbf16>
    %cst_98 = arith.constant dense<0.000000e+00> : vector<16x2xf32>
    %121 = tpu.matmul %103, %120, %cst_98 {dimension_numbers = #tpu.dot_dimension_numbers<[1], [0], [0], [1], [0, 0, 1, 1], [], []>} : vector<16x50xbf16>, vector<50x2xbf16>, vector<16x2xf32> -> vector<16x2xf32>
    %c6_99 = arith.constant 6 : index
    %c0_100 = arith.constant 0 : index
    %c0_101 = arith.constant 0 : index
    %122 = vector.load %arg6[%c6_99, %c0_100, %c0_101] : memref<16x50x2xbf16, #tpu.memory_space<vmem>>, vector<1x50x2xbf16>
    %123 = vector.shape_cast %122 : vector<1x50x2xbf16> to vector<50x2xbf16>
    %cst_102 = arith.constant dense<0.000000e+00> : vector<16x2xf32>
    %124 = tpu.matmul %103, %123, %cst_102 {dimension_numbers = #tpu.dot_dimension_numbers<[1], [0], [0], [1], [0, 0, 1, 1], [], []>} : vector<16x50xbf16>, vector<50x2xbf16>, vector<16x2xf32> -> vector<16x2xf32>
    %c7_103 = arith.constant 7 : index
    %c0_104 = arith.constant 0 : index
    %c0_105 = arith.constant 0 : index
    %125 = vector.load %arg6[%c7_103, %c0_104, %c0_105] : memref<16x50x2xbf16, #tpu.memory_space<vmem>>, vector<1x50x2xbf16>
    %126 = vector.shape_cast %125 : vector<1x50x2xbf16> to vector<50x2xbf16>
    %cst_106 = arith.constant dense<0.000000e+00> : vector<16x2xf32>
    %127 = tpu.matmul %103, %126, %cst_106 {dimension_numbers = #tpu.dot_dimension_numbers<[1], [0], [0], [1], [0, 0, 1, 1], [], []>} : vector<16x50xbf16>, vector<50x2xbf16>, vector<16x2xf32> -> vector<16x2xf32>
    %c8_107 = arith.constant 8 : index
    %c0_108 = arith.constant 0 : index
    %c0_109 = arith.constant 0 : index
    %128 = vector.load %arg6[%c8_107, %c0_108, %c0_109] : memref<16x50x2xbf16, #tpu.memory_space<vmem>>, vector<1x50x2xbf16>
    %129 = vector.shape_cast %128 : vector<1x50x2xbf16> to vector<50x2xbf16>
    %cst_110 = arith.constant dense<0.000000e+00> : vector<16x2xf32>
    %130 = tpu.matmul %103, %129, %cst_110 {dimension_numbers = #tpu.dot_dimension_numbers<[1], [0], [0], [1], [0, 0, 1, 1], [], []>} : vector<16x50xbf16>, vector<50x2xbf16>, vector<16x2xf32> -> vector<16x2xf32>
    %c9_111 = arith.constant 9 : index
    %c0_112 = arith.constant 0 : index
    %c0_113 = arith.constant 0 : index
    %131 = vector.load %arg6[%c9_111, %c0_112, %c0_113] : memref<16x50x2xbf16, #tpu.memory_space<vmem>>, vector<1x50x2xbf16>
    %132 = vector.shape_cast %131 : vector<1x50x2xbf16> to vector<50x2xbf16>
    %cst_114 = arith.constant dense<0.000000e+00> : vector<16x2xf32>
    %133 = tpu.matmul %103, %132, %cst_114 {dimension_numbers = #tpu.dot_dimension_numbers<[1], [0], [0], [1], [0, 0, 1, 1], [], []>} : vector<16x50xbf16>, vector<50x2xbf16>, vector<16x2xf32> -> vector<16x2xf32>
    %c10_115 = arith.constant 10 : index
    %c0_116 = arith.constant 0 : index
    %c0_117 = arith.constant 0 : index
    %134 = vector.load %arg6[%c10_115, %c0_116, %c0_117] : memref<16x50x2xbf16, #tpu.memory_space<vmem>>, vector<1x50x2xbf16>
    %135 = vector.shape_cast %134 : vector<1x50x2xbf16> to vector<50x2xbf16>
    %cst_118 = arith.constant dense<0.000000e+00> : vector<16x2xf32>
    %136 = tpu.matmul %103, %135, %cst_118 {dimension_numbers = #tpu.dot_dimension_numbers<[1], [0], [0], [1], [0, 0, 1, 1], [], []>} : vector<16x50xbf16>, vector<50x2xbf16>, vector<16x2xf32> -> vector<16x2xf32>
    %c11_119 = arith.constant 11 : index
    %c0_120 = arith.constant 0 : index
    %c0_121 = arith.constant 0 : index
    %137 = vector.load %arg6[%c11_119, %c0_120, %c0_121] : memref<16x50x2xbf16, #tpu.memory_space<vmem>>, vector<1x50x2xbf16>
    %138 = vector.shape_cast %137 : vector<1x50x2xbf16> to vector<50x2xbf16>
    %cst_122 = arith.constant dense<0.000000e+00> : vector<16x2xf32>
    %139 = tpu.matmul %103, %138, %cst_122 {dimension_numbers = #tpu.dot_dimension_numbers<[1], [0], [0], [1], [0, 0, 1, 1], [], []>} : vector<16x50xbf16>, vector<50x2xbf16>, vector<16x2xf32> -> vector<16x2xf32>
    %c12_123 = arith.constant 12 : index
    %c0_124 = arith.constant 0 : index
    %c0_125 = arith.constant 0 : index
    %140 = vector.load %arg6[%c12_123, %c0_124, %c0_125] : memref<16x50x2xbf16, #tpu.memory_space<vmem>>, vector<1x50x2xbf16>
    %141 = vector.shape_cast %140 : vector<1x50x2xbf16> to vector<50x2xbf16>
    %cst_126 = arith.constant dense<0.000000e+00> : vector<16x2xf32>
    %142 = tpu.matmul %103, %141, %cst_126 {dimension_numbers = #tpu.dot_dimension_numbers<[1], [0], [0], [1], [0, 0, 1, 1], [], []>} : vector<16x50xbf16>, vector<50x2xbf16>, vector<16x2xf32> -> vector<16x2xf32>
    %c13_127 = arith.constant 13 : index
    %c0_128 = arith.constant 0 : index
    %c0_129 = arith.constant 0 : index
    %143 = vector.load %arg6[%c13_127, %c0_128, %c0_129] : memref<16x50x2xbf16, #tpu.memory_space<vmem>>, vector<1x50x2xbf16>
    %144 = vector.shape_cast %143 : vector<1x50x2xbf16> to vector<50x2xbf16>
    %cst_130 = arith.constant dense<0.000000e+00> : vector<16x2xf32>
    %145 = tpu.matmul %103, %144, %cst_130 {dimension_numbers = #tpu.dot_dimension_numbers<[1], [0], [0], [1], [0, 0, 1, 1], [], []>} : vector<16x50xbf16>, vector<50x2xbf16>, vector<16x2xf32> -> vector<16x2xf32>
    %c14_131 = arith.constant 14 : index
    %c0_132 = arith.constant 0 : index
    %c0_133 = arith.constant 0 : index
    %146 = vector.load %arg6[%c14_131, %c0_132, %c0_133] : memref<16x50x2xbf16, #tpu.memory_space<vmem>>, vector<1x50x2xbf16>
    %147 = vector.shape_cast %146 : vector<1x50x2xbf16> to vector<50x2xbf16>
    %cst_134 = arith.constant dense<0.000000e+00> : vector<16x2xf32>
    %148 = tpu.matmul %103, %147, %cst_134 {dimension_numbers = #tpu.dot_dimension_numbers<[1], [0], [0], [1], [0, 0, 1, 1], [], []>} : vector<16x50xbf16>, vector<50x2xbf16>, vector<16x2xf32> -> vector<16x2xf32>
    %c15_135 = arith.constant 15 : index
    %c0_136 = arith.constant 0 : index
    %c0_137 = arith.constant 0 : index
    %149 = vector.load %arg6[%c15_135, %c0_136, %c0_137] : memref<16x50x2xbf16, #tpu.memory_space<vmem>>, vector<1x50x2xbf16>
    %150 = vector.shape_cast %149 : vector<1x50x2xbf16> to vector<50x2xbf16>
    %cst_138 = arith.constant dense<0.000000e+00> : vector<16x2xf32>
    %151 = tpu.matmul %103, %150, %cst_138 {dimension_numbers = #tpu.dot_dimension_numbers<[1], [0], [0], [1], [0, 0, 1, 1], [], []>} : vector<16x50xbf16>, vector<50x2xbf16>, vector<16x2xf32> -> vector<16x2xf32>
    %152 = tpu.concatenate %106, %109, %112, %115, %118, %121, %124, %127, %130, %133, %136, %139, %142, %145, %148, %151 in 0 : vector<16x2xf32>, vector<16x2xf32>, vector<16x2xf32>, vector<16x2xf32>, vector<16x2xf32>, vector<16x2xf32>, vector<16x2xf32>, vector<16x2xf32>, vector<16x2xf32>, vector<16x2xf32>, vector<16x2xf32>, vector<16x2xf32>, vector<16x2xf32>, vector<16x2xf32>, vector<16x2xf32>, vector<16x2xf32> -> vector<256x2xf32>
    %153 = arith.truncf %152 : vector<256x2xf32> to vector<256x2xbf16>
    %c0_139 = arith.constant 0 : index
    %c0_140 = arith.constant 0 : index
    %154 = vector.load %arg5[%c0_139, %c0_140] : memref<32x256xbf16, #tpu.memory_space<vmem>>, vector<32x256xbf16>
    %cst_141 = arith.constant dense<0.000000e+00> : vector<32x2xf32>
    %155 = tpu.matmul %154, %153, %cst_141 {dimension_numbers = #tpu.dot_dimension_numbers<[1], [0], [0], [1], [0, 0, 1, 1], [], []>} : vector<32x256xbf16>, vector<256x2xbf16>, vector<32x2xf32> -> vector<32x2xf32>
    %156 = vector.broadcast %4 : vector<32x1xf32> to vector<32x2xf32>
    %157 = arith.addf %155, %156 : vector<32x2xf32>
    %cst_142 = arith.constant dense<0.000000e+00> : vector<32xf32>
    %158 = vector.multi_reduction <add>, %157, %cst_142 [1] : vector<32x2xf32> to vector<32xf32>
    %159 = vector.shape_cast %158 : vector<32xf32> to vector<32x1xf32>
    %cst_143 = arith.constant 2.000000e+00 : f32
    %160 = vector.broadcast %cst_143 : f32 to vector<32x1xf32>
    %161 = arith.divf %159, %160 : vector<32x1xf32>
    %162 = vector.broadcast %161 : vector<32x1xf32> to vector<32x2xf32>
    %163 = arith.subf %157, %162 : vector<32x2xf32>
    %164 = vector.broadcast %161 : vector<32x1xf32> to vector<32x2xf32>
    %165 = arith.subf %157, %164 : vector<32x2xf32>
    %166 = arith.mulf %163, %165 : vector<32x2xf32>
    %cst_144 = arith.constant dense<0.000000e+00> : vector<32xf32>
    %167 = vector.multi_reduction <add>, %166, %cst_144 [1] : vector<32x2xf32> to vector<32xf32>
    %168 = vector.shape_cast %167 : vector<32xf32> to vector<32x1xf32>
    %cst_145 = arith.constant 2.000000e+00 : f32
    %169 = vector.broadcast %cst_145 : f32 to vector<32x1xf32>
    %170 = arith.divf %168, %169 : vector<32x1xf32>
    %171 = vector.broadcast %161 : vector<32x1xf32> to vector<32x2xf32>
    %172 = arith.subf %157, %171 : vector<32x2xf32>
    %cst_146 = arith.constant 9.99999974E-6 : f32
    %173 = vector.broadcast %cst_146 : f32 to vector<32x1xf32>
    %174 = arith.addf %170, %173 : vector<32x1xf32>
    %175 = math.rsqrt %174 : vector<32x1xf32>
    %176 = vector.broadcast %175 : vector<32x1xf32> to vector<32x2xf32>
    %177 = arith.mulf %172, %176 : vector<32x2xf32>
    %178 = vector.broadcast %5 : vector<32x1xf32> to vector<32x2xf32>
    %179 = arith.mulf %177, %178 : vector<32x2xf32>
    %180 = vector.broadcast %6 : vector<32x1xf32> to vector<32x2xf32>
    %181 = arith.addf %179, %180 : vector<32x2xf32>
    %cst_147 = arith.constant 0.000000e+00 : f32
    %182 = vector.broadcast %cst_147 : f32 to vector<32x2xf32>
    %183 = arith.cmpf oge, %181, %182 : vector<32x2xf32>
    %cst_148 = arith.constant 2.000000e-01 : f32
    %184 = vector.broadcast %cst_148 : f32 to vector<32x2xf32>
    %185 = arith.mulf %184, %181 : vector<32x2xf32>
    %186 = arith.select %183, %181, %185 : vector<32x2xi1>, vector<32x2xf32>
    %187 = vector.broadcast %7 : vector<32x1xf32> to vector<32x2xf32>
    %188 = arith.mulf %186, %187 : vector<32x2xf32>
    %cst_149 = arith.constant dense<0.000000e+00> : vector<2xf32>
    %189 = vector.multi_reduction <add>, %188, %cst_149 [0] : vector<32x2xf32> to vector<2xf32>
    %190 = vector.shape_cast %189 : vector<2xf32> to vector<1x2xf32>
    %191 = vector.broadcast %8 : vector<1x1xf32> to vector<1x2xf32>
    %192 = arith.addf %190, %191 : vector<1x2xf32>
    %193 = math.absf %192 : vector<1x2xf32>
    %cst_150 = arith.constant 0.000000e+00 : f32
    %194 = vector.broadcast %cst_150 : f32 to vector<1x2xf32>
    %195 = arith.subf %194, %193 : vector<1x2xf32>
    %196 = math.exp %195 : vector<1x2xf32>
    %cst_151 = arith.constant 1.000000e+00 : f32
    %197 = vector.broadcast %cst_151 : f32 to vector<1x2xf32>
    %198 = arith.addf %197, %196 : vector<1x2xf32>
    %cst_152 = arith.constant 1.000000e+00 : f32
    %199 = vector.broadcast %cst_152 : f32 to vector<1x2xf32>
    %200 = arith.divf %199, %198 : vector<1x2xf32>
    %cst_153 = arith.constant 0.000000e+00 : f32
    %201 = vector.broadcast %cst_153 : f32 to vector<1x2xf32>
    %202 = arith.cmpf oge, %192, %201 : vector<1x2xf32>
    %203 = arith.mulf %196, %200 : vector<1x2xf32>
    %204 = arith.select %202, %200, %203 : vector<1x2xi1>, vector<1x2xf32>
    %c0_154 = arith.constant 0 : index
    %c0_155 = arith.constant 0 : index
    %205 = vector.load %arg8[%c0_154, %c0_155] : memref<1x2xf32, #tpu.memory_space<vmem>>, vector<1x2xf32>
    tpu.vector_store %arg8[%c0_154, %c0_155], %204 {strides = array<i32>} : memref<1x2xf32, #tpu.memory_space<vmem>>, vector<1x2xf32>,
    return
  }
  func.func @transform_0(%arg0: i32) -> (i32, i32) {
    %c0_i32 = arith.constant 0 : i32
    %c0_i32_0 = arith.constant 0 : i32
    %c0_i32_1 = arith.constant 0 : i32
    return %c0_i32, %c0_i32_0 : i32, i32
  }
  func.func @transform_1(%arg0: i32) -> (i32, i32) {
    %c0_i32 = arith.constant 0 : i32
    %c0_i32_0 = arith.constant 0 : i32
    %c0_i32_1 = arith.constant 0 : i32
    return %c0_i32, %c0_i32_0 : i32, i32
  }
  func.func @transform_2(%arg0: i32) -> (i32, i32) {
    %c0_i32 = arith.constant 0 : i32
    %c0_i32_0 = arith.constant 0 : i32
    %c0_i32_1 = arith.constant 0 : i32
    return %c0_i32, %c0_i32_0 : i32, i32
  }
  func.func @transform_3(%arg0: i32) -> (i32, i32, i32) {
    %c0_i32 = arith.constant 0 : i32
    %c0_i32_0 = arith.constant 0 : i32
    %c0_i32_1 = arith.constant 0 : i32
    %c0_i32_2 = arith.constant 0 : i32
    return %c0_i32, %c0_i32_0, %c0_i32_1 : i32, i32, i32
  }
  func.func @transform_4(%arg0: i32) -> (i32, i32) {
    %c0_i32 = arith.constant 0 : i32
    %c0_i32_0 = arith.constant 0 : i32
    %c0_i32_1 = arith.constant 0 : i32
    return %c0_i32, %c0_i32_0 : i32, i32
  }
  func.func @transform_5(%arg0: i32) -> (i32, i32, i32) {
    %c0_i32 = arith.constant 0 : i32
    %c0_i32_0 = arith.constant 0 : i32
    %c0_i32_1 = arith.constant 0 : i32
    %c0_i32_2 = arith.constant 0 : i32
    return %c0_i32, %c0_i32_0, %c0_i32_1 : i32, i32, i32
  }
  func.func @transform_6(%arg0: i32) -> (i32, i32) {
    %c0_i32 = arith.constant 0 : i32
    %c0_i32_0 = arith.constant 0 : i32
    %c0_i32_1 = arith.constant 0 : i32
    return %c0_i32, %c0_i32_0 : i32, i32
  }
  func.func @transform_7(%arg0: i32) -> (i32, i32) {
    %c0_i32 = arith.constant 0 : i32
    %c0_i32_0 = arith.constant 0 : i32
    %c0_i32_1 = arith.constant 0 : i32
    return %c0_i32, %c0_i32_0 : i32, i32
  }
}

</mosaic_0001>

<llo_original>
// kernel: discriminator_forward.1
$region0: #{discriminator_forward.1}
  #allocation0 [shape = 'u32[]', space=smem, size = 0x4, offset = 0x4, fixed_abs, tag = 'smem constant byte address 0x4 - core index']
  #allocation1 [shape = 'u32[144,128]{1,0:T(1,128)}', space=vmem, size = 0x12000, scoped, tag = 'internal scratch']
  %s0 = inlined_call_operand.vmem [shape: bf16[16,338], index: 0, kind: input, shape index: {}]
  %s1 = inlined_call_operand.vmem [shape: bf16[8,16], index: 1, kind: input, shape index: {}]
  %s2 = inlined_call_operand.vmem [shape: bf16[16,128], index: 2, kind: input, shape index: {}]
  %s3 = inlined_call_operand.vmem [shape: bf16[16,338,50], index: 3, kind: input, shape index: {}]
  %s4 = inlined_call_operand.vmem [shape: bf16[32,256], index: 4, kind: input, shape index: {}]
  %s5 = inlined_call_operand.vmem [shape: bf16[16,50,2], index: 5, kind: input, shape index: {}]
  %s6 = inlined_call_operand.vmem [shape: f32[192,1], index: 6, kind: input, shape index: {}]
  %s7 = inlined_call_operand.hbm [shape: f32[1,2], index: 7, kind: output, shape index: {}]
  %s8 = sld [smem:[#allocation0]]
  $region38: #{discriminator_forward.1} parent=0
    _
  %s10 = ssub.s32 1, %s8
  %s11 = scalar_select 0, %s10, %s8
  $region1: #{discriminator_forward.1} parent=0
    #allocation2 [shape = 'u8[512]{0}', space=vmem, size = 0x400, scoped, tag = 'output window, operand 0, single buffered']
    #allocation3 [shape = 's32[1]{0}', space=sflag, size = 0x4, scoped, tag = 'scoped memory for discriminator_forward.1']
    %12 = vsyncpa [#allocation3], 0
    // Predicated region
    $region2: #{discriminator_forward.1} parent=1 // pred_check
      _
    $region3: #{discriminator_forward.1} parent=1 // pred_check_branch
      %14 = sbr.rel (0) target = $region5
    $region4: #{discriminator_forward.1} parent=1 // pred_region
      _
    $region5: #{discriminator_forward.1} parent=1 // pred_fallthru
      _
    // Predicated region
    $region6: #{discriminator_forward.1} parent=1 // pred_check
      _
    $region7: #{discriminator_forward.1} parent=1 // pred_check_branch
      %16 = sbr.rel (0) target = $region9
    $region8: #{discriminator_forward.1} parent=1 // pred_region
      _
    $region9: #{discriminator_forward.1} parent=1 // pred_fallthru
      _
    // Predicated region
    $region10: #{discriminator_forward.1} parent=1 // pred_check
      _
    $region11: #{discriminator_forward.1} parent=1 // pred_check_branch
      %18 = sbr.rel (0) target = $region13
    $region12: #{discriminator_forward.1} parent=1 // pred_region
      _
    $region13: #{discriminator_forward.1} parent=1 // pred_fallthru
      _
    // Predicated region
    $region14: #{discriminator_forward.1} parent=1 // pred_check
      _
    $region15: #{discriminator_forward.1} parent=1 // pred_check_branch
      %20 = sbr.rel (0) target = $region17
    $region16: #{discriminator_forward.1} parent=1 // pred_region
      _
    $region17: #{discriminator_forward.1} parent=1 // pred_fallthru
      _
    // Predicated region
    $region18: #{discriminator_forward.1} parent=1 // pred_check
      _
    $region19: #{discriminator_forward.1} parent=1 // pred_check_branch
      %22 = sbr.rel (0) target = $region21
    $region20: #{discriminator_forward.1} parent=1 // pred_region
      _
    $region21: #{discriminator_forward.1} parent=1 // pred_fallthru
      _
    // Predicated region
    $region22: #{discriminator_forward.1} parent=1 // pred_check
      _
    $region23: #{discriminator_forward.1} parent=1 // pred_check_branch
      %24 = sbr.rel (0) target = $region25
    $region24: #{discriminator_forward.1} parent=1 // pred_region
      _
    $region25: #{discriminator_forward.1} parent=1 // pred_fallthru
      _
    // Predicated region
    $region26: #{discriminator_forward.1} parent=1 // pred_check
      _
    $region27: #{discriminator_forward.1} parent=1 // pred_check_branch
      %26 = sbr.rel (0) target = $region29
    $region28: #{discriminator_forward.1} parent=1 // pred_region
      _
    $region29: #{discriminator_forward.1} parent=1 // pred_fallthru
      _
    %v28 = vld [vmem:[%s6] sm:$0xff]
    %v29 = vld [vmem:[%s6 + $0x8] sm:$0xff]
    %v30 = vld [vmem:[%s6 + $0x10] sm:$0xff]
    %v31 = vld [vmem:[%s6 + $0x18] sm:$0xff]
    %v32 = vld [vmem:[%s6 + $0x20] sm:$0xff]
    %v33 = vld [vmem:[%s6 + $0x28] sm:$0xff]
    %v34 = vld [vmem:[%s6 + $0x30] sm:$0xff]
    %v35 = vld [vmem:[%s6 + $0x38] sm:$0xff]
    %v36 = vld [vmem:[%s6 + $0x40] sm:$0xff]
    %v37 = vld [vmem:[%s6 + $0x48] sm:$0xff]
    %v38 = vld [vmem:[%s6 + $0x50] sm:$0xff]
    %v39 = vld [vmem:[%s6 + $0x58] sm:$0xff]
    %v40 = vld [vmem:[%s6 + $0x60] sm:$0xff]
    %v41 = vld [vmem:[%s6 + $0x68] sm:$0xff]
    %v42 = vld [vmem:[%s6 + $0x70] sm:$0xff]
    %v43 = vld [vmem:[%s6 + $0x78] sm:$0xff]
    %v44 = vld [vmem:[%s6 + $0x80] sm:$0xff]
    %v45 = vld [vmem:[%s6 + $0x88] sm:$0xff]
    %v46 = vld [vmem:[%s6 + $0x90] sm:$0xff]
    %v47 = vld [vmem:[%s6 + $0x98] sm:$0xff]
    %v48 = vld [vmem:[%s6 + $0xa0] sm:$0xff]
    %v49 = vld [vmem:[%s6 + $0xa8] sm:$0xff]
    %v50 = vld [vmem:[%s6 + $0xb0] sm:$0xff]
    %v51 = vld [vmem:[%s6 + $0xb8] sm:$0x1]
    %v52 = vld [vmem:[%s1] sm:$0xf]
    %v53 = vld [vmem:[%s0] sm:$0xff]
    %v54 = vld [vmem:[%s0 + $0x8] sm:$0xf]
    %v55 = vld [vmem:[%s0 + $0xc] sm:$0xff]
    %v56 = vld [vmem:[%s0 + $0x14] sm:$0xf]
    %58 = vset.pattern.permute.xlu0 0
    %59 = vperm.xlu0 %58, %v28
    %v60 = vpop.permute.xlu0 %59
    %v66 = vunpack.c.l.b16 %v53
    %v67 = vunpack.c.h.b16 %v53
    %v68 = vunpack.c.l.b16 %v54
    %v69 = vunpack.c.l.b16 %v55
    %v70 = vunpack.c.h.b16 %v55
    %v71 = vunpack.c.l.b16 %v56
    %v72 = vpack.c.b16 %v69, %v66
    %v73 = vpack.c.b16 %v70, %v67
    %v74 = vpack.c.b16 %v71, %v68
    %vm78 = vcmask 130048
    %v80 = vsel %vm78, %v52, 0
    %82 = vmatprep.subr.bf16.mxu0 %v73
    %83 = vmatpush1.bf16.msra.mxu0 %v72
    %84 = vmatprep.subr.bf16.mxu0 0
    %85 = vmatpush1.bf16.msra.mxu0 0
    %86 = vmatprep.subr.bf16.mxu0 0
    %87 = vmatpush1.bf16.msra.mxu0 0
    %88 = vmatprep.subr.bf16.mxu0 0
    %89 = vmatpush1.bf16.msra.mxu0 0
    %90 = vmatprep.subr.bf16.mxu0 0
    %91 = vmatpush1.bf16.msra.mxu0 0
    %92 = vmatprep.subr.bf16.mxu0 0
    %93 = vmatpush1.bf16.msra.mxu0 0
    %94 = vmatprep.subr.bf16.mxu0 0
    %95 = vmatpush1.bf16.msra.mxu0 0
    %96 = vmatprep.subr.bf16.mxu0 0
    %97 = vmatpush1.bf16.msra.mxu0 0
    %98 = vmatprep.subr.bf16.mxu0 0
    %99 = vmatpush1.bf16.msra.mxu0 0
    %100 = vmatprep.subr.bf16.mxu0 0
    %101 = vmatpush1.bf16.msra.mxu0 0
    %102 = vmatprep.subr.bf16.mxu0 0
    %103 = vmatpush1.bf16.msra.mxu0 0
    %104 = vmatprep.subr.bf16.mxu0 0
    %105 = vmatpush1.bf16.msra.mxu0 0
    %106 = vmatprep.subr.bf16.mxu0 0
    %107 = vmatpush1.bf16.msra.mxu0 0
    %108 = vmatprep.subr.bf16.mxu0 0
    %109 = vmatpush1.bf16.msra.mxu0 0
    %110 = vmatprep.subr.bf16.mxu0 0
    %111 = vmatpush1.bf16.msra.mxu0 0
    %112 = vmatprep.subr.bf16.mxu0 0
    %113 = vmatpush1.bf16.msra.mxu0 0
    %114 = vmatprep.mubr.bf16.mxu0 0
    %115 = vmatmul.mubr.bf16.gmra.mrb[0].mxu0 %v80
    %v116 = vpop.f32.mrb[0].mxu0
    %v117 = vadd.f32 %v60, %v116
    %v118 = vpop.f32.mrb[0].mxu0
    %v119 = vadd.f32 %v60, %v118
    %v120 = vpop.f32.mrb[0].mxu0
    %v121 = vpop.f32.mrb[0].mxu0
    %122 = vdwg.mxu0
    %123 = vmatprep.subr.bf16.mxu0 0
    %124 = vmatpush1.bf16.msra.mxu0 %v74
    %125 = vmatprep.subr.bf16.mxu0 0
    %126 = vmatpush1.bf16.msra.mxu0 0
    %127 = vmatprep.subr.bf16.mxu0 0
    %128 = vmatpush1.bf16.msra.mxu0 0
    %129 = vmatprep.subr.bf16.mxu0 0
    %130 = vmatpush1.bf16.msra.mxu0 0
    %131 = vmatprep.subr.bf16.mxu0 0
    %132 = vmatpush1.bf16.msra.mxu0 0
    %133 = vmatprep.subr.bf16.mxu0 0
    %134 = vmatpush1.bf16.msra.mxu0 0
    %135 = vmatprep.subr.bf16.mxu0 0
    %136 = vmatpush1.bf16.msra.mxu0 0
    %137 = vmatprep.subr.bf16.mxu0 0
    %138 = vmatpush1.bf16.msra.mxu0 0
    %139 = vmatprep.subr.bf16.mxu0 0
    %140 = vmatpush1.bf16.msra.mxu0 0
    %141 = vmatprep.subr.bf16.mxu0 0
    %142 = vmatpush1.bf16.msra.mxu0 0
    %143 = vmatprep.subr.bf16.mxu0 0
    %144 = vmatpush1.bf16.msra.mxu0 0
    %145 = vmatprep.subr.bf16.mxu0 0
    %146 = vmatpush1.bf16.msra.mxu0 0
    %147 = vmatprep.subr.bf16.mxu0 0
    %148 = vmatpush1.bf16.msra.mxu0 0
    %149 = vmatprep.subr.bf16.mxu0 0
    %150 = vmatpush1.bf16.msra.mxu0 0
    %151 = vmatprep.subr.bf16.mxu0 0
    %152 = vmatpush1.bf16.msra.mxu0 0
    %153 = vmatprep.subr.bf16.mxu0 0
    %154 = vmatpush1.bf16.msra.mxu0 0
    %155 = vmatprep.mubr.bf16.mxu0 0
    %156 = vmatmul.mubr.bf16.gmra.mrb[0].mxu0 %v80
    %v157 = vpop.f32.mrb[0].mxu0
    %v158 = vadd.f32 %v60, %v157
    %v159 = vpop.f32.mrb[0].mxu0
    %v160 = vpop.f32.mrb[0].mxu0
    %v161 = vpop.f32.mrb[0].mxu0
    %162 = vdwg.mxu0
    %vm163 = vcmp.ge.f32.partialorder %v117, 0.0
    %vm164 = vcmp.ge.f32.partialorder %v119, 0.0
    %vm165 = vcmp.ge.f32.partialorder %v158, 0.0
    %v166 = vmul.f32 %v117, 0.2
    %v167 = vmul.f32 %v119, 0.2
    %v168 = vmul.f32 %v158, 0.2
    %v169 = vsel %vm163, %v117, %v166
    %v170 = vsel %vm164, %v119, %v167
    %v171 = vsel %vm165, %v158, %v168
    %v172 = vpack.c.bf16 %v169, %v169
    %v173 = vpack.c.bf16 %v170, %v170
    %v174 = vpack.c.bf16 %v171, %v171
    %v175 = vld [vmem:[%s3] sm:$0xf]
    %v176 = vld [vmem:[%s3 + $0x4] sm:$0xf]
    %v177 = vld [vmem:[%s3 + $0x8] sm:$0xf]
    %v178 = vld [vmem:[%s3 + $0xc] sm:$0xf]
    %v179 = vld [vmem:[%s3 + $0x10] sm:$0xf]
    %v180 = vld [vmem:[%s3 + $0x14] sm:$0xf]
    %v181 = vld [vmem:[%s3 + $0x18] sm:$0xf]
    %v182 = vld [vmem:[%s3 + $0x1c] sm:$0xf]
    %v183 = vld [vmem:[%s3 + $0x20] sm:$0xf]
    %v184 = vld [vmem:[%s3 + $0x24] sm:$0xf]
    %v185 = vld [vmem:[%s3 + $0x28] sm:$0xf]
    %v186 = vld [vmem:[%s3 + $0x2c] sm:$0xf]
    %v187 = vld [vmem:[%s3 + $0x30] sm:$0xf]
    %v188 = vld [vmem:[%s3 + $0x34] sm:$0xf]
    %v189 = vld [vmem:[%s3 + $0x38] sm:$0xf]
    %v190 = vld [vmem:[%s3 + $0x3c] sm:$0xf]
    %v191 = vld [vmem:[%s3 + $0x40] sm:$0xf]
    %v192 = vld [vmem:[%s3 + $0x44] sm:$0xf]
    %v193 = vld [vmem:[%s3 + $0x48] sm:$0xf]
    %v194 = vld [vmem:[%s3 + $0x4c] sm:$0xf]
    %v195 = vld [vmem:[%s3 + $0x50] sm:$0xf]
    %v196 = vld [vmem:[%s3 + $0x54] sm:$0xf]
    %v197 = vld [vmem:[%s3 + $0x58] sm:$0xf]
    %v198 = vld [vmem:[%s3 + $0x5c] sm:$0xf]
    %v199 = vld [vmem:[%s3 + $0x60] sm:$0xf]
    %v200 = vld [vmem:[%s3 + $0x64] sm:$0xf]
    %v201 = vld [vmem:[%s3 + $0x68] sm:$0xf]
    %v202 = vld [vmem:[%s3 + $0x6c] sm:$0xf]
    %v203 = vld [vmem:[%s3 + $0x70] sm:$0xf]
    %v204 = vld [vmem:[%s3 + $0x74] sm:$0xf]
    %v205 = vld [vmem:[%s3 + $0x78] sm:$0xf]
    %v206 = vld [vmem:[%s3 + $0x7c] sm:$0xf]
    %v207 = vld [vmem:[%s3 + $0x80] sm:$0xf]
    %v208 = vld [vmem:[%s3 + $0x84] sm:$0xf]
    %v209 = vld [vmem:[%s3 + $0x88] sm:$0xf]
    %v210 = vld [vmem:[%s3 + $0x8c] sm:$0xf]
    %v211 = vld [vmem:[%s3 + $0x90] sm:$0xf]
    %v212 = vld [vmem:[%s3 + $0x94] sm:$0xf]
    %v213 = vld [vmem:[%s3 + $0x98] sm:$0xf]
    %v214 = vld [vmem:[%s3 + $0x9c] sm:$0xf]
    %v215 = vld [vmem:[%s3 + $0xa0] sm:$0xf]
    %v216 = vld [vmem:[%s3 + $0xa4] sm:$0xf]
    %v217 = vld [vmem:[%s3 + $0xa8] sm:$0x1]
    %v261 = vunpack.c.l.b16 %v175
    %v262 = vunpack.c.l.b16 %v176
    %v263 = vunpack.c.l.b16 %v177
    %v264 = vunpack.c.l.b16 %v178
    %v265 = vunpack.c.l.b16 %v179
    %v266 = vunpack.c.l.b16 %v180
    %v267 = vunpack.c.l.b16 %v181
    %v268 = vunpack.c.l.b16 %v182
    %v269 = vunpack.c.l.b16 %v183
    %v270 = vunpack.c.l.b16 %v184
    %v271 = vunpack.c.l.b16 %v185
    %v272 = vunpack.c.l.b16 %v186
    %v273 = vunpack.c.l.b16 %v187
    %v274 = vunpack.c.l.b16 %v188
    %v275 = vunpack.c.l.b16 %v189
    %v276 = vunpack.c.l.b16 %v190
    %v277 = vunpack.c.l.b16 %v191
    %v278 = vunpack.c.l.b16 %v192
    %v279 = vunpack.c.l.b16 %v193
    %v280 = vunpack.c.l.b16 %v194
    %v281 = vunpack.c.l.b16 %v195
    %v282 = vunpack.c.l.b16 %v196
    %v283 = vunpack.c.l.b16 %v197
    %v284 = vunpack.c.l.b16 %v198
    %v285 = vunpack.c.l.b16 %v199
    %v286 = vunpack.c.l.b16 %v200
    %v287 = vunpack.c.l.b16 %v201
    %v288 = vunpack.c.l.b16 %v202
    %v289 = vunpack.c.l.b16 %v203
    %v290 = vunpack.c.l.b16 %v204
    %v291 = vunpack.c.l.b16 %v205
    %v292 = vunpack.c.l.b16 %v206
    %v293 = vunpack.c.l.b16 %v207
    %v294 = vunpack.c.l.b16 %v208
    %v295 = vunpack.c.l.b16 %v209
    %v296 = vunpack.c.l.b16 %v210
    %v297 = vunpack.c.l.b16 %v211
    %v298 = vunpack.c.l.b16 %v212
    %v299 = vunpack.c.l.b16 %v213
    %v300 = vunpack.c.l.b16 %v214
    %v301 = vunpack.c.l.b16 %v215
    %v302 = vunpack.c.l.b16 %v216
    %v303 = vunpack.c.l.b16 %v217
    %v304 = vpack.c.b16 %v262, %v261
    %v305 = vpack.c.b16 %v264, %v263
    %v306 = vpack.c.b16 %v266, %v265
    %v307 = vpack.c.b16 %v268, %v267
    %v308 = vpack.c.b16 %v270, %v269
    %v309 = vpack.c.b16 %v272, %v271
    %v310 = vpack.c.b16 %v274, %v273
    %v311 = vpack.c.b16 %v276, %v275
    %v312 = vpack.c.b16 %v278, %v277
    %v313 = vpack.c.b16 %v280, %v279
    %v314 = vpack.c.b16 %v282, %v281
    %v315 = vpack.c.b16 %v284, %v283
    %v316 = vpack.c.b16 %v286, %v285
    %v317 = vpack.c.b16 %v288, %v287
    %v318 = vpack.c.b16 %v290, %v289
    %v319 = vpack.c.b16 %v292, %v291
    %v320 = vpack.c.b16 %v294, %v293
    %v321 = vpack.c.b16 %v296, %v295
    %v322 = vpack.c.b16 %v298, %v297
    %v323 = vpack.c.b16 %v300, %v299
    %v324 = vpack.c.b16 %v302, %v301
    %v325 = vpack.c.b16 %v303, %v303
    %vm347 = vcmask 670720
    %v349 = vsel %vm347, %v174, 0
    %vm351 = vcmask 1040384
    %v353 = vsel %vm351, %v325, 0
    %355 = vmatprep.subr.bf16.mxu0 0
    %356 = vmatpush1.bf16.msra.mxu0 %v304
    %357 = vmatprep.subr.bf16.mxu0 0
    %358 = vmatpush1.bf16.msra.mxu0 %v305
    %359 = vmatprep.subr.bf16.mxu0 0
    %360 = vmatpush1.bf16.msra.mxu0 %v306
    %361 = vmatprep.subr.bf16.mxu0 0
    %362 = vmatpush1.bf16.msra.mxu0 %v307
    %363 = vmatprep.subr.bf16.mxu0 0
    %364 = vmatpush1.bf16.msra.mxu0 %v308
    %365 = vmatprep.subr.bf16.mxu0 0
    %366 = vmatpush1.bf16.msra.mxu0 %v309
    %367 = vmatprep.subr.bf16.mxu0 0
    %368 = vmatpush1.bf16.msra.mxu0 %v310
    %369 = vmatprep.subr.bf16.mxu0 0
    %370 = vmatpush1.bf16.msra.mxu0 %v311
    %371 = vmatprep.subr.bf16.mxu0 0
    %372 = vmatpush1.bf16.msra.mxu0 %v312
    %373 = vmatprep.subr.bf16.mxu0 0
    %374 = vmatpush1.bf16.msra.mxu0 %v313
    %375 = vmatprep.subr.bf16.mxu0 0
    %376 = vmatpush1.bf16.msra.mxu0 %v314
    %377 = vmatprep.subr.bf16.mxu0 0
    %378 = vmatpush1.bf16.msra.mxu0 %v315
    %379 = vmatprep.subr.bf16.mxu0 0
    %380 = vmatpush1.bf16.msra.mxu0 %v316
    %381 = vmatprep.subr.bf16.mxu0 0
    %382 = vmatpush1.bf16.msra.mxu0 %v317
    %383 = vmatprep.subr.bf16.mxu0 0
    %384 = vmatpush1.bf16.msra.mxu0 %v318
    %385 = vmatprep.subr.bf16.mxu0 0
    %386 = vmatpush1.bf16.msra.mxu0 %v319
    %387 = vmatprep.mubr.bf16.mxu0 %v173
    %388 = vmatmul.mubr.bf16.gmra.mrb[0].mxu0 %v172
    %v389 = vpop.f32.mrb[0].mxu0
    %v390 = vadd.f32 0.0, %v389
    %v391 = vpop.f32.mrb[0].mxu0
    %v392 = vpop.f32.mrb[0].mxu0
    %v393 = vpop.f32.mrb[0].mxu0
    %394 = vdwg.mxu0
    %395 = vmatprep.subr.bf16.mxu0 0
    %396 = vmatpush1.bf16.msra.mxu0 %v320
    %397 = vmatprep.subr.bf16.mxu0 0
    %398 = vmatpush1.bf16.msra.mxu0 %v321
    %399 = vmatprep.subr.bf16.mxu0 0
    %400 = vmatpush1.bf16.msra.mxu0 %v322
    %401 = vmatprep.subr.bf16.mxu0 0
    %402 = vmatpush1.bf16.msra.mxu0 %v323
    %403 = vmatprep.subr.bf16.mxu0 0
    %404 = vmatpush1.bf16.msra.mxu0 %v324
    %405 = vmatprep.subr.bf16.mxu0 0
    %406 = vmatpush1.bf16.msra.mxu0 %v353
    %407 = vmatprep.subr.bf16.mxu0 0
    %408 = vmatpush1.bf16.msra.mxu0 0
    %409 = vmatprep.subr.bf16.mxu0 0
    %410 = vmatpush1.bf16.msra.mxu0 0
    %411 = vmatprep.subr.bf16.mxu0 0
    %412 = vmatpush1.bf16.msra.mxu0 0
    %413 = vmatprep.subr.bf16.mxu0 0
    %414 = vmatpush1.bf16.msra.mxu0 0
    %415 = vmatprep.subr.bf16.mxu0 0
    %416 = vmatpush1.bf16.msra.mxu0 0
    %417 = vmatprep.subr.bf16.mxu0 0
    %418 = vmatpush1.bf16.msra.mxu0 0
    %419 = vmatprep.subr.bf16.mxu0 0
    %420 = vmatpush1.bf16.msra.mxu0 0
    %421 = vmatprep.subr.bf16.mxu0 0
    %422 = vmatpush1.bf16.msra.mxu0 0
    %423 = vmatprep.subr.bf16.mxu0 0
    %424 = vmatpush1.bf16.msra.mxu0 0
    %425 = vmatprep.subr.bf16.mxu0 0
    %426 = vmatpush1.bf16.msra.mxu0 0
    %427 = vmatprep.mubr.bf16.mxu0 0
    %428 = vmatmul.mubr.bf16.gmra.mrb[0].mxu0 %v349
    %v429 = vpop.f32.mrb[0].mxu0
    %v430 = vadd.f32 %v390, %v429
    %v431 = vpop.f32.mrb[0].mxu0
    %v432 = vpop.f32.mrb[0].mxu0
    %v433 = vpop.f32.mrb[0].mxu0
    %434 = vdwg.mxu0
    %s435 = scalar_lea.vmem %s3, 172
    %v436 = vld [vmem:[%s435] sm:$0xf]
    %v437 = vld [vmem:[%s435 + $0x4] sm:$0xf]
    %v438 = vld [vmem:[%s435 + $0x8] sm:$0xf]
    %v439 = vld [vmem:[%s435 + $0xc] sm:$0xf]
    %v440 = vld [vmem:[%s435 + $0x10] sm:$0xf]
    %v441 = vld [vmem:[%s435 + $0x14] sm:$0xf]
    %v442 = vld [vmem:[%s435 + $0x18] sm:$0xf]
    %v443 = vld [vmem:[%s435 + $0x1c] sm:$0xf]
    %v444 = vld [vmem:[%s435 + $0x20] sm:$0xf]
    %v445 = vld [vmem:[%s435 + $0x24] sm:$0xf]
    %v446 = vld [vmem:[%s435 + $0x28] sm:$0xf]
    %v447 = vld [vmem:[%s435 + $0x2c] sm:$0xf]
    %v448 = vld [vmem:[%s435 + $0x30] sm:$0xf]
    %v449 = vld [vmem:[%s435 + $0x34] sm:$0xf]
    %v450 = vld [vmem:[%s435 + $0x38] sm:$0xf]
    %v451 = vld [vmem:[%s435 + $0x3c] sm:$0xf]
    %v452 = vld [vmem:[%s435 + $0x40] sm:$0xf]
    %v453 = vld [vmem:[%s435 + $0x44] sm:$0xf]
    %v454 = vld [vmem:[%s435 + $0x48] sm:$0xf]
    %v455 = vld [vmem:[%s435 + $0x4c] sm:$0xf]
    %v456 = vld [vmem:[%s435 + $0x50] sm:$0xf]
    %v457 = vld [vmem:[%s435 + $0x54] sm:$0xf]
    %v458 = vld [vmem:[%s435 + $0x58] sm:$0xf]
    %v459 = vld [vmem:[%s435 + $0x5c] sm:$0xf]
    %v460 = vld [vmem:[%s435 + $0x60] sm:$0xf]
    %v461 = vld [vmem:[%s435 + $0x64] sm:$0xf]
    %v462 = vld [vmem:[%s435 + $0x68] sm:$0xf]
    %v463 = vld [vmem:[%s435 + $0x6c] sm:$0xf]
    %v464 = vld [vmem:[%s435 + $0x70] sm:$0xf]
    %v465 = vld [vmem:[%s435 + $0x74] sm:$0xf]
    %v466 = vld [vmem:[%s435 + $0x78] sm:$0xf]
    %v467 = vld [vmem:[%s435 + $0x7c] sm:$0xf]
    %v468 = vld [vmem:[%s435 + $0x80] sm:$0xf]
    %v469 = vld [vmem:[%s435 + $0x84] sm:$0xf]
    %v470 = vld [vmem:[%s435 + $0x88] sm:$0xf]
    %v471 = vld [vmem:[%s435 + $0x8c] sm:$0xf]
    %v472 = vld [vmem:[%s435 + $0x90] sm:$0xf]
    %v473 = vld [vmem:[%s435 + $0x94] sm:$0xf]
    %v474 = vld [vmem:[%s435 + $0x98] sm:$0xf]
    %v475 = vld [vmem:[%s435 + $0x9c] sm:$0xf]
    %v476 = vld [vmem:[%s435 + $0xa0] sm:$0xf]
    %v477 = vld [vmem:[%s435 + $0xa4] sm:$0xf]
    %v478 = vld [vmem:[%s435 + $0xa8] sm:$0x1]
    %v522 = vunpack.c.l.b16 %v436
    %v523 = vunpack.c.l.b16 %v437
    %v524 = vunpack.c.l.b16 %v438
    %v525 = vunpack.c.l.b16 %v439
    %v526 = vunpack.c.l.b16 %v440
    %v527 = vunpack.c.l.b16 %v441
    %v528 = vunpack.c.l.b16 %v442
    %v529 = vunpack.c.l.b16 %v443
    %v530 = vunpack.c.l.b16 %v444
    %v531 = vunpack.c.l.b16 %v445
    %v532 = vunpack.c.l.b16 %v446
    %v533 = vunpack.c.l.b16 %v447
    %v534 = vunpack.c.l.b16 %v448
    %v535 = vunpack.c.l.b16 %v449
    %v536 = vunpack.c.l.b16 %v450
    %v537 = vunpack.c.l.b16 %v451
    %v538 = vunpack.c.l.b16 %v452
    %v539 = vunpack.c.l.b16 %v453
    %v540 = vunpack.c.l.b16 %v454
    %v541 = vunpack.c.l.b16 %v455
    %v542 = vunpack.c.l.b16 %v456
    %v543 = vunpack.c.l.b16 %v457
    %v544 = vunpack.c.l.b16 %v458
    %v545 = vunpack.c.l.b16 %v459
    %v546 = vunpack.c.l.b16 %v460
    %v547 = vunpack.c.l.b16 %v461
    %v548 = vunpack.c.l.b16 %v462
    %v549 = vunpack.c.l.b16 %v463
    %v550 = vunpack.c.l.b16 %v464
    %v551 = vunpack.c.l.b16 %v465
    %v552 = vunpack.c.l.b16 %v466
    %v553 = vunpack.c.l.b16 %v467
    %v554 = vunpack.c.l.b16 %v468
    %v555 = vunpack.c.l.b16 %v469
    %v556 = vunpack.c.l.b16 %v470
    %v557 = vunpack.c.l.b16 %v471
    %v558 = vunpack.c.l.b16 %v472
    %v559 = vunpack.c.l.b16 %v473
    %v560 = vunpack.c.l.b16 %v474
    %v561 = vunpack.c.l.b16 %v475
    %v562 = vunpack.c.l.b16 %v476
    %v563 = vunpack.c.l.b16 %v477
    %v564 = vunpack.c.l.b16 %v478
    %v565 = vpack.c.b16 %v523, %v522
    %v566 = vpack.c.b16 %v525, %v524
    %v567 = vpack.c.b16 %v527, %v526
    %v568 = vpack.c.b16 %v529, %v528
    %v569 = vpack.c.b16 %v531, %v530
    %v570 = vpack.c.b16 %v533, %v532
    %v571 = vpack.c.b16 %v535, %v534
    %v572 = vpack.c.b16 %v537, %v536
    %v573 = vpack.c.b16 %v539, %v538
    %v574 = vpack.c.b16 %v541, %v540
    %v575 = vpack.c.b16 %v543, %v542
    %v576 = vpack.c.b16 %v545, %v544
    %v577 = vpack.c.b16 %v547, %v546
    %v578 = vpack.c.b16 %v549, %v548
    %v579 = vpack.c.b16 %v551, %v550
    %v580 = vpack.c.b16 %v553, %v552
    %v581 = vpack.c.b16 %v555, %v554
    %v582 = vpack.c.b16 %v557, %v556
    %v583 = vpack.c.b16 %v559, %v558
    %v584 = vpack.c.b16 %v561, %v560
    %v585 = vpack.c.b16 %v563, %v562
    %v586 = vpack.c.b16 %v564, %v564
    %v609 = vsel %vm351, %v586, 0
    %611 = vmatprep.subr.bf16.mxu0 0
    %612 = vmatpush1.bf16.msra.mxu0 %v565
    %613 = vmatprep.subr.bf16.mxu0 0
    %614 = vmatpush1.bf16.msra.mxu0 %v566
    %615 = vmatprep.subr.bf16.mxu0 0
    %616 = vmatpush1.bf16.msra.mxu0 %v567
    %617 = vmatprep.subr.bf16.mxu0 0
    %618 = vmatpush1.bf16.msra.mxu0 %v568
    %619 = vmatprep.subr.bf16.mxu0 0
    %620 = vmatpush1.bf16.msra.mxu0 %v569
    %621 = vmatprep.subr.bf16.mxu0 0
    %622 = vmatpush1.bf16.msra.mxu0 %v570
    %623 = vmatprep.subr.bf16.mxu0 0
    %624 = vmatpush1.bf16.msra.mxu0 %v571
    %625 = vmatprep.subr.bf16.mxu0 0
    %626 = vmatpush1.bf16.msra.mxu0 %v572
    %627 = vmatprep.subr.bf16.mxu0 0
    %628 = vmatpush1.bf16.msra.mxu0 %v573
    %629 = vmatprep.subr.bf16.mxu0 0
    %630 = vmatpush1.bf16.msra.mxu0 %v574
    %631 = vmatprep.subr.bf16.mxu0 0
    %632 = vmatpush1.bf16.msra.mxu0 %v575
    %633 = vmatprep.subr.bf16.mxu0 0
    %634 = vmatpush1.bf16.msra.mxu0 %v576
    %635 = vmatprep.subr.bf16.mxu0 0
    %636 = vmatpush1.bf16.msra.mxu0 %v577
    %637 = vmatprep.subr.bf16.mxu0 0
    %638 = vmatpush1.bf16.msra.mxu0 %v578
    %639 = vmatprep.subr.bf16.mxu0 0
    %640 = vmatpush1.bf16.msra.mxu0 %v579
    %641 = vmatprep.subr.bf16.mxu0 0
    %642 = vmatpush1.bf16.msra.mxu0 %v580
    %643 = vmatprep.mubr.bf16.mxu0 %v173
    %644 = vmatmul.mubr.bf16.gmra.mrb[0].mxu0 %v172
    %v645 = vpop.f32.mrb[0].mxu0
    %v646 = vadd.f32 0.0, %v645
    %v647 = vpop.f32.mrb[0].mxu0
    %v648 = vpop.f32.mrb[0].mxu0
    %v649 = vpop.f32.mrb[0].mxu0
    %650 = vdwg.mxu0
    %651 = vmatprep.subr.bf16.mxu0 0
    %652 = vmatpush1.bf16.msra.mxu0 %v581
    %653 = vmatprep.subr.bf16.mxu0 0
    %654 = vmatpush1.bf16.msra.mxu0 %v582
    %655 = vmatprep.subr.bf16.mxu0 0
    %656 = vmatpush1.bf16.msra.mxu0 %v583
    %657 = vmatprep.subr.bf16.mxu0 0
    %658 = vmatpush1.bf16.msra.mxu0 %v584
    %659 = vmatprep.subr.bf16.mxu0 0
    %660 = vmatpush1.bf16.msra.mxu0 %v585
    %661 = vmatprep.subr.bf16.mxu0 0
    %662 = vmatpush1.bf16.msra.mxu0 %v609
    %663 = vmatprep.subr.bf16.mxu0 0
    %664 = vmatpush1.bf16.msra.mxu0 0
    %665 = vmatprep.subr.bf16.mxu0 0
    %666 = vmatpush1.bf16.msra.mxu0 0
    %667 = vmatprep.subr.bf16.mxu0 0
    %668 = vmatpush1.bf16.msra.mxu0 0
    %669 = vmatprep.subr.bf16.mxu0 0
    %670 = vmatpush1.bf16.msra.mxu0 0
    %671 = vmatprep.subr.bf16.mxu0 0
    %672 = vmatpush1.bf16.msra.mxu0 0
    %673 = vmatprep.subr.bf16.mxu0 0
    %674 = vmatpush1.bf16.msra.mxu0 0
    %675 = vmatprep.subr.bf16.mxu0 0
    %676 = vmatpush1.bf16.msra.mxu0 0
    %677 = vmatprep.subr.bf16.mxu0 0
    %678 = vmatpush1.bf16.msra.mxu0 0
    %679 = vmatprep.subr.bf16.mxu0 0
    %680 = vmatpush1.bf16.msra.mxu0 0
    %681 = vmatprep.subr.bf16.mxu0 0
    %682 = vmatpush1.bf16.msra.mxu0 0
    %683 = vmatprep.mubr.bf16.mxu0 0
    %684 = vmatmul.mubr.bf16.gmra.mrb[0].mxu0 %v349
    %v685 = vpop.f32.mrb[0].mxu0
    %v686 = vadd.f32 %v646, %v685
    %v687 = vpop.f32.mrb[0].mxu0
    %v688 = vpop.f32.mrb[0].mxu0
    %v689 = vpop.f32.mrb[0].mxu0
    %690 = vdwg.mxu0
    %s691 = scalar_lea.vmem %s3, 344
    %v692 = vld [vmem:[%s691] sm:$0xf]
    %v693 = vld [vmem:[%s691 + $0x4] sm:$0xf]
    %v694 = vld [vmem:[%s691 + $0x8] sm:$0xf]
    %v695 = vld [vmem:[%s691 + $0xc] sm:$0xf]
    %v696 = vld [vmem:[%s691 + $0x10] sm:$0xf]
    %v697 = vld [vmem:[%s691 + $0x14] sm:$0xf]
    %v698 = vld [vmem:[%s691 + $0x18] sm:$0xf]
    %v699 = vld [vmem:[%s691 + $0x1c] sm:$0xf]
    %v700 = vld [vmem:[%s691 + $0x20] sm:$0xf]
    %v701 = vld [vmem:[%s691 + $0x24] sm:$0xf]
    %v702 = vld [vmem:[%s691 + $0x28] sm:$0xf]
    %v703 = vld [vmem:[%s691 + $0x2c] sm:$0xf]
    %v704 = vld [vmem:[%s691 + $0x30] sm:$0xf]
    %v705 = vld [vmem:[%s691 + $0x34] sm:$0xf]
    %v706 = vld [vmem:[%s691 + $0x38] sm:$0xf]
    %v707 = vld [vmem:[%s691 + $0x3c] sm:$0xf]
    %v708 = vld [vmem:[%s691 + $0x40] sm:$0xf]
    %v709 = vld [vmem:[%s691 + $0x44] sm:$0xf]
    %v710 = vld [vmem:[%s691 + $0x48] sm:$0xf]
    %v711 = vld [vmem:[%s691 + $0x4c] sm:$0xf]
    %v712 = vld [vmem:[%s691 + $0x50] sm:$0xf]
    %v713 = vld [vmem:[%s691 + $0x54] sm:$0xf]
    %v714 = vld [vmem:[%s691 + $0x58] sm:$0xf]
    %v715 = vld [vmem:[%s691 + $0x5c] sm:$0xf]
    %v716 = vld [vmem:[%s691 + $0x60] sm:$0xf]
    %v717 = vld [vmem:[%s691 + $0x64] sm:$0xf]
    %v718 = vld [vmem:[%s691 + $0x68] sm:$0xf]
    %v719 = vld [vmem:[%s691 + $0x6c] sm:$0xf]
    %v720 = vld [vmem:[%s691 + $0x70] sm:$0xf]
    %v721 = vld [vmem:[%s691 + $0x74] sm:$0xf]
    %v722 = vld [vmem:[%s691 + $0x78] sm:$0xf]
    %v723 = vld [vmem:[%s691 + $0x7c] sm:$0xf]
    %v724 = vld [vmem:[%s691 + $0x80] sm:$0xf]
    %v725 = vld [vmem:[%s691 + $0x84] sm:$0xf]
    %v726 = vld [vmem:[%s691 + $0x88] sm:$0xf]
    %v727 = vld [vmem:[%s691 + $0x8c] sm:$0xf]
    %v728 = vld [vmem:[%s691 + $0x90] sm:$0xf]
    %v729 = vld [vmem:[%s691 + $0x94] sm:$0xf]
    %v730 = vld [vmem:[%s691 + $0x98] sm:$0xf]
    %v731 = vld [vmem:[%s691 + $0x9c] sm:$0xf]
    %v732 = vld [vmem:[%s691 + $0xa0] sm:$0xf]
    %v733 = vld [vmem:[%s691 + $0xa4] sm:$0xf]
    %v734 = vld [vmem:[%s691 + $0xa8] sm:$0x1]
    %v778 = vunpack.c.l.b16 %v692
    %v779 = vunpack.c.l.b16 %v693
    %v780 = vunpack.c.l.b16 %v694
    %v781 = vunpack.c.l.b16 %v695
    %v782 = vunpack.c.l.b16 %v696
    %v783 = vunpack.c.l.b16 %v697
    %v784 = vunpack.c.l.b16 %v698
    %v785 = vunpack.c.l.b16 %v699
    %v786 = vunpack.c.l.b16 %v700
    %v787 = vunpack.c.l.b16 %v701
    %v788 = vunpack.c.l.b16 %v702
    %v789 = vunpack.c.l.b16 %v703
    %v790 = vunpack.c.l.b16 %v704
    %v791 = vunpack.c.l.b16 %v705
    %v792 = vunpack.c.l.b16 %v706
    %v793 = vunpack.c.l.b16 %v707
    %v794 = vunpack.c.l.b16 %v708
    %v795 = vunpack.c.l.b16 %v709
    %v796 = vunpack.c.l.b16 %v710
    %v797 = vunpack.c.l.b16 %v711
    %v798 = vunpack.c.l.b16 %v712
    %v799 = vunpack.c.l.b16 %v713
    %v800 = vunpack.c.l.b16 %v714
    %v801 = vunpack.c.l.b16 %v715
    %v802 = vunpack.c.l.b16 %v716
    %v803 = vunpack.c.l.b16 %v717
    %v804 = vunpack.c.l.b16 %v718
    %v805 = vunpack.c.l.b16 %v719
    %v806 = vunpack.c.l.b16 %v720
    %v807 = vunpack.c.l.b16 %v721
    %v808 = vunpack.c.l.b16 %v722
    %v809 = vunpack.c.l.b16 %v723
    %v810 = vunpack.c.l.b16 %v724
    %v811 = vunpack.c.l.b16 %v725
    %v812 = vunpack.c.l.b16 %v726
    %v813 = vunpack.c.l.b16 %v727
    %v814 = vunpack.c.l.b16 %v728
    %v815 = vunpack.c.l.b16 %v729
    %v816 = vunpack.c.l.b16 %v730
    %v817 = vunpack.c.l.b16 %v731
    %v818 = vunpack.c.l.b16 %v732
    %v819 = vunpack.c.l.b16 %v733
    %v820 = vunpack.c.l.b16 %v734
    %v821 = vpack.c.b16 %v779, %v778
    %v822 = vpack.c.b16 %v781, %v780
    %v823 = vpack.c.b16 %v783, %v782
    %v824 = vpack.c.b16 %v785, %v784
    %v825 = vpack.c.b16 %v787, %v786
    %v826 = vpack.c.b16 %v789, %v788
    %v827 = vpack.c.b16 %v791, %v790
    %v828 = vpack.c.b16 %v793, %v792
    %v829 = vpack.c.b16 %v795, %v794
    %v830 = vpack.c.b16 %v797, %v796
    %v831 = vpack.c.b16 %v799, %v798
    %v832 = vpack.c.b16 %v801, %v800
    %v833 = vpack.c.b16 %v803, %v802
    %v834 = vpack.c.b16 %v805, %v804
    %v835 = vpack.c.b16 %v807, %v806
    %v836 = vpack.c.b16 %v809, %v808
    %v837 = vpack.c.b16 %v811, %v810
    %v838 = vpack.c.b16 %v813, %v812
    %v839 = vpack.c.b16 %v815, %v814
    %v840 = vpack.c.b16 %v817, %v816
    %v841 = vpack.c.b16 %v819, %v818
    %v842 = vpack.c.b16 %v820, %v820
    %v865 = vsel %vm351, %v842, 0
    %867 = vmatprep.subr.bf16.mxu0 0
    %868 = vmatpush1.bf16.msra.mxu0 %v821
    %869 = vmatprep.subr.bf16.mxu0 0
    %870 = vmatpush1.bf16.msra.mxu0 %v822
    %871 = vmatprep.subr.bf16.mxu0 0
    %872 = vmatpush1.bf16.msra.mxu0 %v823
    %873 = vmatprep.subr.bf16.mxu0 0
    %874 = vmatpush1.bf16.msra.mxu0 %v824
    %875 = vmatprep.subr.bf16.mxu0 0
    %876 = vmatpush1.bf16.msra.mxu0 %v825
    %877 = vmatprep.subr.bf16.mxu0 0
    %878 = vmatpush1.bf16.msra.mxu0 %v826
    %879 = vmatprep.subr.bf16.mxu0 0
    %880 = vmatpush1.bf16.msra.mxu0 %v827
    %881 = vmatprep.subr.bf16.mxu0 0
    %882 = vmatpush1.bf16.msra.mxu0 %v828
    %883 = vmatprep.subr.bf16.mxu0 0
    %884 = vmatpush1.bf16.msra.mxu0 %v829
    %885 = vmatprep.subr.bf16.mxu0 0
    %886 = vmatpush1.bf16.msra.mxu0 %v830
    %887 = vmatprep.subr.bf16.mxu0 0
    %888 = vmatpush1.bf16.msra.mxu0 %v831
    %889 = vmatprep.subr.bf16.mxu0 0
    %890 = vmatpush1.bf16.msra.mxu0 %v832
    %891 = vmatprep.subr.bf16.mxu0 0
    %892 = vmatpush1.bf16.msra.mxu0 %v833
    %893 = vmatprep.subr.bf16.mxu0 0
    %894 = vmatpush1.bf16.msra.mxu0 %v834
    %895 = vmatprep.subr.bf16.mxu0 0
    %896 = vmatpush1.bf16.msra.mxu0 %v835
    %897 = vmatprep.subr.bf16.mxu0 0
    %898 = vmatpush1.bf16.msra.mxu0 %v836
    %899 = vmatprep.mubr.bf16.mxu0 %v173
    %900 = vmatmul.mubr.bf16.gmra.mrb[0].mxu0 %v172
    %v901 = vpop.f32.mrb[0].mxu0
    %v902 = vadd.f32 0.0, %v901
    %v903 = vpop.f32.mrb[0].mxu0
    %v904 = vpop.f32.mrb[0].mxu0
    %v905 = vpop.f32.mrb[0].mxu0
    %906 = vdwg.mxu0
    %907 = vmatprep.subr.bf16.mxu0 0
    %908 = vmatpush1.bf16.msra.mxu0 %v837
    %909 = vmatprep.subr.bf16.mxu0 0
    %910 = vmatpush1.bf16.msra.mxu0 %v838
    %911 = vmatprep.subr.bf16.mxu0 0
    %912 = vmatpush1.bf16.msra.mxu0 %v839
    %913 = vmatprep.subr.bf16.mxu0 0
    %914 = vmatpush1.bf16.msra.mxu0 %v840
    %915 = vmatprep.subr.bf16.mxu0 0
    %916 = vmatpush1.bf16.msra.mxu0 %v841
    %917 = vmatprep.subr.bf16.mxu0 0
    %918 = vmatpush1.bf16.msra.mxu0 %v865
    %919 = vmatprep.subr.bf16.mxu0 0
    %920 = vmatpush1.bf16.msra.mxu0 0
    %921 = vmatprep.subr.bf16.mxu0 0
    %922 = vmatpush1.bf16.msra.mxu0 0
    %923 = vmatprep.subr.bf16.mxu0 0
    %924 = vmatpush1.bf16.msra.mxu0 0
    %925 = vmatprep.subr.bf16.mxu0 0
    %926 = vmatpush1.bf16.msra.mxu0 0
    %927 = vmatprep.subr.bf16.mxu0 0
    %928 = vmatpush1.bf16.msra.mxu0 0
    %929 = vmatprep.subr.bf16.mxu0 0
    %930 = vmatpush1.bf16.msra.mxu0 0
    %931 = vmatprep.subr.bf16.mxu0 0
    %932 = vmatpush1.bf16.msra.mxu0 0
    %933 = vmatprep.subr.bf16.mxu0 0
    %934 = vmatpush1.bf16.msra.mxu0 0
    %935 = vmatprep.subr.bf16.mxu0 0
    %936 = vmatpush1.bf16.msra.mxu0 0
    %937 = vmatprep.subr.bf16.mxu0 0
    %938 = vmatpush1.bf16.msra.mxu0 0
    %939 = vmatprep.mubr.bf16.mxu0 0
    %940 = vmatmul.mubr.bf16.gmra.mrb[0].mxu0 %v349
    %v941 = vpop.f32.mrb[0].mxu0
    %v942 = vadd.f32 %v902, %v941
    %v943 = vpop.f32.mrb[0].mxu0
    %v944 = vpop.f32.mrb[0].mxu0
    %v945 = vpop.f32.mrb[0].mxu0
    %946 = vdwg.mxu0
    %s947 = scalar_lea.vmem %s3, 516
    %v948 = vld [vmem:[%s947] sm:$0xf]
    %v949 = vld [vmem:[%s947 + $0x4] sm:$0xf]
    %v950 = vld [vmem:[%s947 + $0x8] sm:$0xf]
    %v951 = vld [vmem:[%s947 + $0xc] sm:$0xf]
    %v952 = vld [vmem:[%s947 + $0x10] sm:$0xf]
    %v953 = vld [vmem:[%s947 + $0x14] sm:$0xf]
    %v954 = vld [vmem:[%s947 + $0x18] sm:$0xf]
    %v955 = vld [vmem:[%s947 + $0x1c] sm:$0xf]
    %v956 = vld [vmem:[%s947 + $0x20] sm:$0xf]
    %v957 = vld [vmem:[%s947 + $0x24] sm:$0xf]
    %v958 = vld [vmem:[%s947 + $0x28] sm:$0xf]
    %v959 = vld [vmem:[%s947 + $0x2c] sm:$0xf]
    %v960 = vld [vmem:[%s947 + $0x30] sm:$0xf]
    %v961 = vld [vmem:[%s947 + $0x34] sm:$0xf]
    %v962 = vld [vmem:[%s947 + $0x38] sm:$0xf]
    %v963 = vld [vmem:[%s947 + $0x3c] sm:$0xf]
    %v964 = vld [vmem:[%s947 + $0x40] sm:$0xf]
    %v965 = vld [vmem:[%s947 + $0x44] sm:$0xf]
    %v966 = vld [vmem:[%s947 + $0x48] sm:$0xf]
    %v967 = vld [vmem:[%s947 + $0x4c] sm:$0xf]
    %v968 = vld [vmem:[%s947 + $0x50] sm:$0xf]
    %v969 = vld [vmem:[%s947 + $0x54] sm:$0xf]
    %v970 = vld [vmem:[%s947 + $0x58] sm:$0xf]
    %v971 = vld [vmem:[%s947 + $0x5c] sm:$0xf]
    %v972 = vld [vmem:[%s947 + $0x60] sm:$0xf]
    %v973 = vld [vmem:[%s947 + $0x64] sm:$0xf]
    %v974 = vld [vmem:[%s947 + $0x68] sm:$0xf]
    %v975 = vld [vmem:[%s947 + $0x6c] sm:$0xf]
    %v976 = vld [vmem:[%s947 + $0x70] sm:$0xf]
    %v977 = vld [vmem:[%s947 + $0x74] sm:$0xf]
    %v978 = vld [vmem:[%s947 + $0x78] sm:$0xf]
    %v979 = vld [vmem:[%s947 + $0x7c] sm:$0xf]
    %v980 = vld [vmem:[%s947 + $0x80] sm:$0xf]
    %v981 = vld [vmem:[%s947 + $0x84] sm:$0xf]
    %v982 = vld [vmem:[%s947 + $0x88] sm:$0xf]
    %v983 = vld [vmem:[%s947 + $0x8c] sm:$0xf]
    %v984 = vld [vmem:[%s947 + $0x90] sm:$0xf]
    %v985 = vld [vmem:[%s947 + $0x94] sm:$0xf]
    %v986 = vld [vmem:[%s947 + $0x98] sm:$0xf]
    %v987 = vld [vmem:[%s947 + $0x9c] sm:$0xf]
    %v988 = vld [vmem:[%s947 + $0xa0] sm:$0xf]
    %v989 = vld [vmem:[%s947 + $0xa4] sm:$0xf]
    %v990 = vld [vmem:[%s947 + $0xa8] sm:$0x1]
    %v1034 = vunpack.c.l.b16 %v948
    %v1035 = vunpack.c.l.b16 %v949
    %v1036 = vunpack.c.l.b16 %v950
    %v1037 = vunpack.c.l.b16 %v951
    %v1038 = vunpack.c.l.b16 %v952
    %v1039 = vunpack.c.l.b16 %v953
    %v1040 = vunpack.c.l.b16 %v954
    %v1041 = vunpack.c.l.b16 %v955
    %v1042 = vunpack.c.l.b16 %v956
    %v1043 = vunpack.c.l.b16 %v957
    %v1044 = vunpack.c.l.b16 %v958
    %v1045 = vunpack.c.l.b16 %v959
    %v1046 = vunpack.c.l.b16 %v960
    %v1047 = vunpack.c.l.b16 %v961
    %v1048 = vunpack.c.l.b16 %v962
    %v1049 = vunpack.c.l.b16 %v963
    %v1050 = vunpack.c.l.b16 %v964
    %v1051 = vunpack.c.l.b16 %v965
    %v1052 = vunpack.c.l.b16 %v966
    %v1053 = vunpack.c.l.b16 %v967
    %v1054 = vunpack.c.l.b16 %v968
    %v1055 = vunpack.c.l.b16 %v969
    %v1056 = vunpack.c.l.b16 %v970
    %v1057 = vunpack.c.l.b16 %v971
    %v1058 = vunpack.c.l.b16 %v972
    %v1059 = vunpack.c.l.b16 %v973
    %v1060 = vunpack.c.l.b16 %v974
    %v1061 = vunpack.c.l.b16 %v975
    %v1062 = vunpack.c.l.b16 %v976
    %v1063 = vunpack.c.l.b16 %v977
    %v1064 = vunpack.c.l.b16 %v978
    %v1065 = vunpack.c.l.b16 %v979
    %v1066 = vunpack.c.l.b16 %v980
    %v1067 = vunpack.c.l.b16 %v981
    %v1068 = vunpack.c.l.b16 %v982
    %v1069 = vunpack.c.l.b16 %v983
    %v1070 = vunpack.c.l.b16 %v984
    %v1071 = vunpack.c.l.b16 %v985
    %v1072 = vunpack.c.l.b16 %v986
    %v1073 = vunpack.c.l.b16 %v987
    %v1074 = vunpack.c.l.b16 %v988
    %v1075 = vunpack.c.l.b16 %v989
    %v1076 = vunpack.c.l.b16 %v990
    %v1077 = vpack.c.b16 %v1035, %v1034
    %v1078 = vpack.c.b16 %v1037, %v1036
    %v1079 = vpack.c.b16 %v1039, %v1038
    %v1080 = vpack.c.b16 %v1041, %v1040
    %v1081 = vpack.c.b16 %v1043, %v1042
    %v1082 = vpack.c.b16 %v1045, %v1044
    %v1083 = vpack.c.b16 %v1047, %v1046
    %v1084 = vpack.c.b16 %v1049, %v1048
    %v1085 = vpack.c.b16 %v1051, %v1050
    %v1086 = vpack.c.b16 %v1053, %v1052
    %v1087 = vpack.c.b16 %v1055, %v1054
    %v1088 = vpack.c.b16 %v1057, %v1056
    %v1089 = vpack.c.b16 %v1059, %v1058
    %v1090 = vpack.c.b16 %v1061, %v1060
    %v1091 = vpack.c.b16 %v1063, %v1062
    %v1092 = vpack.c.b16 %v1065, %v1064
    %v1093 = vpack.c.b16 %v1067, %v1066
    %v1094 = vpack.c.b16 %v1069, %v1068
    %v1095 = vpack.c.b16 %v1071, %v1070
    %v1096 = vpack.c.b16 %v1073, %v1072
    %v1097 = vpack.c.b16 %v1075, %v1074
    %v1098 = vpack.c.b16 %v1076, %v1076
    %v1121 = vsel %vm351, %v1098, 0
    %1123 = vmatprep.subr.bf16.mxu0 0
    %1124 = vmatpush1.bf16.msra.mxu0 %v1077
    %1125 = vmatprep.subr.bf16.mxu0 0
    %1126 = vmatpush1.bf16.msra.mxu0 %v1078
    %1127 = vmatprep.subr.bf16.mxu0 0
    %1128 = vmatpush1.bf16.msra.mxu0 %v1079
    %1129 = vmatprep.subr.bf16.mxu0 0
    %1130 = vmatpush1.bf16.msra.mxu0 %v1080
    %1131 = vmatprep.subr.bf16.mxu0 0
    %1132 = vmatpush1.bf16.msra.mxu0 %v1081
    %1133 = vmatprep.subr.bf16.mxu0 0
    %1134 = vmatpush1.bf16.msra.mxu0 %v1082
    %1135 = vmatprep.subr.bf16.mxu0 0
    %1136 = vmatpush1.bf16.msra.mxu0 %v1083
    %1137 = vmatprep.subr.bf16.mxu0 0
    %1138 = vmatpush1.bf16.msra.mxu0 %v1084
    %1139 = vmatprep.subr.bf16.mxu0 0
    %1140 = vmatpush1.bf16.msra.mxu0 %v1085
    %1141 = vmatprep.subr.bf16.mxu0 0
    %1142 = vmatpush1.bf16.msra.mxu0 %v1086
    %1143 = vmatprep.subr.bf16.mxu0 0
    %1144 = vmatpush1.bf16.msra.mxu0 %v1087
    %1145 = vmatprep.subr.bf16.mxu0 0
    %1146 = vmatpush1.bf16.msra.mxu0 %v1088
    %1147 = vmatprep.subr.bf16.mxu0 0
    %1148 = vmatpush1.bf16.msra.mxu0 %v1089
    %1149 = vmatprep.subr.bf16.mxu0 0
    %1150 = vmatpush1.bf16.msra.mxu0 %v1090
    %1151 = vmatprep.subr.bf16.mxu0 0
    %1152 = vmatpush1.bf16.msra.mxu0 %v1091
    %1153 = vmatprep.subr.bf16.mxu0 0
    %1154 = vmatpush1.bf16.msra.mxu0 %v1092
    %1155 = vmatprep.mubr.bf16.mxu0 %v173
    %1156 = vmatmul.mubr.bf16.gmra.mrb[0].mxu0 %v172
    %v1157 = vpop.f32.mrb[0].mxu0
    %v1158 = vadd.f32 0.0, %v1157
    %v1159 = vpop.f32.mrb[0].mxu0
    %v1160 = vpop.f32.mrb[0].mxu0
    %v1161 = vpop.f32.mrb[0].mxu0
    %1162 = vdwg.mxu0
    %1163 = vmatprep.subr.bf16.mxu0 0
    %1164 = vmatpush1.bf16.msra.mxu0 %v1093
    %1165 = vmatprep.subr.bf16.mxu0 0
    %1166 = vmatpush1.bf16.msra.mxu0 %v1094
    %1167 = vmatprep.subr.bf16.mxu0 0
    %1168 = vmatpush1.bf16.msra.mxu0 %v1095
    %1169 = vmatprep.subr.bf16.mxu0 0
    %1170 = vmatpush1.bf16.msra.mxu0 %v1096
    %1171 = vmatprep.subr.bf16.mxu0 0
    %1172 = vmatpush1.bf16.msra.mxu0 %v1097
    %1173 = vmatprep.subr.bf16.mxu0 0
    %1174 = vmatpush1.bf16.msra.mxu0 %v1121
    %1175 = vmatprep.subr.bf16.mxu0 0
    %1176 = vmatpush1.bf16.msra.mxu0 0
    %1177 = vmatprep.subr.bf16.mxu0 0
    %1178 = vmatpush1.bf16.msra.mxu0 0
    %1179 = vmatprep.subr.bf16.mxu0 0
    %1180 = vmatpush1.bf16.msra.mxu0 0
    %1181 = vmatprep.subr.bf16.mxu0 0
    %1182 = vmatpush1.bf16.msra.mxu0 0
    %1183 = vmatprep.subr.bf16.mxu0 0
    %1184 = vmatpush1.bf16.msra.mxu0 0
    %1185 = vmatprep.subr.bf16.mxu0 0
    %1186 = vmatpush1.bf16.msra.mxu0 0
    %1187 = vmatprep.subr.bf16.mxu0 0
    %1188 = vmatpush1.bf16.msra.mxu0 0
    %1189 = vmatprep.subr.bf16.mxu0 0
    %1190 = vmatpush1.bf16.msra.mxu0 0
    %1191 = vmatprep.subr.bf16.mxu0 0
    %1192 = vmatpush1.bf16.msra.mxu0 0
    %1193 = vmatprep.subr.bf16.mxu0 0
    %1194 = vmatpush1.bf16.msra.mxu0 0
    %1195 = vmatprep.mubr.bf16.mxu0 0
    %1196 = vmatmul.mubr.bf16.gmra.mrb[0].mxu0 %v349
    %v1197 = vpop.f32.mrb[0].mxu0
    %v1198 = vadd.f32 %v1158, %v1197
    %v1199 = vpop.f32.mrb[0].mxu0
    %v1200 = vpop.f32.mrb[0].mxu0
    %v1201 = vpop.f32.mrb[0].mxu0
    %1202 = vdwg.mxu0
    %s1203 = scalar_lea.vmem %s3, 688
    %v1204 = vld [vmem:[%s1203] sm:$0xf]
    %v1205 = vld [vmem:[%s1203 + $0x4] sm:$0xf]
    %v1206 = vld [vmem:[%s1203 + $0x8] sm:$0xf]
    %v1207 = vld [vmem:[%s1203 + $0xc] sm:$0xf]
    %v1208 = vld [vmem:[%s1203 + $0x10] sm:$0xf]
    %v1209 = vld [vmem:[%s1203 + $0x14] sm:$0xf]
    %v1210 = vld [vmem:[%s1203 + $0x18] sm:$0xf]
    %v1211 = vld [vmem:[%s1203 + $0x1c] sm:$0xf]
    %v1212 = vld [vmem:[%s1203 + $0x20] sm:$0xf]
    %v1213 = vld [vmem:[%s1203 + $0x24] sm:$0xf]
    %v1214 = vld [vmem:[%s1203 + $0x28] sm:$0xf]
    %v1215 = vld [vmem:[%s1203 + $0x2c] sm:$0xf]
    %v1216 = vld [vmem:[%s1203 + $0x30] sm:$0xf]
    %v1217 = vld [vmem:[%s1203 + $0x34] sm:$0xf]
    %v1218 = vld [vmem:[%s1203 + $0x38] sm:$0xf]
    %v1219 = vld [vmem:[%s1203 + $0x3c] sm:$0xf]
    %v1220 = vld [vmem:[%s1203 + $0x40] sm:$0xf]
    %v1221 = vld [vmem:[%s1203 + $0x44] sm:$0xf]
    %v1222 = vld [vmem:[%s1203 + $0x48] sm:$0xf]
    %v1223 = vld [vmem:[%s1203 + $0x4c] sm:$0xf]
    %v1224 = vld [vmem:[%s1203 + $0x50] sm:$0xf]
    %v1225 = vld [vmem:[%s1203 + $0x54] sm:$0xf]
    %v1226 = vld [vmem:[%s1203 + $0x58] sm:$0xf]
    %v1227 = vld [vmem:[%s1203 + $0x5c] sm:$0xf]
    %v1228 = vld [vmem:[%s1203 + $0x60] sm:$0xf]
    %v1229 = vld [vmem:[%s1203 + $0x64] sm:$0xf]
    %v1230 = vld [vmem:[%s1203 + $0x68] sm:$0xf]
    %v1231 = vld [vmem:[%s1203 + $0x6c] sm:$0xf]
    %v1232 = vld [vmem:[%s1203 + $0x70] sm:$0xf]
    %v1233 = vld [vmem:[%s1203 + $0x74] sm:$0xf]
    %v1234 = vld [vmem:[%s1203 + $0x78] sm:$0xf]
    %v1235 = vld [vmem:[%s1203 + $0x7c] sm:$0xf]
    %v1236 = vld [vmem:[%s1203 + $0x80] sm:$0xf]
    %v1237 = vld [vmem:[%s1203 + $0x84] sm:$0xf]
    %v1238 = vld [vmem:[%s1203 + $0x88] sm:$0xf]
    %v1239 = vld [vmem:[%s1203 + $0x8c] sm:$0xf]
    %v1240 = vld [vmem:[%s1203 + $0x90] sm:$0xf]
    %v1241 = vld [vmem:[%s1203 + $0x94] sm:$0xf]
    %v1242 = vld [vmem:[%s1203 + $0x98] sm:$0xf]
    %v1243 = vld [vmem:[%s1203 + $0x9c] sm:$0xf]
    %v1244 = vld [vmem:[%s1203 + $0xa0] sm:$0xf]
    %v1245 = vld [vmem:[%s1203 + $0xa4] sm:$0xf]
    %v1246 = vld [vmem:[%s1203 + $0xa8] sm:$0x1]
    %v1290 = vunpack.c.l.b16 %v1204
    %v1291 = vunpack.c.l.b16 %v1205
    %v1292 = vunpack.c.l.b16 %v1206
    %v1293 = vunpack.c.l.b16 %v1207
    %v1294 = vunpack.c.l.b16 %v1208
    %v1295 = vunpack.c.l.b16 %v1209
    %v1296 = vunpack.c.l.b16 %v1210
    %v1297 = vunpack.c.l.b16 %v1211
    %v1298 = vunpack.c.l.b16 %v1212
    %v1299 = vunpack.c.l.b16 %v1213
    %v1300 = vunpack.c.l.b16 %v1214
    %v1301 = vunpack.c.l.b16 %v1215
    %v1302 = vunpack.c.l.b16 %v1216
    %v1303 = vunpack.c.l.b16 %v1217
    %v1304 = vunpack.c.l.b16 %v1218
    %v1305 = vunpack.c.l.b16 %v1219
    %v1306 = vunpack.c.l.b16 %v1220
    %v1307 = vunpack.c.l.b16 %v1221
    %v1308 = vunpack.c.l.b16 %v1222
    %v1309 = vunpack.c.l.b16 %v1223
    %v1310 = vunpack.c.l.b16 %v1224
    %v1311 = vunpack.c.l.b16 %v1225
    %v1312 = vunpack.c.l.b16 %v1226
    %v1313 = vunpack.c.l.b16 %v1227
    %v1314 = vunpack.c.l.b16 %v1228
    %v1315 = vunpack.c.l.b16 %v1229
    %v1316 = vunpack.c.l.b16 %v1230
    %v1317 = vunpack.c.l.b16 %v1231
    %v1318 = vunpack.c.l.b16 %v1232
    %v1319 = vunpack.c.l.b16 %v1233
    %v1320 = vunpack.c.l.b16 %v1234
    %v1321 = vunpack.c.l.b16 %v1235
    %v1322 = vunpack.c.l.b16 %v1236
    %v1323 = vunpack.c.l.b16 %v1237
    %v1324 = vunpack.c.l.b16 %v1238
    %v1325 = vunpack.c.l.b16 %v1239
    %v1326 = vunpack.c.l.b16 %v1240
    %v1327 = vunpack.c.l.b16 %v1241
    %v1328 = vunpack.c.l.b16 %v1242
    %v1329 = vunpack.c.l.b16 %v1243
    %v1330 = vunpack.c.l.b16 %v1244
    %v1331 = vunpack.c.l.b16 %v1245
    %v1332 = vunpack.c.l.b16 %v1246
    %v1333 = vpack.c.b16 %v1291, %v1290
    %v1334 = vpack.c.b16 %v1293, %v1292
    %v1335 = vpack.c.b16 %v1295, %v1294
    %v1336 = vpack.c.b16 %v1297, %v1296
    %v1337 = vpack.c.b16 %v1299, %v1298
    %v1338 = vpack.c.b16 %v1301, %v1300
    %v1339 = vpack.c.b16 %v1303, %v1302
    %v1340 = vpack.c.b16 %v1305, %v1304
    %v1341 = vpack.c.b16 %v1307, %v1306
    %v1342 = vpack.c.b16 %v1309, %v1308
    %v1343 = vpack.c.b16 %v1311, %v1310
    %v1344 = vpack.c.b16 %v1313, %v1312
    %v1345 = vpack.c.b16 %v1315, %v1314
    %v1346 = vpack.c.b16 %v1317, %v1316
    %v1347 = vpack.c.b16 %v1319, %v1318
    %v1348 = vpack.c.b16 %v1321, %v1320
    %v1349 = vpack.c.b16 %v1323, %v1322
    %v1350 = vpack.c.b16 %v1325, %v1324
    %v1351 = vpack.c.b16 %v1327, %v1326
    %v1352 = vpack.c.b16 %v1329, %v1328
    %v1353 = vpack.c.b16 %v1331, %v1330
    %v1354 = vpack.c.b16 %v1332, %v1332
    %v1377 = vsel %vm351, %v1354, 0
    %1379 = vmatprep.subr.bf16.mxu0 0
    %1380 = vmatpush1.bf16.msra.mxu0 %v1333
    %1381 = vmatprep.subr.bf16.mxu0 0
    %1382 = vmatpush1.bf16.msra.mxu0 %v1334
    %1383 = vmatprep.subr.bf16.mxu0 0
    %1384 = vmatpush1.bf16.msra.mxu0 %v1335
    %1385 = vmatprep.subr.bf16.mxu0 0
    %1386 = vmatpush1.bf16.msra.mxu0 %v1336
    %1387 = vmatprep.subr.bf16.mxu0 0
    %1388 = vmatpush1.bf16.msra.mxu0 %v1337
    %1389 = vmatprep.subr.bf16.mxu0 0
    %1390 = vmatpush1.bf16.msra.mxu0 %v1338
    %1391 = vmatprep.subr.bf16.mxu0 0
    %1392 = vmatpush1.bf16.msra.mxu0 %v1339
    %1393 = vmatprep.subr.bf16.mxu0 0
    %1394 = vmatpush1.bf16.msra.mxu0 %v1340
    %1395 = vmatprep.subr.bf16.mxu0 0
    %1396 = vmatpush1.bf16.msra.mxu0 %v1341
    %1397 = vmatprep.subr.bf16.mxu0 0
    %1398 = vmatpush1.bf16.msra.mxu0 %v1342
    %1399 = vmatprep.subr.bf16.mxu0 0
    %1400 = vmatpush1.bf16.msra.mxu0 %v1343
    %1401 = vmatprep.subr.bf16.mxu0 0
    %1402 = vmatpush1.bf16.msra.mxu0 %v1344
    %1403 = vmatprep.subr.bf16.mxu0 0
    %1404 = vmatpush1.bf16.msra.mxu0 %v1345
    %1405 = vmatprep.subr.bf16.mxu0 0
    %1406 = vmatpush1.bf16.msra.mxu0 %v1346
    %1407 = vmatprep.subr.bf16.mxu0 0
    %1408 = vmatpush1.bf16.msra.mxu0 %v1347
    %1409 = vmatprep.subr.bf16.mxu0 0
    %1410 = vmatpush1.bf16.msra.mxu0 %v1348
    %1411 = vmatprep.mubr.bf16.mxu0 %v173
    %1412 = vmatmul.mubr.bf16.gmra.mrb[0].mxu0 %v172
    %v1413 = vpop.f32.mrb[0].mxu0
    %v1414 = vadd.f32 0.0, %v1413
    %v1415 = vpop.f32.mrb[0].mxu0
    %v1416 = vpop.f32.mrb[0].mxu0
    %v1417 = vpop.f32.mrb[0].mxu0
    %1418 = vdwg.mxu0
    %1419 = vmatprep.subr.bf16.mxu0 0
    %1420 = vmatpush1.bf16.msra.mxu0 %v1349
    %1421 = vmatprep.subr.bf16.mxu0 0
    %1422 = vmatpush1.bf16.msra.mxu0 %v1350
    %1423 = vmatprep.subr.bf16.mxu0 0
    %1424 = vmatpush1.bf16.msra.mxu0 %v1351
    %1425 = vmatprep.subr.bf16.mxu0 0
    %1426 = vmatpush1.bf16.msra.mxu0 %v1352
    %1427 = vmatprep.subr.bf16.mxu0 0
    %1428 = vmatpush1.bf16.msra.mxu0 %v1353
    %1429 = vmatprep.subr.bf16.mxu0 0
    %1430 = vmatpush1.bf16.msra.mxu0 %v1377
    %1431 = vmatprep.subr.bf16.mxu0 0
    %1432 = vmatpush1.bf16.msra.mxu0 0
    %1433 = vmatprep.subr.bf16.mxu0 0
    %1434 = vmatpush1.bf16.msra.mxu0 0
    %1435 = vmatprep.subr.bf16.mxu0 0
    %1436 = vmatpush1.bf16.msra.mxu0 0
    %1437 = vmatprep.subr.bf16.mxu0 0
    %1438 = vmatpush1.bf16.msra.mxu0 0
    %1439 = vmatprep.subr.bf16.mxu0 0
    %1440 = vmatpush1.bf16.msra.mxu0 0
    %1441 = vmatprep.subr.bf16.mxu0 0
    %1442 = vmatpush1.bf16.msra.mxu0 0
    %1443 = vmatprep.subr.bf16.mxu0 0
    %1444 = vmatpush1.bf16.msra.mxu0 0
    %1445 = vmatprep.subr.bf16.mxu0 0
    %1446 = vmatpush1.bf16.msra.mxu0 0
    %1447 = vmatprep.subr.bf16.mxu0 0
    %1448 = vmatpush1.bf16.msra.mxu0 0
    %1449 = vmatprep.subr.bf16.mxu0 0
    %1450 = vmatpush1.bf16.msra.mxu0 0
    %1451 = vmatprep.mubr.bf16.mxu0 0
    %1452 = vmatmul.mubr.bf16.gmra.mrb[0].mxu0 %v349
    %v1453 = vpop.f32.mrb[0].mxu0
    %v1454 = vadd.f32 %v1414, %v1453
    %v1455 = vpop.f32.mrb[0].mxu0
    %v1456 = vpop.f32.mrb[0].mxu0
    %v1457 = vpop.f32.mrb[0].mxu0
    %1458 = vdwg.mxu0
    %s1459 = scalar_lea.vmem %s3, 860
    %v1460 = vld [vmem:[%s1459] sm:$0xf]
    %v1461 = vld [vmem:[%s1459 + $0x4] sm:$0xf]
    %v1462 = vld [vmem:[%s1459 + $0x8] sm:$0xf]
    %v1463 = vld [vmem:[%s1459 + $0xc] sm:$0xf]
    %v1464 = vld [vmem:[%s1459 + $0x10] sm:$0xf]
    %v1465 = vld [vmem:[%s1459 + $0x14] sm:$0xf]
    %v1466 = vld [vmem:[%s1459 + $0x18] sm:$0xf]
    %v1467 = vld [vmem:[%s1459 + $0x1c] sm:$0xf]
    %v1468 = vld [vmem:[%s1459 + $0x20] sm:$0xf]
    %v1469 = vld [vmem:[%s1459 + $0x24] sm:$0xf]
    %v1470 = vld [vmem:[%s1459 + $0x28] sm:$0xf]
    %v1471 = vld [vmem:[%s1459 + $0x2c] sm:$0xf]
    %v1472 = vld [vmem:[%s1459 + $0x30] sm:$0xf]
    %v1473 = vld [vmem:[%s1459 + $0x34] sm:$0xf]
    %v1474 = vld [vmem:[%s1459 + $0x38] sm:$0xf]
    %v1475 = vld [vmem:[%s1459 + $0x3c] sm:$0xf]
    %v1476 = vld [vmem:[%s1459 + $0x40] sm:$0xf]
    %v1477 = vld [vmem:[%s1459 + $0x44] sm:$0xf]
    %v1478 = vld [vmem:[%s1459 + $0x48] sm:$0xf]
    %v1479 = vld [vmem:[%s1459 + $0x4c] sm:$0xf]
    %v1480 = vld [vmem:[%s1459 + $0x50] sm:$0xf]
    %v1481 = vld [vmem:[%s1459 + $0x54] sm:$0xf]
    %v1482 = vld [vmem:[%s1459 + $0x58] sm:$0xf]
    %v1483 = vld [vmem:[%s1459 + $0x5c] sm:$0xf]
    %v1484 = vld [vmem:[%s1459 + $0x60] sm:$0xf]
    %v1485 = vld [vmem:[%s1459 + $0x64] sm:$0xf]
    %v1486 = vld [vmem:[%s1459 + $0x68] sm:$0xf]
    %v1487 = vld [vmem:[%s1459 + $0x6c] sm:$0xf]
    %v1488 = vld [vmem:[%s1459 + $0x70] sm:$0xf]
    %v1489 = vld [vmem:[%s1459 + $0x74] sm:$0xf]
    %v1490 = vld [vmem:[%s1459 + $0x78] sm:$0xf]
    %v1491 = vld [vmem:[%s1459 + $0x7c] sm:$0xf]
    %v1492 = vld [vmem:[%s1459 + $0x80] sm:$0xf]
    %v1493 = vld [vmem:[%s1459 + $0x84] sm:$0xf]
    %v1494 = vld [vmem:[%s1459 + $0x88] sm:$0xf]
    %v1495 = vld [vmem:[%s1459 + $0x8c] sm:$0xf]
    %v1496 = vld [vmem:[%s1459 + $0x90] sm:$0xf]
    %v1497 = vld [vmem:[%s1459 + $0x94] sm:$0xf]
    %v1498 = vld [vmem:[%s1459 + $0x98] sm:$0xf]
    %v1499 = vld [vmem:[%s1459 + $0x9c] sm:$0xf]
    %v1500 = vld [vmem:[%s1459 + $0xa0] sm:$0xf]
    %v1501 = vld [vmem:[%s1459 + $0xa4] sm:$0xf]
    %v1502 = vld [vmem:[%s1459 + $0xa8] sm:$0x1]
    %v1546 = vunpack.c.l.b16 %v1460
    %v1547 = vunpack.c.l.b16 %v1461
    %v1548 = vunpack.c.l.b16 %v1462
    %v1549 = vunpack.c.l.b16 %v1463
    %v1550 = vunpack.c.l.b16 %v1464
    %v1551 = vunpack.c.l.b16 %v1465
    %v1552 = vunpack.c.l.b16 %v1466
    %v1553 = vunpack.c.l.b16 %v1467
    %v1554 = vunpack.c.l.b16 %v1468
    %v1555 = vunpack.c.l.b16 %v1469
    %v1556 = vunpack.c.l.b16 %v1470
    %v1557 = vunpack.c.l.b16 %v1471
    %v1558 = vunpack.c.l.b16 %v1472
    %v1559 = vunpack.c.l.b16 %v1473
    %v1560 = vunpack.c.l.b16 %v1474
    %v1561 = vunpack.c.l.b16 %v1475
    %v1562 = vunpack.c.l.b16 %v1476
    %v1563 = vunpack.c.l.b16 %v1477
    %v1564 = vunpack.c.l.b16 %v1478
    %v1565 = vunpack.c.l.b16 %v1479
    %v1566 = vunpack.c.l.b16 %v1480
    %v1567 = vunpack.c.l.b16 %v1481
    %v1568 = vunpack.c.l.b16 %v1482
    %v1569 = vunpack.c.l.b16 %v1483
    %v1570 = vunpack.c.l.b16 %v1484
    %v1571 = vunpack.c.l.b16 %v1485
    %v1572 = vunpack.c.l.b16 %v1486
    %v1573 = vunpack.c.l.b16 %v1487
    %v1574 = vunpack.c.l.b16 %v1488
    %v1575 = vunpack.c.l.b16 %v1489
    %v1576 = vunpack.c.l.b16 %v1490
    %v1577 = vunpack.c.l.b16 %v1491
    %v1578 = vunpack.c.l.b16 %v1492
    %v1579 = vunpack.c.l.b16 %v1493
    %v1580 = vunpack.c.l.b16 %v1494
    %v1581 = vunpack.c.l.b16 %v1495
    %v1582 = vunpack.c.l.b16 %v1496
    %v1583 = vunpack.c.l.b16 %v1497
    %v1584 = vunpack.c.l.b16 %v1498
    %v1585 = vunpack.c.l.b16 %v1499
    %v1586 = vunpack.c.l.b16 %v1500
    %v1587 = vunpack.c.l.b16 %v1501
    %v1588 = vunpack.c.l.b16 %v1502
    %v1589 = vpack.c.b16 %v1547, %v1546
    %v1590 = vpack.c.b16 %v1549, %v1548
    %v1591 = vpack.c.b16 %v1551, %v1550
    %v1592 = vpack.c.b16 %v1553, %v1552
    %v1593 = vpack.c.b16 %v1555, %v1554
    %v1594 = vpack.c.b16 %v1557, %v1556
    %v1595 = vpack.c.b16 %v1559, %v1558
    %v1596 = vpack.c.b16 %v1561, %v1560
    %v1597 = vpack.c.b16 %v1563, %v1562
    %v1598 = vpack.c.b16 %v1565, %v1564
    %v1599 = vpack.c.b16 %v1567, %v1566
    %v1600 = vpack.c.b16 %v1569, %v1568
    %v1601 = vpack.c.b16 %v1571, %v1570
    %v1602 = vpack.c.b16 %v1573, %v1572
    %v1603 = vpack.c.b16 %v1575, %v1574
    %v1604 = vpack.c.b16 %v1577, %v1576
    %v1605 = vpack.c.b16 %v1579, %v1578
    %v1606 = vpack.c.b16 %v1581, %v1580
    %v1607 = vpack.c.b16 %v1583, %v1582
    %v1608 = vpack.c.b16 %v1585, %v1584
    %v1609 = vpack.c.b16 %v1587, %v1586
    %v1610 = vpack.c.b16 %v1588, %v1588
    %v1633 = vsel %vm351, %v1610, 0
    %1635 = vmatprep.subr.bf16.mxu0 0
    %1636 = vmatpush1.bf16.msra.mxu0 %v1589
    %1637 = vmatprep.subr.bf16.mxu0 0
    %1638 = vmatpush1.bf16.msra.mxu0 %v1590
    %1639 = vmatprep.subr.bf16.mxu0 0
    %1640 = vmatpush1.bf16.msra.mxu0 %v1591
    %1641 = vmatprep.subr.bf16.mxu0 0
    %1642 = vmatpush1.bf16.msra.mxu0 %v1592
    %1643 = vmatprep.subr.bf16.mxu0 0
    %1644 = vmatpush1.bf16.msra.mxu0 %v1593
    %1645 = vmatprep.subr.bf16.mxu0 0
    %1646 = vmatpush1.bf16.msra.mxu0 %v1594
    %1647 = vmatprep.subr.bf16.mxu0 0
    %1648 = vmatpush1.bf16.msra.mxu0 %v1595
    %1649 = vmatprep.subr.bf16.mxu0 0
    %1650 = vmatpush1.bf16.msra.mxu0 %v1596
    %1651 = vmatprep.subr.bf16.mxu0 0
    %1652 = vmatpush1.bf16.msra.mxu0 %v1597
    %1653 = vmatprep.subr.bf16.mxu0 0
    %1654 = vmatpush1.bf16.msra.mxu0 %v1598
    %1655 = vmatprep.subr.bf16.mxu0 0
    %1656 = vmatpush1.bf16.msra.mxu0 %v1599
    %1657 = vmatprep.subr.bf16.mxu0 0
    %1658 = vmatpush1.bf16.msra.mxu0 %v1600
    %1659 = vmatprep.subr.bf16.mxu0 0
    %1660 = vmatpush1.bf16.msra.mxu0 %v1601
    %1661 = vmatprep.subr.bf16.mxu0 0
    %1662 = vmatpush1.bf16.msra.mxu0 %v1602
    %1663 = vmatprep.subr.bf16.mxu0 0
    %1664 = vmatpush1.bf16.msra.mxu0 %v1603
    %1665 = vmatprep.subr.bf16.mxu0 0
    %1666 = vmatpush1.bf16.msra.mxu0 %v1604
    %1667 = vmatprep.mubr.bf16.mxu0 %v173
    %1668 = vmatmul.mubr.bf16.gmra.mrb[0].mxu0 %v172
    %v1669 = vpop.f32.mrb[0].mxu0
    %v1670 = vadd.f32 0.0, %v1669
    %v1671 = vpop.f32.mrb[0].mxu0
    %v1672 = vpop.f32.mrb[0].mxu0
    %v1673 = vpop.f32.mrb[0].mxu0
    %1674 = vdwg.mxu0
    %1675 = vmatprep.subr.bf16.mxu0 0
    %1676 = vmatpush1.bf16.msra.mxu0 %v1605
    %1677 = vmatprep.subr.bf16.mxu0 0
    %1678 = vmatpush1.bf16.msra.mxu0 %v1606
    %1679 = vmatprep.subr.bf16.mxu0 0
    %1680 = vmatpush1.bf16.msra.mxu0 %v1607
    %1681 = vmatprep.subr.bf16.mxu0 0
    %1682 = vmatpush1.bf16.msra.mxu0 %v1608
    %1683 = vmatprep.subr.bf16.mxu0 0
    %1684 = vmatpush1.bf16.msra.mxu0 %v1609
    %1685 = vmatprep.subr.bf16.mxu0 0
    %1686 = vmatpush1.bf16.msra.mxu0 %v1633
    %1687 = vmatprep.subr.bf16.mxu0 0
    %1688 = vmatpush1.bf16.msra.mxu0 0
    %1689 = vmatprep.subr.bf16.mxu0 0
    %1690 = vmatpush1.bf16.msra.mxu0 0
    %1691 = vmatprep.subr.bf16.mxu0 0
    %1692 = vmatpush1.bf16.msra.mxu0 0
    %1693 = vmatprep.subr.bf16.mxu0 0
    %1694 = vmatpush1.bf16.msra.mxu0 0
    %1695 = vmatprep.subr.bf16.mxu0 0
    %1696 = vmatpush1.bf16.msra.mxu0 0
    %1697 = vmatprep.subr.bf16.mxu0 0
    %1698 = vmatpush1.bf16.msra.mxu0 0
    %1699 = vmatprep.subr.bf16.mxu0 0
    %1700 = vmatpush1.bf16.msra.mxu0 0
    %1701 = vmatprep.subr.bf16.mxu0 0
    %1702 = vmatpush1.bf16.msra.mxu0 0
    %1703 = vmatprep.subr.bf16.mxu0 0
    %1704 = vmatpush1.bf16.msra.mxu0 0
    %1705 = vmatprep.subr.bf16.mxu0 0
    %1706 = vmatpush1.bf16.msra.mxu0 0
    %1707 = vmatprep.mubr.bf16.mxu0 0
    %1708 = vmatmul.mubr.bf16.gmra.mrb[0].mxu0 %v349
    %v1709 = vpop.f32.mrb[0].mxu0
    %v1710 = vadd.f32 %v1670, %v1709
    %v1711 = vpop.f32.mrb[0].mxu0
    %v1712 = vpop.f32.mrb[0].mxu0
    %v1713 = vpop.f32.mrb[0].mxu0
    %1714 = vdwg.mxu0
    %s1715 = scalar_lea.vmem %s3, 1032
    %v1716 = vld [vmem:[%s1715] sm:$0xf]
    %v1717 = vld [vmem:[%s1715 + $0x4] sm:$0xf]
    %v1718 = vld [vmem:[%s1715 + $0x8] sm:$0xf]
    %v1719 = vld [vmem:[%s1715 + $0xc] sm:$0xf]
    %v1720 = vld [vmem:[%s1715 + $0x10] sm:$0xf]
    %v1721 = vld [vmem:[%s1715 + $0x14] sm:$0xf]
    %v1722 = vld [vmem:[%s1715 + $0x18] sm:$0xf]
    %v1723 = vld [vmem:[%s1715 + $0x1c] sm:$0xf]
    %v1724 = vld [vmem:[%s1715 + $0x20] sm:$0xf]
    %v1725 = vld [vmem:[%s1715 + $0x24] sm:$0xf]
    %v1726 = vld [vmem:[%s1715 + $0x28] sm:$0xf]
    %v1727 = vld [vmem:[%s1715 + $0x2c] sm:$0xf]
    %v1728 = vld [vmem:[%s1715 + $0x30] sm:$0xf]
    %v1729 = vld [vmem:[%s1715 + $0x34] sm:$0xf]
    %v1730 = vld [vmem:[%s1715 + $0x38] sm:$0xf]
    %v1731 = vld [vmem:[%s1715 + $0x3c] sm:$0xf]
    %v1732 = vld [vmem:[%s1715 + $0x40] sm:$0xf]
    %v1733 = vld [vmem:[%s1715 + $0x44] sm:$0xf]
    %v1734 = vld [vmem:[%s1715 + $0x48] sm:$0xf]
    %v1735 = vld [vmem:[%s1715 + $0x4c] sm:$0xf]
    %v1736 = vld [vmem:[%s1715 + $0x50] sm:$0xf]
    %v1737 = vld [vmem:[%s1715 + $0x54] sm:$0xf]
    %v1738 = vld [vmem:[%s1715 + $0x58] sm:$0xf]
    %v1739 = vld [vmem:[%s1715 + $0x5c] sm:$0xf]
    %v1740 = vld [vmem:[%s1715 + $0x60] sm:$0xf]
    %v1741 = vld [vmem:[%s1715 + $0x64] sm:$0xf]
    %v1742 = vld [vmem:[%s1715 + $0x68] sm:$0xf]
    %v1743 = vld [vmem:[%s1715 + $0x6c] sm:$0xf]
    %v1744 = vld [vmem:[%s1715 + $0x70] sm:$0xf]
    %v1745 = vld [vmem:[%s1715 + $0x74] sm:$0xf]
    %v1746 = vld [vmem:[%s1715 + $0x78] sm:$0xf]
    %v1747 = vld [vmem:[%s1715 + $0x7c] sm:$0xf]
    %v1748 = vld [vmem:[%s1715 + $0x80] sm:$0xf]
    %v1749 = vld [vmem:[%s1715 + $0x84] sm:$0xf]
    %v1750 = vld [vmem:[%s1715 + $0x88] sm:$0xf]
    %v1751 = vld [vmem:[%s1715 + $0x8c] sm:$0xf]
    %v1752 = vld [vmem:[%s1715 + $0x90] sm:$0xf]
    %v1753 = vld [vmem:[%s1715 + $0x94] sm:$0xf]
    %v1754 = vld [vmem:[%s1715 + $0x98] sm:$0xf]
    %v1755 = vld [vmem:[%s1715 + $0x9c] sm:$0xf]
    %v1756 = vld [vmem:[%s1715 + $0xa0] sm:$0xf]
    %v1757 = vld [vmem:[%s1715 + $0xa4] sm:$0xf]
    %v1758 = vld [vmem:[%s1715 + $0xa8] sm:$0x1]
    %v1802 = vunpack.c.l.b16 %v1716
    %v1803 = vunpack.c.l.b16 %v1717
    %v1804 = vunpack.c.l.b16 %v1718
    %v1805 = vunpack.c.l.b16 %v1719
    %v1806 = vunpack.c.l.b16 %v1720
    %v1807 = vunpack.c.l.b16 %v1721
    %v1808 = vunpack.c.l.b16 %v1722
    %v1809 = vunpack.c.l.b16 %v1723
    %v1810 = vunpack.c.l.b16 %v1724
    %v1811 = vunpack.c.l.b16 %v1725
    %v1812 = vunpack.c.l.b16 %v1726
    %v1813 = vunpack.c.l.b16 %v1727
    %v1814 = vunpack.c.l.b16 %v1728
    %v1815 = vunpack.c.l.b16 %v1729
    %v1816 = vunpack.c.l.b16 %v1730
    %v1817 = vunpack.c.l.b16 %v1731
    %v1818 = vunpack.c.l.b16 %v1732
    %v1819 = vunpack.c.l.b16 %v1733
    %v1820 = vunpack.c.l.b16 %v1734
    %v1821 = vunpack.c.l.b16 %v1735
    %v1822 = vunpack.c.l.b16 %v1736
    %v1823 = vunpack.c.l.b16 %v1737
    %v1824 = vunpack.c.l.b16 %v1738
    %v1825 = vunpack.c.l.b16 %v1739
    %v1826 = vunpack.c.l.b16 %v1740
    %v1827 = vunpack.c.l.b16 %v1741
    %v1828 = vunpack.c.l.b16 %v1742
    %v1829 = vunpack.c.l.b16 %v1743
    %v1830 = vunpack.c.l.b16 %v1744
    %v1831 = vunpack.c.l.b16 %v1745
    %v1832 = vunpack.c.l.b16 %v1746
    %v1833 = vunpack.c.l.b16 %v1747
    %v1834 = vunpack.c.l.b16 %v1748
    %v1835 = vunpack.c.l.b16 %v1749
    %v1836 = vunpack.c.l.b16 %v1750
    %v1837 = vunpack.c.l.b16 %v1751
    %v1838 = vunpack.c.l.b16 %v1752
    %v1839 = vunpack.c.l.b16 %v1753
    %v1840 = vunpack.c.l.b16 %v1754
    %v1841 = vunpack.c.l.b16 %v1755
    %v1842 = vunpack.c.l.b16 %v1756
    %v1843 = vunpack.c.l.b16 %v1757
    %v1844 = vunpack.c.l.b16 %v1758
    %v1845 = vpack.c.b16 %v1803, %v1802
    %v1846 = vpack.c.b16 %v1805, %v1804
    %v1847 = vpack.c.b16 %v1807, %v1806
    %v1848 = vpack.c.b16 %v1809, %v1808
    %v1849 = vpack.c.b16 %v1811, %v1810
    %v1850 = vpack.c.b16 %v1813, %v1812
    %v1851 = vpack.c.b16 %v1815, %v1814
    %v1852 = vpack.c.b16 %v1817, %v1816
    %v1853 = vpack.c.b16 %v1819, %v1818
    %v1854 = vpack.c.b16 %v1821, %v1820
    %v1855 = vpack.c.b16 %v1823, %v1822
    %v1856 = vpack.c.b16 %v1825, %v1824
    %v1857 = vpack.c.b16 %v1827, %v1826
    %v1858 = vpack.c.b16 %v1829, %v1828
    %v1859 = vpack.c.b16 %v1831, %v1830
    %v1860 = vpack.c.b16 %v1833, %v1832
    %v1861 = vpack.c.b16 %v1835, %v1834
    %v1862 = vpack.c.b16 %v1837, %v1836
    %v1863 = vpack.c.b16 %v1839, %v1838
    %v1864 = vpack.c.b16 %v1841, %v1840
    %v1865 = vpack.c.b16 %v1843, %v1842
    %v1866 = vpack.c.b16 %v1844, %v1844
    %v1889 = vsel %vm351, %v1866, 0
    %1891 = vmatprep.subr.bf16.mxu0 0
    %1892 = vmatpush1.bf16.msra.mxu0 %v1845
    %1893 = vmatprep.subr.bf16.mxu0 0
    %1894 = vmatpush1.bf16.msra.mxu0 %v1846
    %1895 = vmatprep.subr.bf16.mxu0 0
    %1896 = vmatpush1.bf16.msra.mxu0 %v1847
    %1897 = vmatprep.subr.bf16.mxu0 0
    %1898 = vmatpush1.bf16.msra.mxu0 %v1848
    %1899 = vmatprep.subr.bf16.mxu0 0
    %1900 = vmatpush1.bf16.msra.mxu0 %v1849
    %1901 = vmatprep.subr.bf16.mxu0 0
    %1902 = vmatpush1.bf16.msra.mxu0 %v1850
    %1903 = vmatprep.subr.bf16.mxu0 0
    %1904 = vmatpush1.bf16.msra.mxu0 %v1851
    %1905 = vmatprep.subr.bf16.mxu0 0
    %1906 = vmatpush1.bf16.msra.mxu0 %v1852
    %1907 = vmatprep.subr.bf16.mxu0 0
    %1908 = vmatpush1.bf16.msra.mxu0 %v1853
    %1909 = vmatprep.subr.bf16.mxu0 0
    %1910 = vmatpush1.bf16.msra.mxu0 %v1854
    %1911 = vmatprep.subr.bf16.mxu0 0
    %1912 = vmatpush1.bf16.msra.mxu0 %v1855
    %1913 = vmatprep.subr.bf16.mxu0 0
    %1914 = vmatpush1.bf16.msra.mxu0 %v1856
    %1915 = vmatprep.subr.bf16.mxu0 0
    %1916 = vmatpush1.bf16.msra.mxu0 %v1857
    %1917 = vmatprep.subr.bf16.mxu0 0
    %1918 = vmatpush1.bf16.msra.mxu0 %v1858
    %1919 = vmatprep.subr.bf16.mxu0 0
    %1920 = vmatpush1.bf16.msra.mxu0 %v1859
    %1921 = vmatprep.subr.bf16.mxu0 0
    %1922 = vmatpush1.bf16.msra.mxu0 %v1860
    %1923 = vmatprep.mubr.bf16.mxu0 %v173
    %1924 = vmatmul.mubr.bf16.gmra.mrb[0].mxu0 %v172
    %v1925 = vpop.f32.mrb[0].mxu0
    %v1926 = vadd.f32 0.0, %v1925
    %v1927 = vpop.f32.mrb[0].mxu0
    %v1928 = vpop.f32.mrb[0].mxu0
    %v1929 = vpop.f32.mrb[0].mxu0
    %1930 = vdwg.mxu0
    %1931 = vmatprep.subr.bf16.mxu0 0
    %1932 = vmatpush1.bf16.msra.mxu0 %v1861
    %1933 = vmatprep.subr.bf16.mxu0 0
    %1934 = vmatpush1.bf16.msra.mxu0 %v1862
    %1935 = vmatprep.subr.bf16.mxu0 0
    %1936 = vmatpush1.bf16.msra.mxu0 %v1863
    %1937 = vmatprep.subr.bf16.mxu0 0
    %1938 = vmatpush1.bf16.msra.mxu0 %v1864
    %1939 = vmatprep.subr.bf16.mxu0 0
    %1940 = vmatpush1.bf16.msra.mxu0 %v1865
    %1941 = vmatprep.subr.bf16.mxu0 0
    %1942 = vmatpush1.bf16.msra.mxu0 %v1889
    %1943 = vmatprep.subr.bf16.mxu0 0
    %1944 = vmatpush1.bf16.msra.mxu0 0
    %1945 = vmatprep.subr.bf16.mxu0 0
    %1946 = vmatpush1.bf16.msra.mxu0 0
    %1947 = vmatprep.subr.bf16.mxu0 0
    %1948 = vmatpush1.bf16.msra.mxu0 0
    %1949 = vmatprep.subr.bf16.mxu0 0
    %1950 = vmatpush1.bf16.msra.mxu0 0
    %1951 = vmatprep.subr.bf16.mxu0 0
    %1952 = vmatpush1.bf16.msra.mxu0 0
    %1953 = vmatprep.subr.bf16.mxu0 0
    %1954 = vmatpush1.bf16.msra.mxu0 0
    %1955 = vmatprep.subr.bf16.mxu0 0
    %1956 = vmatpush1.bf16.msra.mxu0 0
    %1957 = vmatprep.subr.bf16.mxu0 0
    %1958 = vmatpush1.bf16.msra.mxu0 0
    %1959 = vmatprep.subr.bf16.mxu0 0
    %1960 = vmatpush1.bf16.msra.mxu0 0
    %1961 = vmatprep.subr.bf16.mxu0 0
    %1962 = vmatpush1.bf16.msra.mxu0 0
    %1963 = vmatprep.mubr.bf16.mxu0 0
    %1964 = vmatmul.mubr.bf16.gmra.mrb[0].mxu0 %v349
    %v1965 = vpop.f32.mrb[0].mxu0
    %v1966 = vadd.f32 %v1926, %v1965
    %v1967 = vpop.f32.mrb[0].mxu0
    %v1968 = vpop.f32.mrb[0].mxu0
    %v1969 = vpop.f32.mrb[0].mxu0
    %1970 = vdwg.mxu0
    %s1971 = scalar_lea.vmem %s3, 1204
    %v1972 = vld [vmem:[%s1971] sm:$0xf]
    %v1973 = vld [vmem:[%s1971 + $0x4] sm:$0xf]
    %v1974 = vld [vmem:[%s1971 + $0x8] sm:$0xf]
    %v1975 = vld [vmem:[%s1971 + $0xc] sm:$0xf]
    %v1976 = vld [vmem:[%s1971 + $0x10] sm:$0xf]
    %v1977 = vld [vmem:[%s1971 + $0x14] sm:$0xf]
    %v1978 = vld [vmem:[%s1971 + $0x18] sm:$0xf]
    %v1979 = vld [vmem:[%s1971 + $0x1c] sm:$0xf]
    %v1980 = vld [vmem:[%s1971 + $0x20] sm:$0xf]
    %v1981 = vld [vmem:[%s1971 + $0x24] sm:$0xf]
    %v1982 = vld [vmem:[%s1971 + $0x28] sm:$0xf]
    %v1983 = vld [vmem:[%s1971 + $0x2c] sm:$0xf]
    %v1984 = vld [vmem:[%s1971 + $0x30] sm:$0xf]
    %v1985 = vld [vmem:[%s1971 + $0x34] sm:$0xf]
    %v1986 = vld [vmem:[%s1971 + $0x38] sm:$0xf]
    %v1987 = vld [vmem:[%s1971 + $0x3c] sm:$0xf]
    %v1988 = vld [vmem:[%s1971 + $0x40] sm:$0xf]
    %v1989 = vld [vmem:[%s1971 + $0x44] sm:$0xf]
    %v1990 = vld [vmem:[%s1971 + $0x48] sm:$0xf]
    %v1991 = vld [vmem:[%s1971 + $0x4c] sm:$0xf]
    %v1992 = vld [vmem:[%s1971 + $0x50] sm:$0xf]
    %v1993 = vld [vmem:[%s1971 + $0x54] sm:$0xf]
    %v1994 = vld [vmem:[%s1971 + $0x58] sm:$0xf]
    %v1995 = vld [vmem:[%s1971 + $0x5c] sm:$0xf]
    %v1996 = vld [vmem:[%s1971 + $0x60] sm:$0xf]
    %v1997 = vld [vmem:[%s1971 + $0x64] sm:$0xf]
    %v1998 = vld [vmem:[%s1971 + $0x68] sm:$0xf]
    %v1999 = vld [vmem:[%s1971 + $0x6c] sm:$0xf]
    %v2000 = vld [vmem:[%s1971 + $0x70] sm:$0xf]
    %v2001 = vld [vmem:[%s1971 + $0x74] sm:$0xf]
    %v2002 = vld [vmem:[%s1971 + $0x78] sm:$0xf]
    %v2003 = vld [vmem:[%s1971 + $0x7c] sm:$0xf]
    %v2004 = vld [vmem:[%s1971 + $0x80] sm:$0xf]
    %v2005 = vld [vmem:[%s1971 + $0x84] sm:$0xf]
    %v2006 = vld [vmem:[%s1971 + $0x88] sm:$0xf]
    %v2007 = vld [vmem:[%s1971 + $0x8c] sm:$0xf]
    %v2008 = vld [vmem:[%s1971 + $0x90] sm:$0xf]
    %v2009 = vld [vmem:[%s1971 + $0x94] sm:$0xf]
    %v2010 = vld [vmem:[%s1971 + $0x98] sm:$0xf]
    %v2011 = vld [vmem:[%s1971 + $0x9c] sm:$0xf]
    %v2012 = vld [vmem:[%s1971 + $0xa0] sm:$0xf]
    %v2013 = vld [vmem:[%s1971 + $0xa4] sm:$0xf]
    %v2014 = vld [vmem:[%s1971 + $0xa8] sm:$0x1]
    %v2058 = vunpack.c.l.b16 %v1972
    %v2059 = vunpack.c.l.b16 %v1973
    %v2060 = vunpack.c.l.b16 %v1974
    %v2061 = vunpack.c.l.b16 %v1975
    %v2062 = vunpack.c.l.b16 %v1976
    %v2063 = vunpack.c.l.b16 %v1977
    %v2064 = vunpack.c.l.b16 %v1978
    %v2065 = vunpack.c.l.b16 %v1979
    %v2066 = vunpack.c.l.b16 %v1980
    %v2067 = vunpack.c.l.b16 %v1981
    %v2068 = vunpack.c.l.b16 %v1982
    %v2069 = vunpack.c.l.b16 %v1983
    %v2070 = vunpack.c.l.b16 %v1984
    %v2071 = vunpack.c.l.b16 %v1985
    %v2072 = vunpack.c.l.b16 %v1986
    %v2073 = vunpack.c.l.b16 %v1987
    %v2074 = vunpack.c.l.b16 %v1988
    %v2075 = vunpack.c.l.b16 %v1989
    %v2076 = vunpack.c.l.b16 %v1990
    %v2077 = vunpack.c.l.b16 %v1991
    %v2078 = vunpack.c.l.b16 %v1992
    %v2079 = vunpack.c.l.b16 %v1993
    %v2080 = vunpack.c.l.b16 %v1994
    %v2081 = vunpack.c.l.b16 %v1995
    %v2082 = vunpack.c.l.b16 %v1996
    %v2083 = vunpack.c.l.b16 %v1997
    %v2084 = vunpack.c.l.b16 %v1998
    %v2085 = vunpack.c.l.b16 %v1999
    %v2086 = vunpack.c.l.b16 %v2000
    %v2087 = vunpack.c.l.b16 %v2001
    %v2088 = vunpack.c.l.b16 %v2002
    %v2089 = vunpack.c.l.b16 %v2003
    %v2090 = vunpack.c.l.b16 %v2004
    %v2091 = vunpack.c.l.b16 %v2005
    %v2092 = vunpack.c.l.b16 %v2006
    %v2093 = vunpack.c.l.b16 %v2007
    %v2094 = vunpack.c.l.b16 %v2008
    %v2095 = vunpack.c.l.b16 %v2009
    %v2096 = vunpack.c.l.b16 %v2010
    %v2097 = vunpack.c.l.b16 %v2011
    %v2098 = vunpack.c.l.b16 %v2012
    %v2099 = vunpack.c.l.b16 %v2013
    %v2100 = vunpack.c.l.b16 %v2014
    %v2101 = vpack.c.b16 %v2059, %v2058
    %v2102 = vpack.c.b16 %v2061, %v2060
    %v2103 = vpack.c.b16 %v2063, %v2062
    %v2104 = vpack.c.b16 %v2065, %v2064
    %v2105 = vpack.c.b16 %v2067, %v2066
    %v2106 = vpack.c.b16 %v2069, %v2068
    %v2107 = vpack.c.b16 %v2071, %v2070
    %v2108 = vpack.c.b16 %v2073, %v2072
    %v2109 = vpack.c.b16 %v2075, %v2074
    %v2110 = vpack.c.b16 %v2077, %v2076
    %v2111 = vpack.c.b16 %v2079, %v2078
    %v2112 = vpack.c.b16 %v2081, %v2080
    %v2113 = vpack.c.b16 %v2083, %v2082
    %v2114 = vpack.c.b16 %v2085, %v2084
    %v2115 = vpack.c.b16 %v2087, %v2086
    %v2116 = vpack.c.b16 %v2089, %v2088
    %v2117 = vpack.c.b16 %v2091, %v2090
    %v2118 = vpack.c.b16 %v2093, %v2092
    %v2119 = vpack.c.b16 %v2095, %v2094
    %v2120 = vpack.c.b16 %v2097, %v2096
    %v2121 = vpack.c.b16 %v2099, %v2098
    %v2122 = vpack.c.b16 %v2100, %v2100
    %v2145 = vsel %vm351, %v2122, 0
    %2147 = vmatprep.subr.bf16.mxu0 0
    %2148 = vmatpush1.bf16.msra.mxu0 %v2101
    %2149 = vmatprep.subr.bf16.mxu0 0
    %2150 = vmatpush1.bf16.msra.mxu0 %v2102
    %2151 = vmatprep.subr.bf16.mxu0 0
    %2152 = vmatpush1.bf16.msra.mxu0 %v2103
    %2153 = vmatprep.subr.bf16.mxu0 0
    %2154 = vmatpush1.bf16.msra.mxu0 %v2104
    %2155 = vmatprep.subr.bf16.mxu0 0
    %2156 = vmatpush1.bf16.msra.mxu0 %v2105
    %2157 = vmatprep.subr.bf16.mxu0 0
    %2158 = vmatpush1.bf16.msra.mxu0 %v2106
    %2159 = vmatprep.subr.bf16.mxu0 0
    %2160 = vmatpush1.bf16.msra.mxu0 %v2107
    %2161 = vmatprep.subr.bf16.mxu0 0
    %2162 = vmatpush1.bf16.msra.mxu0 %v2108
    %2163 = vmatprep.subr.bf16.mxu0 0
    %2164 = vmatpush1.bf16.msra.mxu0 %v2109
    %2165 = vmatprep.subr.bf16.mxu0 0
    %2166 = vmatpush1.bf16.msra.mxu0 %v2110
    %2167 = vmatprep.subr.bf16.mxu0 0
    %2168 = vmatpush1.bf16.msra.mxu0 %v2111
    %2169 = vmatprep.subr.bf16.mxu0 0
    %2170 = vmatpush1.bf16.msra.mxu0 %v2112
    %2171 = vmatprep.subr.bf16.mxu0 0
    %2172 = vmatpush1.bf16.msra.mxu0 %v2113
    %2173 = vmatprep.subr.bf16.mxu0 0
    %2174 = vmatpush1.bf16.msra.mxu0 %v2114
    %2175 = vmatprep.subr.bf16.mxu0 0
    %2176 = vmatpush1.bf16.msra.mxu0 %v2115
    %2177 = vmatprep.subr.bf16.mxu0 0
    %2178 = vmatpush1.bf16.msra.mxu0 %v2116
    %2179 = vmatprep.mubr.bf16.mxu0 %v173
    %2180 = vmatmul.mubr.bf16.gmra.mrb[0].mxu0 %v172
    %v2181 = vpop.f32.mrb[0].mxu0
    %v2182 = vadd.f32 0.0, %v2181
    %v2183 = vpop.f32.mrb[0].mxu0
    %v2184 = vpop.f32.mrb[0].mxu0
    %v2185 = vpop.f32.mrb[0].mxu0
    %2186 = vdwg.mxu0
    %2187 = vmatprep.subr.bf16.mxu0 0
    %2188 = vmatpush1.bf16.msra.mxu0 %v2117
    %2189 = vmatprep.subr.bf16.mxu0 0
    %2190 = vmatpush1.bf16.msra.mxu0 %v2118
    %2191 = vmatprep.subr.bf16.mxu0 0
    %2192 = vmatpush1.bf16.msra.mxu0 %v2119
    %2193 = vmatprep.subr.bf16.mxu0 0
    %2194 = vmatpush1.bf16.msra.mxu0 %v2120
    %2195 = vmatprep.subr.bf16.mxu0 0
    %2196 = vmatpush1.bf16.msra.mxu0 %v2121
    %2197 = vmatprep.subr.bf16.mxu0 0
    %2198 = vmatpush1.bf16.msra.mxu0 %v2145
    %2199 = vmatprep.subr.bf16.mxu0 0
    %2200 = vmatpush1.bf16.msra.mxu0 0
    %2201 = vmatprep.subr.bf16.mxu0 0
    %2202 = vmatpush1.bf16.msra.mxu0 0
    %2203 = vmatprep.subr.bf16.mxu0 0
    %2204 = vmatpush1.bf16.msra.mxu0 0
    %2205 = vmatprep.subr.bf16.mxu0 0
    %2206 = vmatpush1.bf16.msra.mxu0 0
    %2207 = vmatprep.subr.bf16.mxu0 0
    %2208 = vmatpush1.bf16.msra.mxu0 0
    %2209 = vmatprep.subr.bf16.mxu0 0
    %2210 = vmatpush1.bf16.msra.mxu0 0
    %2211 = vmatprep.subr.bf16.mxu0 0
    %2212 = vmatpush1.bf16.msra.mxu0 0
    %2213 = vmatprep.subr.bf16.mxu0 0
    %2214 = vmatpush1.bf16.msra.mxu0 0
    %2215 = vmatprep.subr.bf16.mxu0 0
    %2216 = vmatpush1.bf16.msra.mxu0 0
    %2217 = vmatprep.subr.bf16.mxu0 0
    %2218 = vmatpush1.bf16.msra.mxu0 0
    %2219 = vmatprep.mubr.bf16.mxu0 0
    %2220 = vmatmul.mubr.bf16.gmra.mrb[0].mxu0 %v349
    %v2221 = vpop.f32.mrb[0].mxu0
    %v2222 = vadd.f32 %v2182, %v2221
    %v2223 = vpop.f32.mrb[0].mxu0
    %v2224 = vpop.f32.mrb[0].mxu0
    %v2225 = vpop.f32.mrb[0].mxu0
    %2226 = vdwg.mxu0
    %s2227 = scalar_lea.vmem %s3, 1376
    %v2228 = vld [vmem:[%s2227] sm:$0xf]
    %v2229 = vld [vmem:[%s2227 + $0x4] sm:$0xf]
    %v2230 = vld [vmem:[%s2227 + $0x8] sm:$0xf]
    %v2231 = vld [vmem:[%s2227 + $0xc] sm:$0xf]
    %v2232 = vld [vmem:[%s2227 + $0x10] sm:$0xf]
    %v2233 = vld [vmem:[%s2227 + $0x14] sm:$0xf]
    %v2234 = vld [vmem:[%s2227 + $0x18] sm:$0xf]
    %v2235 = vld [vmem:[%s2227 + $0x1c] sm:$0xf]
    %v2236 = vld [vmem:[%s2227 + $0x20] sm:$0xf]
    %v2237 = vld [vmem:[%s2227 + $0x24] sm:$0xf]
    %v2238 = vld [vmem:[%s2227 + $0x28] sm:$0xf]
    %v2239 = vld [vmem:[%s2227 + $0x2c] sm:$0xf]
    %v2240 = vld [vmem:[%s2227 + $0x30] sm:$0xf]
    %v2241 = vld [vmem:[%s2227 + $0x34] sm:$0xf]
    %v2242 = vld [vmem:[%s2227 + $0x38] sm:$0xf]
    %v2243 = vld [vmem:[%s2227 + $0x3c] sm:$0xf]
    %v2244 = vld [vmem:[%s2227 + $0x40] sm:$0xf]
    %v2245 = vld [vmem:[%s2227 + $0x44] sm:$0xf]
    %v2246 = vld [vmem:[%s2227 + $0x48] sm:$0xf]
    %v2247 = vld [vmem:[%s2227 + $0x4c] sm:$0xf]
    %v2248 = vld [vmem:[%s2227 + $0x50] sm:$0xf]
    %v2249 = vld [vmem:[%s2227 + $0x54] sm:$0xf]
    %v2250 = vld [vmem:[%s2227 + $0x58] sm:$0xf]
    %v2251 = vld [vmem:[%s2227 + $0x5c] sm:$0xf]
    %v2252 = vld [vmem:[%s2227 + $0x60] sm:$0xf]
    %v2253 = vld [vmem:[%s2227 + $0x64] sm:$0xf]
    %v2254 = vld [vmem:[%s2227 + $0x68] sm:$0xf]
    %v2255 = vld [vmem:[%s2227 + $0x6c] sm:$0xf]
    %v2256 = vld [vmem:[%s2227 + $0x70] sm:$0xf]
    %v2257 = vld [vmem:[%s2227 + $0x74] sm:$0xf]
    %v2258 = vld [vmem:[%s2227 + $0x78] sm:$0xf]
    %v2259 = vld [vmem:[%s2227 + $0x7c] sm:$0xf]
    %v2260 = vld [vmem:[%s2227 + $0x80] sm:$0xf]
    %v2261 = vld [vmem:[%s2227 + $0x84] sm:$0xf]
    %v2262 = vld [vmem:[%s2227 + $0x88] sm:$0xf]
    %v2263 = vld [vmem:[%s2227 + $0x8c] sm:$0xf]
    %v2264 = vld [vmem:[%s2227 + $0x90] sm:$0xf]
    %v2265 = vld [vmem:[%s2227 + $0x94] sm:$0xf]
    %v2266 = vld [vmem:[%s2227 + $0x98] sm:$0xf]
    %v2267 = vld [vmem:[%s2227 + $0x9c] sm:$0xf]
    %v2268 = vld [vmem:[%s2227 + $0xa0] sm:$0xf]
    %v2269 = vld [vmem:[%s2227 + $0xa4] sm:$0xf]
    %v2270 = vld [vmem:[%s2227 + $0xa8] sm:$0x1]
    %v2314 = vunpack.c.l.b16 %v2228
    %v2315 = vunpack.c.l.b16 %v2229
    %v2316 = vunpack.c.l.b16 %v2230
    %v2317 = vunpack.c.l.b16 %v2231
    %v2318 = vunpack.c.l.b16 %v2232
    %v2319 = vunpack.c.l.b16 %v2233
    %v2320 = vunpack.c.l.b16 %v2234
    %v2321 = vunpack.c.l.b16 %v2235
    %v2322 = vunpack.c.l.b16 %v2236
    %v2323 = vunpack.c.l.b16 %v2237
    %v2324 = vunpack.c.l.b16 %v2238
    %v2325 = vunpack.c.l.b16 %v2239
    %v2326 = vunpack.c.l.b16 %v2240
    %v2327 = vunpack.c.l.b16 %v2241
    %v2328 = vunpack.c.l.b16 %v2242
    %v2329 = vunpack.c.l.b16 %v2243
    %v2330 = vunpack.c.l.b16 %v2244
    %v2331 = vunpack.c.l.b16 %v2245
    %v2332 = vunpack.c.l.b16 %v2246
    %v2333 = vunpack.c.l.b16 %v2247
    %v2334 = vunpack.c.l.b16 %v2248
    %v2335 = vunpack.c.l.b16 %v2249
    %v2336 = vunpack.c.l.b16 %v2250
    %v2337 = vunpack.c.l.b16 %v2251
    %v2338 = vunpack.c.l.b16 %v2252
    %v2339 = vunpack.c.l.b16 %v2253
    %v2340 = vunpack.c.l.b16 %v2254
    %v2341 = vunpack.c.l.b16 %v2255
    %v2342 = vunpack.c.l.b16 %v2256
    %v2343 = vunpack.c.l.b16 %v2257
    %v2344 = vunpack.c.l.b16 %v2258
    %v2345 = vunpack.c.l.b16 %v2259
    %v2346 = vunpack.c.l.b16 %v2260
    %v2347 = vunpack.c.l.b16 %v2261
    %v2348 = vunpack.c.l.b16 %v2262
    %v2349 = vunpack.c.l.b16 %v2263
    %v2350 = vunpack.c.l.b16 %v2264
    %v2351 = vunpack.c.l.b16 %v2265
    %v2352 = vunpack.c.l.b16 %v2266
    %v2353 = vunpack.c.l.b16 %v2267
    %v2354 = vunpack.c.l.b16 %v2268
    %v2355 = vunpack.c.l.b16 %v2269
    %v2356 = vunpack.c.l.b16 %v2270
    %v2357 = vpack.c.b16 %v2315, %v2314
    %v2358 = vpack.c.b16 %v2317, %v2316
    %v2359 = vpack.c.b16 %v2319, %v2318
    %v2360 = vpack.c.b16 %v2321, %v2320
    %v2361 = vpack.c.b16 %v2323, %v2322
    %v2362 = vpack.c.b16 %v2325, %v2324
    %v2363 = vpack.c.b16 %v2327, %v2326
    %v2364 = vpack.c.b16 %v2329, %v2328
    %v2365 = vpack.c.b16 %v2331, %v2330
    %v2366 = vpack.c.b16 %v2333, %v2332
    %v2367 = vpack.c.b16 %v2335, %v2334
    %v2368 = vpack.c.b16 %v2337, %v2336
    %v2369 = vpack.c.b16 %v2339, %v2338
    %v2370 = vpack.c.b16 %v2341, %v2340
    %v2371 = vpack.c.b16 %v2343, %v2342
    %v2372 = vpack.c.b16 %v2345, %v2344
    %v2373 = vpack.c.b16 %v2347, %v2346
    %v2374 = vpack.c.b16 %v2349, %v2348
    %v2375 = vpack.c.b16 %v2351, %v2350
    %v2376 = vpack.c.b16 %v2353, %v2352
    %v2377 = vpack.c.b16 %v2355, %v2354
    %v2378 = vpack.c.b16 %v2356, %v2356
    %v2401 = vsel %vm351, %v2378, 0
    %2403 = vmatprep.subr.bf16.mxu0 0
    %2404 = vmatpush1.bf16.msra.mxu0 %v2357
    %2405 = vmatprep.subr.bf16.mxu0 0
    %2406 = vmatpush1.bf16.msra.mxu0 %v2358
    %2407 = vmatprep.subr.bf16.mxu0 0
    %2408 = vmatpush1.bf16.msra.mxu0 %v2359
    %2409 = vmatprep.subr.bf16.mxu0 0
    %2410 = vmatpush1.bf16.msra.mxu0 %v2360
    %2411 = vmatprep.subr.bf16.mxu0 0
    %2412 = vmatpush1.bf16.msra.mxu0 %v2361
    %2413 = vmatprep.subr.bf16.mxu0 0
    %2414 = vmatpush1.bf16.msra.mxu0 %v2362
    %2415 = vmatprep.subr.bf16.mxu0 0
    %2416 = vmatpush1.bf16.msra.mxu0 %v2363
    %2417 = vmatprep.subr.bf16.mxu0 0
    %2418 = vmatpush1.bf16.msra.mxu0 %v2364
    %2419 = vmatprep.subr.bf16.mxu0 0
    %2420 = vmatpush1.bf16.msra.mxu0 %v2365
    %2421 = vmatprep.subr.bf16.mxu0 0
    %2422 = vmatpush1.bf16.msra.mxu0 %v2366
    %2423 = vmatprep.subr.bf16.mxu0 0
    %2424 = vmatpush1.bf16.msra.mxu0 %v2367
    %2425 = vmatprep.subr.bf16.mxu0 0
    %2426 = vmatpush1.bf16.msra.mxu0 %v2368
    %2427 = vmatprep.subr.bf16.mxu0 0
    %2428 = vmatpush1.bf16.msra.mxu0 %v2369
    %2429 = vmatprep.subr.bf16.mxu0 0
    %2430 = vmatpush1.bf16.msra.mxu0 %v2370
    %2431 = vmatprep.subr.bf16.mxu0 0
    %2432 = vmatpush1.bf16.msra.mxu0 %v2371
    %2433 = vmatprep.subr.bf16.mxu0 0
    %2434 = vmatpush1.bf16.msra.mxu0 %v2372
    %2435 = vmatprep.mubr.bf16.mxu0 %v173
    %2436 = vmatmul.mubr.bf16.gmra.mrb[0].mxu0 %v172
    %v2437 = vpop.f32.mrb[0].mxu0
    %v2438 = vadd.f32 0.0, %v2437
    %v2439 = vpop.f32.mrb[0].mxu0
    %v2440 = vpop.f32.mrb[0].mxu0
    %v2441 = vpop.f32.mrb[0].mxu0
    %2442 = vdwg.mxu0
    %2443 = vmatprep.subr.bf16.mxu0 0
    %2444 = vmatpush1.bf16.msra.mxu0 %v2373
    %2445 = vmatprep.subr.bf16.mxu0 0
    %2446 = vmatpush1.bf16.msra.mxu0 %v2374
    %2447 = vmatprep.subr.bf16.mxu0 0
    %2448 = vmatpush1.bf16.msra.mxu0 %v2375
    %2449 = vmatprep.subr.bf16.mxu0 0
    %2450 = vmatpush1.bf16.msra.mxu0 %v2376
    %2451 = vmatprep.subr.bf16.mxu0 0
    %2452 = vmatpush1.bf16.msra.mxu0 %v2377
    %2453 = vmatprep.subr.bf16.mxu0 0
    %2454 = vmatpush1.bf16.msra.mxu0 %v2401
    %2455 = vmatprep.subr.bf16.mxu0 0
    %2456 = vmatpush1.bf16.msra.mxu0 0
    %2457 = vmatprep.subr.bf16.mxu0 0
    %2458 = vmatpush1.bf16.msra.mxu0 0
    %2459 = vmatprep.subr.bf16.mxu0 0
    %2460 = vmatpush1.bf16.msra.mxu0 0
    %2461 = vmatprep.subr.bf16.mxu0 0
    %2462 = vmatpush1.bf16.msra.mxu0 0
    %2463 = vmatprep.subr.bf16.mxu0 0
    %2464 = vmatpush1.bf16.msra.mxu0 0
    %2465 = vmatprep.subr.bf16.mxu0 0
    %2466 = vmatpush1.bf16.msra.mxu0 0
    %2467 = vmatprep.subr.bf16.mxu0 0
    %2468 = vmatpush1.bf16.msra.mxu0 0
    %2469 = vmatprep.subr.bf16.mxu0 0
    %2470 = vmatpush1.bf16.msra.mxu0 0
    %2471 = vmatprep.subr.bf16.mxu0 0
    %2472 = vmatpush1.bf16.msra.mxu0 0
    %2473 = vmatprep.subr.bf16.mxu0 0
    %2474 = vmatpush1.bf16.msra.mxu0 0
    %2475 = vmatprep.mubr.bf16.mxu0 0
    %2476 = vmatmul.mubr.bf16.gmra.mrb[0].mxu0 %v349
    %v2477 = vpop.f32.mrb[0].mxu0
    %v2478 = vadd.f32 %v2438, %v2477
    %v2479 = vpop.f32.mrb[0].mxu0
    %v2480 = vpop.f32.mrb[0].mxu0
    %v2481 = vpop.f32.mrb[0].mxu0
    %2482 = vdwg.mxu0
    %s2483 = scalar_lea.vmem %s3, 1548
    %v2484 = vld [vmem:[%s2483] sm:$0xf]
    %v2485 = vld [vmem:[%s2483 + $0x4] sm:$0xf]
    %v2486 = vld [vmem:[%s2483 + $0x8] sm:$0xf]
    %v2487 = vld [vmem:[%s2483 + $0xc] sm:$0xf]
    %v2488 = vld [vmem:[%s2483 + $0x10] sm:$0xf]
    %v2489 = vld [vmem:[%s2483 + $0x14] sm:$0xf]
    %v2490 = vld [vmem:[%s2483 + $0x18] sm:$0xf]
    %v2491 = vld [vmem:[%s2483 + $0x1c] sm:$0xf]
    %v2492 = vld [vmem:[%s2483 + $0x20] sm:$0xf]
    %v2493 = vld [vmem:[%s2483 + $0x24] sm:$0xf]
    %v2494 = vld [vmem:[%s2483 + $0x28] sm:$0xf]
    %v2495 = vld [vmem:[%s2483 + $0x2c] sm:$0xf]
    %v2496 = vld [vmem:[%s2483 + $0x30] sm:$0xf]
    %v2497 = vld [vmem:[%s2483 + $0x34] sm:$0xf]
    %v2498 = vld [vmem:[%s2483 + $0x38] sm:$0xf]
    %v2499 = vld [vmem:[%s2483 + $0x3c] sm:$0xf]
    %v2500 = vld [vmem:[%s2483 + $0x40] sm:$0xf]
    %v2501 = vld [vmem:[%s2483 + $0x44] sm:$0xf]
    %v2502 = vld [vmem:[%s2483 + $0x48] sm:$0xf]
    %v2503 = vld [vmem:[%s2483 + $0x4c] sm:$0xf]
    %v2504 = vld [vmem:[%s2483 + $0x50] sm:$0xf]
    %v2505 = vld [vmem:[%s2483 + $0x54] sm:$0xf]
    %v2506 = vld [vmem:[%s2483 + $0x58] sm:$0xf]
    %v2507 = vld [vmem:[%s2483 + $0x5c] sm:$0xf]
    %v2508 = vld [vmem:[%s2483 + $0x60] sm:$0xf]
    %v2509 = vld [vmem:[%s2483 + $0x64] sm:$0xf]
    %v2510 = vld [vmem:[%s2483 + $0x68] sm:$0xf]
    %v2511 = vld [vmem:[%s2483 + $0x6c] sm:$0xf]
    %v2512 = vld [vmem:[%s2483 + $0x70] sm:$0xf]
    %v2513 = vld [vmem:[%s2483 + $0x74] sm:$0xf]
    %v2514 = vld [vmem:[%s2483 + $0x78] sm:$0xf]
    %v2515 = vld [vmem:[%s2483 + $0x7c] sm:$0xf]
    %v2516 = vld [vmem:[%s2483 + $0x80] sm:$0xf]
    %v2517 = vld [vmem:[%s2483 + $0x84] sm:$0xf]
    %v2518 = vld [vmem:[%s2483 + $0x88] sm:$0xf]
    %v2519 = vld [vmem:[%s2483 + $0x8c] sm:$0xf]
    %v2520 = vld [vmem:[%s2483 + $0x90] sm:$0xf]
    %v2521 = vld [vmem:[%s2483 + $0x94] sm:$0xf]
    %v2522 = vld [vmem:[%s2483 + $0x98] sm:$0xf]
    %v2523 = vld [vmem:[%s2483 + $0x9c] sm:$0xf]
    %v2524 = vld [vmem:[%s2483 + $0xa0] sm:$0xf]
    %v2525 = vld [vmem:[%s2483 + $0xa4] sm:$0xf]
    %v2526 = vld [vmem:[%s2483 + $0xa8] sm:$0x1]
    %v2570 = vunpack.c.l.b16 %v2484
    %v2571 = vunpack.c.l.b16 %v2485
    %v2572 = vunpack.c.l.b16 %v2486
    %v2573 = vunpack.c.l.b16 %v2487
    %v2574 = vunpack.c.l.b16 %v2488
    %v2575 = vunpack.c.l.b16 %v2489
    %v2576 = vunpack.c.l.b16 %v2490
    %v2577 = vunpack.c.l.b16 %v2491
    %v2578 = vunpack.c.l.b16 %v2492
    %v2579 = vunpack.c.l.b16 %v2493
    %v2580 = vunpack.c.l.b16 %v2494
    %v2581 = vunpack.c.l.b16 %v2495
    %v2582 = vunpack.c.l.b16 %v2496
    %v2583 = vunpack.c.l.b16 %v2497
    %v2584 = vunpack.c.l.b16 %v2498
    %v2585 = vunpack.c.l.b16 %v2499
    %v2586 = vunpack.c.l.b16 %v2500
    %v2587 = vunpack.c.l.b16 %v2501
    %v2588 = vunpack.c.l.b16 %v2502
    %v2589 = vunpack.c.l.b16 %v2503
    %v2590 = vunpack.c.l.b16 %v2504
    %v2591 = vunpack.c.l.b16 %v2505
    %v2592 = vunpack.c.l.b16 %v2506
    %v2593 = vunpack.c.l.b16 %v2507
    %v2594 = vunpack.c.l.b16 %v2508
    %v2595 = vunpack.c.l.b16 %v2509
    %v2596 = vunpack.c.l.b16 %v2510
    %v2597 = vunpack.c.l.b16 %v2511
    %v2598 = vunpack.c.l.b16 %v2512
    %v2599 = vunpack.c.l.b16 %v2513
    %v2600 = vunpack.c.l.b16 %v2514
    %v2601 = vunpack.c.l.b16 %v2515
    %v2602 = vunpack.c.l.b16 %v2516
    %v2603 = vunpack.c.l.b16 %v2517
    %v2604 = vunpack.c.l.b16 %v2518
    %v2605 = vunpack.c.l.b16 %v2519
    %v2606 = vunpack.c.l.b16 %v2520
    %v2607 = vunpack.c.l.b16 %v2521
    %v2608 = vunpack.c.l.b16 %v2522
    %v2609 = vunpack.c.l.b16 %v2523
    %v2610 = vunpack.c.l.b16 %v2524
    %v2611 = vunpack.c.l.b16 %v2525
    %v2612 = vunpack.c.l.b16 %v2526
    %v2613 = vpack.c.b16 %v2571, %v2570
    %v2614 = vpack.c.b16 %v2573, %v2572
    %v2615 = vpack.c.b16 %v2575, %v2574
    %v2616 = vpack.c.b16 %v2577, %v2576
    %v2617 = vpack.c.b16 %v2579, %v2578
    %v2618 = vpack.c.b16 %v2581, %v2580
    %v2619 = vpack.c.b16 %v2583, %v2582
    %v2620 = vpack.c.b16 %v2585, %v2584
    %v2621 = vpack.c.b16 %v2587, %v2586
    %v2622 = vpack.c.b16 %v2589, %v2588
    %v2623 = vpack.c.b16 %v2591, %v2590
    %v2624 = vpack.c.b16 %v2593, %v2592
    %v2625 = vpack.c.b16 %v2595, %v2594
    %v2626 = vpack.c.b16 %v2597, %v2596
    %v2627 = vpack.c.b16 %v2599, %v2598
    %v2628 = vpack.c.b16 %v2601, %v2600
    %v2629 = vpack.c.b16 %v2603, %v2602
    %v2630 = vpack.c.b16 %v2605, %v2604
    %v2631 = vpack.c.b16 %v2607, %v2606
    %v2632 = vpack.c.b16 %v2609, %v2608
    %v2633 = vpack.c.b16 %v2611, %v2610
    %v2634 = vpack.c.b16 %v2612, %v2612
    %v2657 = vsel %vm351, %v2634, 0
    %2659 = vmatprep.subr.bf16.mxu0 0
    %2660 = vmatpush1.bf16.msra.mxu0 %v2613
    %2661 = vmatprep.subr.bf16.mxu0 0
    %2662 = vmatpush1.bf16.msra.mxu0 %v2614
    %2663 = vmatprep.subr.bf16.mxu0 0
    %2664 = vmatpush1.bf16.msra.mxu0 %v2615
    %2665 = vmatprep.subr.bf16.mxu0 0
    %2666 = vmatpush1.bf16.msra.mxu0 %v2616
    %2667 = vmatprep.subr.bf16.mxu0 0
    %2668 = vmatpush1.bf16.msra.mxu0 %v2617
    %2669 = vmatprep.subr.bf16.mxu0 0
    %2670 = vmatpush1.bf16.msra.mxu0 %v2618
    %2671 = vmatprep.subr.bf16.mxu0 0
    %2672 = vmatpush1.bf16.msra.mxu0 %v2619
    %2673 = vmatprep.subr.bf16.mxu0 0
    %2674 = vmatpush1.bf16.msra.mxu0 %v2620
    %2675 = vmatprep.subr.bf16.mxu0 0
    %2676 = vmatpush1.bf16.msra.mxu0 %v2621
    %2677 = vmatprep.subr.bf16.mxu0 0
    %2678 = vmatpush1.bf16.msra.mxu0 %v2622
    %2679 = vmatprep.subr.bf16.mxu0 0
    %2680 = vmatpush1.bf16.msra.mxu0 %v2623
    %2681 = vmatprep.subr.bf16.mxu0 0
    %2682 = vmatpush1.bf16.msra.mxu0 %v2624
    %2683 = vmatprep.subr.bf16.mxu0 0
    %2684 = vmatpush1.bf16.msra.mxu0 %v2625
    %2685 = vmatprep.subr.bf16.mxu0 0
    %2686 = vmatpush1.bf16.msra.mxu0 %v2626
    %2687 = vmatprep.subr.bf16.mxu0 0
    %2688 = vmatpush1.bf16.msra.mxu0 %v2627
    %2689 = vmatprep.subr.bf16.mxu0 0
    %2690 = vmatpush1.bf16.msra.mxu0 %v2628
    %2691 = vmatprep.mubr.bf16.mxu0 %v173
    %2692 = vmatmul.mubr.bf16.gmra.mrb[0].mxu0 %v172
    %v2693 = vpop.f32.mrb[0].mxu0
    %v2694 = vadd.f32 0.0, %v2693
    %v2695 = vpop.f32.mrb[0].mxu0
    %v2696 = vpop.f32.mrb[0].mxu0
    %v2697 = vpop.f32.mrb[0].mxu0
    %2698 = vdwg.mxu0
    %2699 = vmatprep.subr.bf16.mxu0 0
    %2700 = vmatpush1.bf16.msra.mxu0 %v2629
    %2701 = vmatprep.subr.bf16.mxu0 0
    %2702 = vmatpush1.bf16.msra.mxu0 %v2630
    %2703 = vmatprep.subr.bf16.mxu0 0
    %2704 = vmatpush1.bf16.msra.mxu0 %v2631
    %2705 = vmatprep.subr.bf16.mxu0 0
    %2706 = vmatpush1.bf16.msra.mxu0 %v2632
    %2707 = vmatprep.subr.bf16.mxu0 0
    %2708 = vmatpush1.bf16.msra.mxu0 %v2633
    %2709 = vmatprep.subr.bf16.mxu0 0
    %2710 = vmatpush1.bf16.msra.mxu0 %v2657
    %2711 = vmatprep.subr.bf16.mxu0 0
    %2712 = vmatpush1.bf16.msra.mxu0 0
    %2713 = vmatprep.subr.bf16.mxu0 0
    %2714 = vmatpush1.bf16.msra.mxu0 0
    %2715 = vmatprep.subr.bf16.mxu0 0
    %2716 = vmatpush1.bf16.msra.mxu0 0
    %2717 = vmatprep.subr.bf16.mxu0 0
    %2718 = vmatpush1.bf16.msra.mxu0 0
    %2719 = vmatprep.subr.bf16.mxu0 0
    %2720 = vmatpush1.bf16.msra.mxu0 0
    %2721 = vmatprep.subr.bf16.mxu0 0
    %2722 = vmatpush1.bf16.msra.mxu0 0
    %2723 = vmatprep.subr.bf16.mxu0 0
    %2724 = vmatpush1.bf16.msra.mxu0 0
    %2725 = vmatprep.subr.bf16.mxu0 0
    %2726 = vmatpush1.bf16.msra.mxu0 0
    %2727 = vmatprep.subr.bf16.mxu0 0
    %2728 = vmatpush1.bf16.msra.mxu0 0
    %2729 = vmatprep.subr.bf16.mxu0 0
    %2730 = vmatpush1.bf16.msra.mxu0 0
    %2731 = vmatprep.mubr.bf16.mxu0 0
    %2732 = vmatmul.mubr.bf16.gmra.mrb[0].mxu0 %v349
    %v2733 = vpop.f32.mrb[0].mxu0
    %v2734 = vadd.f32 %v2694, %v2733
    %v2735 = vpop.f32.mrb[0].mxu0
    %v2736 = vpop.f32.mrb[0].mxu0
    %v2737 = vpop.f32.mrb[0].mxu0
    %2738 = vdwg.mxu0
    %s2739 = scalar_lea.vmem %s3, 1720
    %v2740 = vld [vmem:[%s2739] sm:$0xf]
    %v2741 = vld [vmem:[%s2739 + $0x4] sm:$0xf]
    %v2742 = vld [vmem:[%s2739 + $0x8] sm:$0xf]
    %v2743 = vld [vmem:[%s2739 + $0xc] sm:$0xf]
    %v2744 = vld [vmem:[%s2739 + $0x10] sm:$0xf]
    %v2745 = vld [vmem:[%s2739 + $0x14] sm:$0xf]
    %v2746 = vld [vmem:[%s2739 + $0x18] sm:$0xf]
    %v2747 = vld [vmem:[%s2739 + $0x1c] sm:$0xf]
    %v2748 = vld [vmem:[%s2739 + $0x20] sm:$0xf]
    %v2749 = vld [vmem:[%s2739 + $0x24] sm:$0xf]
    %v2750 = vld [vmem:[%s2739 + $0x28] sm:$0xf]
    %v2751 = vld [vmem:[%s2739 + $0x2c] sm:$0xf]
    %v2752 = vld [vmem:[%s2739 + $0x30] sm:$0xf]
    %v2753 = vld [vmem:[%s2739 + $0x34] sm:$0xf]
    %v2754 = vld [vmem:[%s2739 + $0x38] sm:$0xf]
    %v2755 = vld [vmem:[%s2739 + $0x3c] sm:$0xf]
    %v2756 = vld [vmem:[%s2739 + $0x40] sm:$0xf]
    %v2757 = vld [vmem:[%s2739 + $0x44] sm:$0xf]
    %v2758 = vld [vmem:[%s2739 + $0x48] sm:$0xf]
    %v2759 = vld [vmem:[%s2739 + $0x4c] sm:$0xf]
    %v2760 = vld [vmem:[%s2739 + $0x50] sm:$0xf]
    %v2761 = vld [vmem:[%s2739 + $0x54] sm:$0xf]
    %v2762 = vld [vmem:[%s2739 + $0x58] sm:$0xf]
    %v2763 = vld [vmem:[%s2739 + $0x5c] sm:$0xf]
    %v2764 = vld [vmem:[%s2739 + $0x60] sm:$0xf]
    %v2765 = vld [vmem:[%s2739 + $0x64] sm:$0xf]
    %v2766 = vld [vmem:[%s2739 + $0x68] sm:$0xf]
    %v2767 = vld [vmem:[%s2739 + $0x6c] sm:$0xf]
    %v2768 = vld [vmem:[%s2739 + $0x70] sm:$0xf]
    %v2769 = vld [vmem:[%s2739 + $0x74] sm:$0xf]
    %v2770 = vld [vmem:[%s2739 + $0x78] sm:$0xf]
    %v2771 = vld [vmem:[%s2739 + $0x7c] sm:$0xf]
    %v2772 = vld [vmem:[%s2739 + $0x80] sm:$0xf]
    %v2773 = vld [vmem:[%s2739 + $0x84] sm:$0xf]
    %v2774 = vld [vmem:[%s2739 + $0x88] sm:$0xf]
    %v2775 = vld [vmem:[%s2739 + $0x8c] sm:$0xf]
    %v2776 = vld [vmem:[%s2739 + $0x90] sm:$0xf]
    %v2777 = vld [vmem:[%s2739 + $0x94] sm:$0xf]
    %v2778 = vld [vmem:[%s2739 + $0x98] sm:$0xf]
    %v2779 = vld [vmem:[%s2739 + $0x9c] sm:$0xf]
    %v2780 = vld [vmem:[%s2739 + $0xa0] sm:$0xf]
    %v2781 = vld [vmem:[%s2739 + $0xa4] sm:$0xf]
    %v2782 = vld [vmem:[%s2739 + $0xa8] sm:$0x1]
    %v2826 = vunpack.c.l.b16 %v2740
    %v2827 = vunpack.c.l.b16 %v2741
    %v2828 = vunpack.c.l.b16 %v2742
    %v2829 = vunpack.c.l.b16 %v2743
    %v2830 = vunpack.c.l.b16 %v2744
    %v2831 = vunpack.c.l.b16 %v2745
    %v2832 = vunpack.c.l.b16 %v2746
    %v2833 = vunpack.c.l.b16 %v2747
    %v2834 = vunpack.c.l.b16 %v2748
    %v2835 = vunpack.c.l.b16 %v2749
    %v2836 = vunpack.c.l.b16 %v2750
    %v2837 = vunpack.c.l.b16 %v2751
    %v2838 = vunpack.c.l.b16 %v2752
    %v2839 = vunpack.c.l.b16 %v2753
    %v2840 = vunpack.c.l.b16 %v2754
    %v2841 = vunpack.c.l.b16 %v2755
    %v2842 = vunpack.c.l.b16 %v2756
    %v2843 = vunpack.c.l.b16 %v2757
    %v2844 = vunpack.c.l.b16 %v2758
    %v2845 = vunpack.c.l.b16 %v2759
    %v2846 = vunpack.c.l.b16 %v2760
    %v2847 = vunpack.c.l.b16 %v2761
    %v2848 = vunpack.c.l.b16 %v2762
    %v2849 = vunpack.c.l.b16 %v2763
    %v2850 = vunpack.c.l.b16 %v2764
    %v2851 = vunpack.c.l.b16 %v2765
    %v2852 = vunpack.c.l.b16 %v2766
    %v2853 = vunpack.c.l.b16 %v2767
    %v2854 = vunpack.c.l.b16 %v2768
    %v2855 = vunpack.c.l.b16 %v2769
    %v2856 = vunpack.c.l.b16 %v2770
    %v2857 = vunpack.c.l.b16 %v2771
    %v2858 = vunpack.c.l.b16 %v2772
    %v2859 = vunpack.c.l.b16 %v2773
    %v2860 = vunpack.c.l.b16 %v2774
    %v2861 = vunpack.c.l.b16 %v2775
    %v2862 = vunpack.c.l.b16 %v2776
    %v2863 = vunpack.c.l.b16 %v2777
    %v2864 = vunpack.c.l.b16 %v2778
    %v2865 = vunpack.c.l.b16 %v2779
    %v2866 = vunpack.c.l.b16 %v2780
    %v2867 = vunpack.c.l.b16 %v2781
    %v2868 = vunpack.c.l.b16 %v2782
    %v2869 = vpack.c.b16 %v2827, %v2826
    %v2870 = vpack.c.b16 %v2829, %v2828
    %v2871 = vpack.c.b16 %v2831, %v2830
    %v2872 = vpack.c.b16 %v2833, %v2832
    %v2873 = vpack.c.b16 %v2835, %v2834
    %v2874 = vpack.c.b16 %v2837, %v2836
    %v2875 = vpack.c.b16 %v2839, %v2838
    %v2876 = vpack.c.b16 %v2841, %v2840
    %v2877 = vpack.c.b16 %v2843, %v2842
    %v2878 = vpack.c.b16 %v2845, %v2844
    %v2879 = vpack.c.b16 %v2847, %v2846
    %v2880 = vpack.c.b16 %v2849, %v2848
    %v2881 = vpack.c.b16 %v2851, %v2850
    %v2882 = vpack.c.b16 %v2853, %v2852
    %v2883 = vpack.c.b16 %v2855, %v2854
    %v2884 = vpack.c.b16 %v2857, %v2856
    %v2885 = vpack.c.b16 %v2859, %v2858
    %v2886 = vpack.c.b16 %v2861, %v2860
    %v2887 = vpack.c.b16 %v2863, %v2862
    %v2888 = vpack.c.b16 %v2865, %v2864
    %v2889 = vpack.c.b16 %v2867, %v2866
    %v2890 = vpack.c.b16 %v2868, %v2868
    %v2913 = vsel %vm351, %v2890, 0
    %2915 = vmatprep.subr.bf16.mxu0 0
    %2916 = vmatpush1.bf16.msra.mxu0 %v2869
    %2917 = vmatprep.subr.bf16.mxu0 0
    %2918 = vmatpush1.bf16.msra.mxu0 %v2870
    %2919 = vmatprep.subr.bf16.mxu0 0
    %2920 = vmatpush1.bf16.msra.mxu0 %v2871
    %2921 = vmatprep.subr.bf16.mxu0 0
    %2922 = vmatpush1.bf16.msra.mxu0 %v2872
    %2923 = vmatprep.subr.bf16.mxu0 0
    %2924 = vmatpush1.bf16.msra.mxu0 %v2873
    %2925 = vmatprep.subr.bf16.mxu0 0
    %2926 = vmatpush1.bf16.msra.mxu0 %v2874
    %2927 = vmatprep.subr.bf16.mxu0 0
    %2928 = vmatpush1.bf16.msra.mxu0 %v2875
    %2929 = vmatprep.subr.bf16.mxu0 0
    %2930 = vmatpush1.bf16.msra.mxu0 %v2876
    %2931 = vmatprep.subr.bf16.mxu0 0
    %2932 = vmatpush1.bf16.msra.mxu0 %v2877
    %2933 = vmatprep.subr.bf16.mxu0 0
    %2934 = vmatpush1.bf16.msra.mxu0 %v2878
    %2935 = vmatprep.subr.bf16.mxu0 0
    %2936 = vmatpush1.bf16.msra.mxu0 %v2879
    %2937 = vmatprep.subr.bf16.mxu0 0
    %2938 = vmatpush1.bf16.msra.mxu0 %v2880
    %2939 = vmatprep.subr.bf16.mxu0 0
    %2940 = vmatpush1.bf16.msra.mxu0 %v2881
    %2941 = vmatprep.subr.bf16.mxu0 0
    %2942 = vmatpush1.bf16.msra.mxu0 %v2882
    %2943 = vmatprep.subr.bf16.mxu0 0
    %2944 = vmatpush1.bf16.msra.mxu0 %v2883
    %2945 = vmatprep.subr.bf16.mxu0 0
    %2946 = vmatpush1.bf16.msra.mxu0 %v2884
    %2947 = vmatprep.mubr.bf16.mxu0 %v173
    %2948 = vmatmul.mubr.bf16.gmra.mrb[0].mxu0 %v172
    %v2949 = vpop.f32.mrb[0].mxu0
    %v2950 = vadd.f32 0.0, %v2949
    %v2951 = vpop.f32.mrb[0].mxu0
    %v2952 = vpop.f32.mrb[0].mxu0
    %v2953 = vpop.f32.mrb[0].mxu0
    %2954 = vdwg.mxu0
    %2955 = vmatprep.subr.bf16.mxu0 0
    %2956 = vmatpush1.bf16.msra.mxu0 %v2885
    %2957 = vmatprep.subr.bf16.mxu0 0
    %2958 = vmatpush1.bf16.msra.mxu0 %v2886
    %2959 = vmatprep.subr.bf16.mxu0 0
    %2960 = vmatpush1.bf16.msra.mxu0 %v2887
    %2961 = vmatprep.subr.bf16.mxu0 0
    %2962 = vmatpush1.bf16.msra.mxu0 %v2888
    %2963 = vmatprep.subr.bf16.mxu0 0
    %2964 = vmatpush1.bf16.msra.mxu0 %v2889
    %2965 = vmatprep.subr.bf16.mxu0 0
    %2966 = vmatpush1.bf16.msra.mxu0 %v2913
    %2967 = vmatprep.subr.bf16.mxu0 0
    %2968 = vmatpush1.bf16.msra.mxu0 0
    %2969 = vmatprep.subr.bf16.mxu0 0
    %2970 = vmatpush1.bf16.msra.mxu0 0
    %2971 = vmatprep.subr.bf16.mxu0 0
    %2972 = vmatpush1.bf16.msra.mxu0 0
    %2973 = vmatprep.subr.bf16.mxu0 0
    %2974 = vmatpush1.bf16.msra.mxu0 0
    %2975 = vmatprep.subr.bf16.mxu0 0
    %2976 = vmatpush1.bf16.msra.mxu0 0
    %2977 = vmatprep.subr.bf16.mxu0 0
    %2978 = vmatpush1.bf16.msra.mxu0 0
    %2979 = vmatprep.subr.bf16.mxu0 0
    %2980 = vmatpush1.bf16.msra.mxu0 0
    %2981 = vmatprep.subr.bf16.mxu0 0
    %2982 = vmatpush1.bf16.msra.mxu0 0
    %2983 = vmatprep.subr.bf16.mxu0 0
    %2984 = vmatpush1.bf16.msra.mxu0 0
    %2985 = vmatprep.subr.bf16.mxu0 0
    %2986 = vmatpush1.bf16.msra.mxu0 0
    %2987 = vmatprep.mubr.bf16.mxu0 0
    %2988 = vmatmul.mubr.bf16.gmra.mrb[0].mxu0 %v349
    %v2989 = vpop.f32.mrb[0].mxu0
    %v2990 = vadd.f32 %v2950, %v2989
    %v2991 = vpop.f32.mrb[0].mxu0
    %v2992 = vpop.f32.mrb[0].mxu0
    %v2993 = vpop.f32.mrb[0].mxu0
    %2994 = vdwg.mxu0
    %s2995 = scalar_lea.vmem %s3, 1892
    %v2996 = vld [vmem:[%s2995] sm:$0xf]
    %v2997 = vld [vmem:[%s2995 + $0x4] sm:$0xf]
    %v2998 = vld [vmem:[%s2995 + $0x8] sm:$0xf]
    %v2999 = vld [vmem:[%s2995 + $0xc] sm:$0xf]
    %v3000 = vld [vmem:[%s2995 + $0x10] sm:$0xf]
    %v3001 = vld [vmem:[%s2995 + $0x14] sm:$0xf]
    %v3002 = vld [vmem:[%s2995 + $0x18] sm:$0xf]
    %v3003 = vld [vmem:[%s2995 + $0x1c] sm:$0xf]
    %v3004 = vld [vmem:[%s2995 + $0x20] sm:$0xf]
    %v3005 = vld [vmem:[%s2995 + $0x24] sm:$0xf]
    %v3006 = vld [vmem:[%s2995 + $0x28] sm:$0xf]
    %v3007 = vld [vmem:[%s2995 + $0x2c] sm:$0xf]
    %v3008 = vld [vmem:[%s2995 + $0x30] sm:$0xf]
    %v3009 = vld [vmem:[%s2995 + $0x34] sm:$0xf]
    %v3010 = vld [vmem:[%s2995 + $0x38] sm:$0xf]
    %v3011 = vld [vmem:[%s2995 + $0x3c] sm:$0xf]
    %v3012 = vld [vmem:[%s2995 + $0x40] sm:$0xf]
    %v3013 = vld [vmem:[%s2995 + $0x44] sm:$0xf]
    %v3014 = vld [vmem:[%s2995 + $0x48] sm:$0xf]
    %v3015 = vld [vmem:[%s2995 + $0x4c] sm:$0xf]
    %v3016 = vld [vmem:[%s2995 + $0x50] sm:$0xf]
    %v3017 = vld [vmem:[%s2995 + $0x54] sm:$0xf]
    %v3018 = vld [vmem:[%s2995 + $0x58] sm:$0xf]
    %v3019 = vld [vmem:[%s2995 + $0x5c] sm:$0xf]
    %v3020 = vld [vmem:[%s2995 + $0x60] sm:$0xf]
    %v3021 = vld [vmem:[%s2995 + $0x64] sm:$0xf]
    %v3022 = vld [vmem:[%s2995 + $0x68] sm:$0xf]
    %v3023 = vld [vmem:[%s2995 + $0x6c] sm:$0xf]
    %v3024 = vld [vmem:[%s2995 + $0x70] sm:$0xf]
    %v3025 = vld [vmem:[%s2995 + $0x74] sm:$0xf]
    %v3026 = vld [vmem:[%s2995 + $0x78] sm:$0xf]
    %v3027 = vld [vmem:[%s2995 + $0x7c] sm:$0xf]
    %v3028 = vld [vmem:[%s2995 + $0x80] sm:$0xf]
    %v3029 = vld [vmem:[%s2995 + $0x84] sm:$0xf]
    %v3030 = vld [vmem:[%s2995 + $0x88] sm:$0xf]
    %v3031 = vld [vmem:[%s2995 + $0x8c] sm:$0xf]
    %v3032 = vld [vmem:[%s2995 + $0x90] sm:$0xf]
    %v3033 = vld [vmem:[%s2995 + $0x94] sm:$0xf]
    %v3034 = vld [vmem:[%s2995 + $0x98] sm:$0xf]
    %v3035 = vld [vmem:[%s2995 + $0x9c] sm:$0xf]
    %v3036 = vld [vmem:[%s2995 + $0xa0] sm:$0xf]
    %v3037 = vld [vmem:[%s2995 + $0xa4] sm:$0xf]
    %v3038 = vld [vmem:[%s2995 + $0xa8] sm:$0x1]
    %v3082 = vunpack.c.l.b16 %v2996
    %v3083 = vunpack.c.l.b16 %v2997
    %v3084 = vunpack.c.l.b16 %v2998
    %v3085 = vunpack.c.l.b16 %v2999
    %v3086 = vunpack.c.l.b16 %v3000
    %v3087 = vunpack.c.l.b16 %v3001
    %v3088 = vunpack.c.l.b16 %v3002
    %v3089 = vunpack.c.l.b16 %v3003
    %v3090 = vunpack.c.l.b16 %v3004
    %v3091 = vunpack.c.l.b16 %v3005
    %v3092 = vunpack.c.l.b16 %v3006
    %v3093 = vunpack.c.l.b16 %v3007
    %v3094 = vunpack.c.l.b16 %v3008
    %v3095 = vunpack.c.l.b16 %v3009
    %v3096 = vunpack.c.l.b16 %v3010
    %v3097 = vunpack.c.l.b16 %v3011
    %v3098 = vunpack.c.l.b16 %v3012
    %v3099 = vunpack.c.l.b16 %v3013
    %v3100 = vunpack.c.l.b16 %v3014
    %v3101 = vunpack.c.l.b16 %v3015
    %v3102 = vunpack.c.l.b16 %v3016
    %v3103 = vunpack.c.l.b16 %v3017
    %v3104 = vunpack.c.l.b16 %v3018
    %v3105 = vunpack.c.l.b16 %v3019
    %v3106 = vunpack.c.l.b16 %v3020
    %v3107 = vunpack.c.l.b16 %v3021
    %v3108 = vunpack.c.l.b16 %v3022
    %v3109 = vunpack.c.l.b16 %v3023
    %v3110 = vunpack.c.l.b16 %v3024
    %v3111 = vunpack.c.l.b16 %v3025
    %v3112 = vunpack.c.l.b16 %v3026
    %v3113 = vunpack.c.l.b16 %v3027
    %v3114 = vunpack.c.l.b16 %v3028
    %v3115 = vunpack.c.l.b16 %v3029
    %v3116 = vunpack.c.l.b16 %v3030
    %v3117 = vunpack.c.l.b16 %v3031
    %v3118 = vunpack.c.l.b16 %v3032
    %v3119 = vunpack.c.l.b16 %v3033
    %v3120 = vunpack.c.l.b16 %v3034
    %v3121 = vunpack.c.l.b16 %v3035
    %v3122 = vunpack.c.l.b16 %v3036
    %v3123 = vunpack.c.l.b16 %v3037
    %v3124 = vunpack.c.l.b16 %v3038
    %v3125 = vpack.c.b16 %v3083, %v3082
    %v3126 = vpack.c.b16 %v3085, %v3084
    %v3127 = vpack.c.b16 %v3087, %v3086
    %v3128 = vpack.c.b16 %v3089, %v3088
    %v3129 = vpack.c.b16 %v3091, %v3090
    %v3130 = vpack.c.b16 %v3093, %v3092
    %v3131 = vpack.c.b16 %v3095, %v3094
    %v3132 = vpack.c.b16 %v3097, %v3096
    %v3133 = vpack.c.b16 %v3099, %v3098
    %v3134 = vpack.c.b16 %v3101, %v3100
    %v3135 = vpack.c.b16 %v3103, %v3102
    %v3136 = vpack.c.b16 %v3105, %v3104
    %v3137 = vpack.c.b16 %v3107, %v3106
    %v3138 = vpack.c.b16 %v3109, %v3108
    %v3139 = vpack.c.b16 %v3111, %v3110
    %v3140 = vpack.c.b16 %v3113, %v3112
    %v3141 = vpack.c.b16 %v3115, %v3114
    %v3142 = vpack.c.b16 %v3117, %v3116
    %v3143 = vpack.c.b16 %v3119, %v3118
    %v3144 = vpack.c.b16 %v3121, %v3120
    %v3145 = vpack.c.b16 %v3123, %v3122
    %v3146 = vpack.c.b16 %v3124, %v3124
    %v3169 = vsel %vm351, %v3146, 0
    %3171 = vmatprep.subr.bf16.mxu0 0
    %3172 = vmatpush1.bf16.msra.mxu0 %v3125
    %3173 = vmatprep.subr.bf16.mxu0 0
    %3174 = vmatpush1.bf16.msra.mxu0 %v3126
    %3175 = vmatprep.subr.bf16.mxu0 0
    %3176 = vmatpush1.bf16.msra.mxu0 %v3127
    %3177 = vmatprep.subr.bf16.mxu0 0
    %3178 = vmatpush1.bf16.msra.mxu0 %v3128
    %3179 = vmatprep.subr.bf16.mxu0 0
    %3180 = vmatpush1.bf16.msra.mxu0 %v3129
    %3181 = vmatprep.subr.bf16.mxu0 0
    %3182 = vmatpush1.bf16.msra.mxu0 %v3130
    %3183 = vmatprep.subr.bf16.mxu0 0
    %3184 = vmatpush1.bf16.msra.mxu0 %v3131
    %3185 = vmatprep.subr.bf16.mxu0 0
    %3186 = vmatpush1.bf16.msra.mxu0 %v3132
    %3187 = vmatprep.subr.bf16.mxu0 0
    %3188 = vmatpush1.bf16.msra.mxu0 %v3133
    %3189 = vmatprep.subr.bf16.mxu0 0
    %3190 = vmatpush1.bf16.msra.mxu0 %v3134
    %3191 = vmatprep.subr.bf16.mxu0 0
    %3192 = vmatpush1.bf16.msra.mxu0 %v3135
    %3193 = vmatprep.subr.bf16.mxu0 0
    %3194 = vmatpush1.bf16.msra.mxu0 %v3136
    %3195 = vmatprep.subr.bf16.mxu0 0
    %3196 = vmatpush1.bf16.msra.mxu0 %v3137
    %3197 = vmatprep.subr.bf16.mxu0 0
    %3198 = vmatpush1.bf16.msra.mxu0 %v3138
    %3199 = vmatprep.subr.bf16.mxu0 0
    %3200 = vmatpush1.bf16.msra.mxu0 %v3139
    %3201 = vmatprep.subr.bf16.mxu0 0
    %3202 = vmatpush1.bf16.msra.mxu0 %v3140
    %3203 = vmatprep.mubr.bf16.mxu0 %v173
    %3204 = vmatmul.mubr.bf16.gmra.mrb[0].mxu0 %v172
    %v3205 = vpop.f32.mrb[0].mxu0
    %v3206 = vadd.f32 0.0, %v3205
    %v3207 = vpop.f32.mrb[0].mxu0
    %v3208 = vpop.f32.mrb[0].mxu0
    %v3209 = vpop.f32.mrb[0].mxu0
    %3210 = vdwg.mxu0
    %3211 = vmatprep.subr.bf16.mxu0 0
    %3212 = vmatpush1.bf16.msra.mxu0 %v3141
    %3213 = vmatprep.subr.bf16.mxu0 0
    %3214 = vmatpush1.bf16.msra.mxu0 %v3142
    %3215 = vmatprep.subr.bf16.mxu0 0
    %3216 = vmatpush1.bf16.msra.mxu0 %v3143
    %3217 = vmatprep.subr.bf16.mxu0 0
    %3218 = vmatpush1.bf16.msra.mxu0 %v3144
    %3219 = vmatprep.subr.bf16.mxu0 0
    %3220 = vmatpush1.bf16.msra.mxu0 %v3145
    %3221 = vmatprep.subr.bf16.mxu0 0
    %3222 = vmatpush1.bf16.msra.mxu0 %v3169
    %3223 = vmatprep.subr.bf16.mxu0 0
    %3224 = vmatpush1.bf16.msra.mxu0 0
    %3225 = vmatprep.subr.bf16.mxu0 0
    %3226 = vmatpush1.bf16.msra.mxu0 0
    %3227 = vmatprep.subr.bf16.mxu0 0
    %3228 = vmatpush1.bf16.msra.mxu0 0
    %3229 = vmatprep.subr.bf16.mxu0 0
    %3230 = vmatpush1.bf16.msra.mxu0 0
    %3231 = vmatprep.subr.bf16.mxu0 0
    %3232 = vmatpush1.bf16.msra.mxu0 0
    %3233 = vmatprep.subr.bf16.mxu0 0
    %3234 = vmatpush1.bf16.msra.mxu0 0
    %3235 = vmatprep.subr.bf16.mxu0 0
    %3236 = vmatpush1.bf16.msra.mxu0 0
    %3237 = vmatprep.subr.bf16.mxu0 0
    %3238 = vmatpush1.bf16.msra.mxu0 0
    %3239 = vmatprep.subr.bf16.mxu0 0
    %3240 = vmatpush1.bf16.msra.mxu0 0
    %3241 = vmatprep.subr.bf16.mxu0 0
    %3242 = vmatpush1.bf16.msra.mxu0 0
    %3243 = vmatprep.mubr.bf16.mxu0 0
    %3244 = vmatmul.mubr.bf16.gmra.mrb[0].mxu0 %v349
    %v3245 = vpop.f32.mrb[0].mxu0
    %v3246 = vadd.f32 %v3206, %v3245
    %v3247 = vpop.f32.mrb[0].mxu0
    %v3248 = vpop.f32.mrb[0].mxu0
    %v3249 = vpop.f32.mrb[0].mxu0
    %3250 = vdwg.mxu0
    %s3251 = scalar_lea.vmem %s3, 2064
    %v3252 = vld [vmem:[%s3251] sm:$0xf]
    %v3253 = vld [vmem:[%s3251 + $0x4] sm:$0xf]
    %v3254 = vld [vmem:[%s3251 + $0x8] sm:$0xf]
    %v3255 = vld [vmem:[%s3251 + $0xc] sm:$0xf]
    %v3256 = vld [vmem:[%s3251 + $0x10] sm:$0xf]
    %v3257 = vld [vmem:[%s3251 + $0x14] sm:$0xf]
    %v3258 = vld [vmem:[%s3251 + $0x18] sm:$0xf]
    %v3259 = vld [vmem:[%s3251 + $0x1c] sm:$0xf]
    %v3260 = vld [vmem:[%s3251 + $0x20] sm:$0xf]
    %v3261 = vld [vmem:[%s3251 + $0x24] sm:$0xf]
    %v3262 = vld [vmem:[%s3251 + $0x28] sm:$0xf]
    %v3263 = vld [vmem:[%s3251 + $0x2c] sm:$0xf]
    %v3264 = vld [vmem:[%s3251 + $0x30] sm:$0xf]
    %v3265 = vld [vmem:[%s3251 + $0x34] sm:$0xf]
    %v3266 = vld [vmem:[%s3251 + $0x38] sm:$0xf]
    %v3267 = vld [vmem:[%s3251 + $0x3c] sm:$0xf]
    %v3268 = vld [vmem:[%s3251 + $0x40] sm:$0xf]
    %v3269 = vld [vmem:[%s3251 + $0x44] sm:$0xf]
    %v3270 = vld [vmem:[%s3251 + $0x48] sm:$0xf]
    %v3271 = vld [vmem:[%s3251 + $0x4c] sm:$0xf]
    %v3272 = vld [vmem:[%s3251 + $0x50] sm:$0xf]
    %v3273 = vld [vmem:[%s3251 + $0x54] sm:$0xf]
    %v3274 = vld [vmem:[%s3251 + $0x58] sm:$0xf]
    %v3275 = vld [vmem:[%s3251 + $0x5c] sm:$0xf]
    %v3276 = vld [vmem:[%s3251 + $0x60] sm:$0xf]
    %v3277 = vld [vmem:[%s3251 + $0x64] sm:$0xf]
    %v3278 = vld [vmem:[%s3251 + $0x68] sm:$0xf]
    %v3279 = vld [vmem:[%s3251 + $0x6c] sm:$0xf]
    %v3280 = vld [vmem:[%s3251 + $0x70] sm:$0xf]
    %v3281 = vld [vmem:[%s3251 + $0x74] sm:$0xf]
    %v3282 = vld [vmem:[%s3251 + $0x78] sm:$0xf]
    %v3283 = vld [vmem:[%s3251 + $0x7c] sm:$0xf]
    %v3284 = vld [vmem:[%s3251 + $0x80] sm:$0xf]
    %v3285 = vld [vmem:[%s3251 + $0x84] sm:$0xf]
    %v3286 = vld [vmem:[%s3251 + $0x88] sm:$0xf]
    %v3287 = vld [vmem:[%s3251 + $0x8c] sm:$0xf]
    %v3288 = vld [vmem:[%s3251 + $0x90] sm:$0xf]
    %v3289 = vld [vmem:[%s3251 + $0x94] sm:$0xf]
    %v3290 = vld [vmem:[%s3251 + $0x98] sm:$0xf]
    %v3291 = vld [vmem:[%s3251 + $0x9c] sm:$0xf]
    %v3292 = vld [vmem:[%s3251 + $0xa0] sm:$0xf]
    %v3293 = vld [vmem:[%s3251 + $0xa4] sm:$0xf]
    %v3294 = vld [vmem:[%s3251 + $0xa8] sm:$0x1]
    %v3338 = vunpack.c.l.b16 %v3252
    %v3339 = vunpack.c.l.b16 %v3253
    %v3340 = vunpack.c.l.b16 %v3254
    %v3341 = vunpack.c.l.b16 %v3255
    %v3342 = vunpack.c.l.b16 %v3256
    %v3343 = vunpack.c.l.b16 %v3257
    %v3344 = vunpack.c.l.b16 %v3258
    %v3345 = vunpack.c.l.b16 %v3259
    %v3346 = vunpack.c.l.b16 %v3260
    %v3347 = vunpack.c.l.b16 %v3261
    %v3348 = vunpack.c.l.b16 %v3262
    %v3349 = vunpack.c.l.b16 %v3263
    %v3350 = vunpack.c.l.b16 %v3264
    %v3351 = vunpack.c.l.b16 %v3265
    %v3352 = vunpack.c.l.b16 %v3266
    %v3353 = vunpack.c.l.b16 %v3267
    %v3354 = vunpack.c.l.b16 %v3268
    %v3355 = vunpack.c.l.b16 %v3269
    %v3356 = vunpack.c.l.b16 %v3270
    %v3357 = vunpack.c.l.b16 %v3271
    %v3358 = vunpack.c.l.b16 %v3272
    %v3359 = vunpack.c.l.b16 %v3273
    %v3360 = vunpack.c.l.b16 %v3274
    %v3361 = vunpack.c.l.b16 %v3275
    %v3362 = vunpack.c.l.b16 %v3276
    %v3363 = vunpack.c.l.b16 %v3277
    %v3364 = vunpack.c.l.b16 %v3278
    %v3365 = vunpack.c.l.b16 %v3279
    %v3366 = vunpack.c.l.b16 %v3280
    %v3367 = vunpack.c.l.b16 %v3281
    %v3368 = vunpack.c.l.b16 %v3282
    %v3369 = vunpack.c.l.b16 %v3283
    %v3370 = vunpack.c.l.b16 %v3284
    %v3371 = vunpack.c.l.b16 %v3285
    %v3372 = vunpack.c.l.b16 %v3286
    %v3373 = vunpack.c.l.b16 %v3287
    %v3374 = vunpack.c.l.b16 %v3288
    %v3375 = vunpack.c.l.b16 %v3289
    %v3376 = vunpack.c.l.b16 %v3290
    %v3377 = vunpack.c.l.b16 %v3291
    %v3378 = vunpack.c.l.b16 %v3292
    %v3379 = vunpack.c.l.b16 %v3293
    %v3380 = vunpack.c.l.b16 %v3294
    %v3381 = vpack.c.b16 %v3339, %v3338
    %v3382 = vpack.c.b16 %v3341, %v3340
    %v3383 = vpack.c.b16 %v3343, %v3342
    %v3384 = vpack.c.b16 %v3345, %v3344
    %v3385 = vpack.c.b16 %v3347, %v3346
    %v3386 = vpack.c.b16 %v3349, %v3348
    %v3387 = vpack.c.b16 %v3351, %v3350
    %v3388 = vpack.c.b16 %v3353, %v3352
    %v3389 = vpack.c.b16 %v3355, %v3354
    %v3390 = vpack.c.b16 %v3357, %v3356
    %v3391 = vpack.c.b16 %v3359, %v3358
    %v3392 = vpack.c.b16 %v3361, %v3360
    %v3393 = vpack.c.b16 %v3363, %v3362
    %v3394 = vpack.c.b16 %v3365, %v3364
    %v3395 = vpack.c.b16 %v3367, %v3366
    %v3396 = vpack.c.b16 %v3369, %v3368
    %v3397 = vpack.c.b16 %v3371, %v3370
    %v3398 = vpack.c.b16 %v3373, %v3372
    %v3399 = vpack.c.b16 %v3375, %v3374
    %v3400 = vpack.c.b16 %v3377, %v3376
    %v3401 = vpack.c.b16 %v3379, %v3378
    %v3402 = vpack.c.b16 %v3380, %v3380
    %v3425 = vsel %vm351, %v3402, 0
    %3427 = vmatprep.subr.bf16.mxu0 0
    %3428 = vmatpush1.bf16.msra.mxu0 %v3381
    %3429 = vmatprep.subr.bf16.mxu0 0
    %3430 = vmatpush1.bf16.msra.mxu0 %v3382
    %3431 = vmatprep.subr.bf16.mxu0 0
    %3432 = vmatpush1.bf16.msra.mxu0 %v3383
    %3433 = vmatprep.subr.bf16.mxu0 0
    %3434 = vmatpush1.bf16.msra.mxu0 %v3384
    %3435 = vmatprep.subr.bf16.mxu0 0
    %3436 = vmatpush1.bf16.msra.mxu0 %v3385
    %3437 = vmatprep.subr.bf16.mxu0 0
    %3438 = vmatpush1.bf16.msra.mxu0 %v3386
    %3439 = vmatprep.subr.bf16.mxu0 0
    %3440 = vmatpush1.bf16.msra.mxu0 %v3387
    %3441 = vmatprep.subr.bf16.mxu0 0
    %3442 = vmatpush1.bf16.msra.mxu0 %v3388
    %3443 = vmatprep.subr.bf16.mxu0 0
    %3444 = vmatpush1.bf16.msra.mxu0 %v3389
    %3445 = vmatprep.subr.bf16.mxu0 0
    %3446 = vmatpush1.bf16.msra.mxu0 %v3390
    %3447 = vmatprep.subr.bf16.mxu0 0
    %3448 = vmatpush1.bf16.msra.mxu0 %v3391
    %3449 = vmatprep.subr.bf16.mxu0 0
    %3450 = vmatpush1.bf16.msra.mxu0 %v3392
    %3451 = vmatprep.subr.bf16.mxu0 0
    %3452 = vmatpush1.bf16.msra.mxu0 %v3393
    %3453 = vmatprep.subr.bf16.mxu0 0
    %3454 = vmatpush1.bf16.msra.mxu0 %v3394
    %3455 = vmatprep.subr.bf16.mxu0 0
    %3456 = vmatpush1.bf16.msra.mxu0 %v3395
    %3457 = vmatprep.subr.bf16.mxu0 0
    %3458 = vmatpush1.bf16.msra.mxu0 %v3396
    %3459 = vmatprep.mubr.bf16.mxu0 %v173
    %3460 = vmatmul.mubr.bf16.gmra.mrb[0].mxu0 %v172
    %v3461 = vpop.f32.mrb[0].mxu0
    %v3462 = vadd.f32 0.0, %v3461
    %v3463 = vpop.f32.mrb[0].mxu0
    %v3464 = vpop.f32.mrb[0].mxu0
    %v3465 = vpop.f32.mrb[0].mxu0
    %3466 = vdwg.mxu0
    %3467 = vmatprep.subr.bf16.mxu0 0
    %3468 = vmatpush1.bf16.msra.mxu0 %v3397
    %3469 = vmatprep.subr.bf16.mxu0 0
    %3470 = vmatpush1.bf16.msra.mxu0 %v3398
    %3471 = vmatprep.subr.bf16.mxu0 0
    %3472 = vmatpush1.bf16.msra.mxu0 %v3399
    %3473 = vmatprep.subr.bf16.mxu0 0
    %3474 = vmatpush1.bf16.msra.mxu0 %v3400
    %3475 = vmatprep.subr.bf16.mxu0 0
    %3476 = vmatpush1.bf16.msra.mxu0 %v3401
    %3477 = vmatprep.subr.bf16.mxu0 0
    %3478 = vmatpush1.bf16.msra.mxu0 %v3425
    %3479 = vmatprep.subr.bf16.mxu0 0
    %3480 = vmatpush1.bf16.msra.mxu0 0
    %3481 = vmatprep.subr.bf16.mxu0 0
    %3482 = vmatpush1.bf16.msra.mxu0 0
    %3483 = vmatprep.subr.bf16.mxu0 0
    %3484 = vmatpush1.bf16.msra.mxu0 0
    %3485 = vmatprep.subr.bf16.mxu0 0
    %3486 = vmatpush1.bf16.msra.mxu0 0
    %3487 = vmatprep.subr.bf16.mxu0 0
    %3488 = vmatpush1.bf16.msra.mxu0 0
    %3489 = vmatprep.subr.bf16.mxu0 0
    %3490 = vmatpush1.bf16.msra.mxu0 0
    %3491 = vmatprep.subr.bf16.mxu0 0
    %3492 = vmatpush1.bf16.msra.mxu0 0
    %3493 = vmatprep.subr.bf16.mxu0 0
    %3494 = vmatpush1.bf16.msra.mxu0 0
    %3495 = vmatprep.subr.bf16.mxu0 0
    %3496 = vmatpush1.bf16.msra.mxu0 0
    %3497 = vmatprep.subr.bf16.mxu0 0
    %3498 = vmatpush1.bf16.msra.mxu0 0
    %3499 = vmatprep.mubr.bf16.mxu0 0
    %3500 = vmatmul.mubr.bf16.gmra.mrb[0].mxu0 %v349
    %v3501 = vpop.f32.mrb[0].mxu0
    %v3502 = vadd.f32 %v3462, %v3501
    %v3503 = vpop.f32.mrb[0].mxu0
    %v3504 = vpop.f32.mrb[0].mxu0
    %v3505 = vpop.f32.mrb[0].mxu0
    %3506 = vdwg.mxu0
    %s3507 = scalar_lea.vmem %s3, 2236
    %v3508 = vld [vmem:[%s3507] sm:$0xf]
    %v3509 = vld [vmem:[%s3507 + $0x4] sm:$0xf]
    %v3510 = vld [vmem:[%s3507 + $0x8] sm:$0xf]
    %v3511 = vld [vmem:[%s3507 + $0xc] sm:$0xf]
    %v3512 = vld [vmem:[%s3507 + $0x10] sm:$0xf]
    %v3513 = vld [vmem:[%s3507 + $0x14] sm:$0xf]
    %v3514 = vld [vmem:[%s3507 + $0x18] sm:$0xf]
    %v3515 = vld [vmem:[%s3507 + $0x1c] sm:$0xf]
    %v3516 = vld [vmem:[%s3507 + $0x20] sm:$0xf]
    %v3517 = vld [vmem:[%s3507 + $0x24] sm:$0xf]
    %v3518 = vld [vmem:[%s3507 + $0x28] sm:$0xf]
    %v3519 = vld [vmem:[%s3507 + $0x2c] sm:$0xf]
    %v3520 = vld [vmem:[%s3507 + $0x30] sm:$0xf]
    %v3521 = vld [vmem:[%s3507 + $0x34] sm:$0xf]
    %v3522 = vld [vmem:[%s3507 + $0x38] sm:$0xf]
    %v3523 = vld [vmem:[%s3507 + $0x3c] sm:$0xf]
    %v3524 = vld [vmem:[%s3507 + $0x40] sm:$0xf]
    %v3525 = vld [vmem:[%s3507 + $0x44] sm:$0xf]
    %v3526 = vld [vmem:[%s3507 + $0x48] sm:$0xf]
    %v3527 = vld [vmem:[%s3507 + $0x4c] sm:$0xf]
    %v3528 = vld [vmem:[%s3507 + $0x50] sm:$0xf]
    %v3529 = vld [vmem:[%s3507 + $0x54] sm:$0xf]
    %v3530 = vld [vmem:[%s3507 + $0x58] sm:$0xf]
    %v3531 = vld [vmem:[%s3507 + $0x5c] sm:$0xf]
    %v3532 = vld [vmem:[%s3507 + $0x60] sm:$0xf]
    %v3533 = vld [vmem:[%s3507 + $0x64] sm:$0xf]
    %v3534 = vld [vmem:[%s3507 + $0x68] sm:$0xf]
    %v3535 = vld [vmem:[%s3507 + $0x6c] sm:$0xf]
    %v3536 = vld [vmem:[%s3507 + $0x70] sm:$0xf]
    %v3537 = vld [vmem:[%s3507 + $0x74] sm:$0xf]
    %v3538 = vld [vmem:[%s3507 + $0x78] sm:$0xf]
    %v3539 = vld [vmem:[%s3507 + $0x7c] sm:$0xf]
    %v3540 = vld [vmem:[%s3507 + $0x80] sm:$0xf]
    %v3541 = vld [vmem:[%s3507 + $0x84] sm:$0xf]
    %v3542 = vld [vmem:[%s3507 + $0x88] sm:$0xf]
    %v3543 = vld [vmem:[%s3507 + $0x8c] sm:$0xf]
    %v3544 = vld [vmem:[%s3507 + $0x90] sm:$0xf]
    %v3545 = vld [vmem:[%s3507 + $0x94] sm:$0xf]
    %v3546 = vld [vmem:[%s3507 + $0x98] sm:$0xf]
    %v3547 = vld [vmem:[%s3507 + $0x9c] sm:$0xf]
    %v3548 = vld [vmem:[%s3507 + $0xa0] sm:$0xf]
    %v3549 = vld [vmem:[%s3507 + $0xa4] sm:$0xf]
    %v3550 = vld [vmem:[%s3507 + $0xa8] sm:$0x1]
    %v3594 = vunpack.c.l.b16 %v3508
    %v3595 = vunpack.c.l.b16 %v3509
    %v3596 = vunpack.c.l.b16 %v3510
    %v3597 = vunpack.c.l.b16 %v3511
    %v3598 = vunpack.c.l.b16 %v3512
    %v3599 = vunpack.c.l.b16 %v3513
    %v3600 = vunpack.c.l.b16 %v3514
    %v3601 = vunpack.c.l.b16 %v3515
    %v3602 = vunpack.c.l.b16 %v3516
    %v3603 = vunpack.c.l.b16 %v3517
    %v3604 = vunpack.c.l.b16 %v3518
    %v3605 = vunpack.c.l.b16 %v3519
    %v3606 = vunpack.c.l.b16 %v3520
    %v3607 = vunpack.c.l.b16 %v3521
    %v3608 = vunpack.c.l.b16 %v3522
    %v3609 = vunpack.c.l.b16 %v3523
    %v3610 = vunpack.c.l.b16 %v3524
    %v3611 = vunpack.c.l.b16 %v3525
    %v3612 = vunpack.c.l.b16 %v3526
    %v3613 = vunpack.c.l.b16 %v3527
    %v3614 = vunpack.c.l.b16 %v3528
    %v3615 = vunpack.c.l.b16 %v3529
    %v3616 = vunpack.c.l.b16 %v3530
    %v3617 = vunpack.c.l.b16 %v3531
    %v3618 = vunpack.c.l.b16 %v3532
    %v3619 = vunpack.c.l.b16 %v3533
    %v3620 = vunpack.c.l.b16 %v3534
    %v3621 = vunpack.c.l.b16 %v3535
    %v3622 = vunpack.c.l.b16 %v3536
    %v3623 = vunpack.c.l.b16 %v3537
    %v3624 = vunpack.c.l.b16 %v3538
    %v3625 = vunpack.c.l.b16 %v3539
    %v3626 = vunpack.c.l.b16 %v3540
    %v3627 = vunpack.c.l.b16 %v3541
    %v3628 = vunpack.c.l.b16 %v3542
    %v3629 = vunpack.c.l.b16 %v3543
    %v3630 = vunpack.c.l.b16 %v3544
    %v3631 = vunpack.c.l.b16 %v3545
    %v3632 = vunpack.c.l.b16 %v3546
    %v3633 = vunpack.c.l.b16 %v3547
    %v3634 = vunpack.c.l.b16 %v3548
    %v3635 = vunpack.c.l.b16 %v3549
    %v3636 = vunpack.c.l.b16 %v3550
    %v3637 = vpack.c.b16 %v3595, %v3594
    %v3638 = vpack.c.b16 %v3597, %v3596
    %v3639 = vpack.c.b16 %v3599, %v3598
    %v3640 = vpack.c.b16 %v3601, %v3600
    %v3641 = vpack.c.b16 %v3603, %v3602
    %v3642 = vpack.c.b16 %v3605, %v3604
    %v3643 = vpack.c.b16 %v3607, %v3606
    %v3644 = vpack.c.b16 %v3609, %v3608
    %v3645 = vpack.c.b16 %v3611, %v3610
    %v3646 = vpack.c.b16 %v3613, %v3612
    %v3647 = vpack.c.b16 %v3615, %v3614
    %v3648 = vpack.c.b16 %v3617, %v3616
    %v3649 = vpack.c.b16 %v3619, %v3618
    %v3650 = vpack.c.b16 %v3621, %v3620
    %v3651 = vpack.c.b16 %v3623, %v3622
    %v3652 = vpack.c.b16 %v3625, %v3624
    %v3653 = vpack.c.b16 %v3627, %v3626
    %v3654 = vpack.c.b16 %v3629, %v3628
    %v3655 = vpack.c.b16 %v3631, %v3630
    %v3656 = vpack.c.b16 %v3633, %v3632
    %v3657 = vpack.c.b16 %v3635, %v3634
    %v3658 = vpack.c.b16 %v3636, %v3636
    %v3681 = vsel %vm351, %v3658, 0
    %3683 = vmatprep.subr.bf16.mxu0 0
    %3684 = vmatpush1.bf16.msra.mxu0 %v3637
    %3685 = vmatprep.subr.bf16.mxu0 0
    %3686 = vmatpush1.bf16.msra.mxu0 %v3638
    %3687 = vmatprep.subr.bf16.mxu0 0
    %3688 = vmatpush1.bf16.msra.mxu0 %v3639
    %3689 = vmatprep.subr.bf16.mxu0 0
    %3690 = vmatpush1.bf16.msra.mxu0 %v3640
    %3691 = vmatprep.subr.bf16.mxu0 0
    %3692 = vmatpush1.bf16.msra.mxu0 %v3641
    %3693 = vmatprep.subr.bf16.mxu0 0
    %3694 = vmatpush1.bf16.msra.mxu0 %v3642
    %3695 = vmatprep.subr.bf16.mxu0 0
    %3696 = vmatpush1.bf16.msra.mxu0 %v3643
    %3697 = vmatprep.subr.bf16.mxu0 0
    %3698 = vmatpush1.bf16.msra.mxu0 %v3644
    %3699 = vmatprep.subr.bf16.mxu0 0
    %3700 = vmatpush1.bf16.msra.mxu0 %v3645
    %3701 = vmatprep.subr.bf16.mxu0 0
    %3702 = vmatpush1.bf16.msra.mxu0 %v3646
    %3703 = vmatprep.subr.bf16.mxu0 0
    %3704 = vmatpush1.bf16.msra.mxu0 %v3647
    %3705 = vmatprep.subr.bf16.mxu0 0
    %3706 = vmatpush1.bf16.msra.mxu0 %v3648
    %3707 = vmatprep.subr.bf16.mxu0 0
    %3708 = vmatpush1.bf16.msra.mxu0 %v3649
    %3709 = vmatprep.subr.bf16.mxu0 0
    %3710 = vmatpush1.bf16.msra.mxu0 %v3650
    %3711 = vmatprep.subr.bf16.mxu0 0
    %3712 = vmatpush1.bf16.msra.mxu0 %v3651
    %3713 = vmatprep.subr.bf16.mxu0 0
    %3714 = vmatpush1.bf16.msra.mxu0 %v3652
    %3715 = vmatprep.mubr.bf16.mxu0 %v173
    %3716 = vmatmul.mubr.bf16.gmra.mrb[0].mxu0 %v172
    %v3717 = vpop.f32.mrb[0].mxu0
    %v3718 = vadd.f32 0.0, %v3717
    %v3719 = vpop.f32.mrb[0].mxu0
    %v3720 = vpop.f32.mrb[0].mxu0
    %v3721 = vpop.f32.mrb[0].mxu0
    %3722 = vdwg.mxu0
    %3723 = vmatprep.subr.bf16.mxu0 0
    %3724 = vmatpush1.bf16.msra.mxu0 %v3653
    %3725 = vmatprep.subr.bf16.mxu0 0
    %3726 = vmatpush1.bf16.msra.mxu0 %v3654
    %3727 = vmatprep.subr.bf16.mxu0 0
    %3728 = vmatpush1.bf16.msra.mxu0 %v3655
    %3729 = vmatprep.subr.bf16.mxu0 0
    %3730 = vmatpush1.bf16.msra.mxu0 %v3656
    %3731 = vmatprep.subr.bf16.mxu0 0
    %3732 = vmatpush1.bf16.msra.mxu0 %v3657
    %3733 = vmatprep.subr.bf16.mxu0 0
    %3734 = vmatpush1.bf16.msra.mxu0 %v3681
    %3735 = vmatprep.subr.bf16.mxu0 0
    %3736 = vmatpush1.bf16.msra.mxu0 0
    %3737 = vmatprep.subr.bf16.mxu0 0
    %3738 = vmatpush1.bf16.msra.mxu0 0
    %3739 = vmatprep.subr.bf16.mxu0 0
    %3740 = vmatpush1.bf16.msra.mxu0 0
    %3741 = vmatprep.subr.bf16.mxu0 0
    %3742 = vmatpush1.bf16.msra.mxu0 0
    %3743 = vmatprep.subr.bf16.mxu0 0
    %3744 = vmatpush1.bf16.msra.mxu0 0
    %3745 = vmatprep.subr.bf16.mxu0 0
    %3746 = vmatpush1.bf16.msra.mxu0 0
    %3747 = vmatprep.subr.bf16.mxu0 0
    %3748 = vmatpush1.bf16.msra.mxu0 0
    %3749 = vmatprep.subr.bf16.mxu0 0
    %3750 = vmatpush1.bf16.msra.mxu0 0
    %3751 = vmatprep.subr.bf16.mxu0 0
    %3752 = vmatpush1.bf16.msra.mxu0 0
    %3753 = vmatprep.subr.bf16.mxu0 0
    %3754 = vmatpush1.bf16.msra.mxu0 0
    %3755 = vmatprep.mubr.bf16.mxu0 0
    %3756 = vmatmul.mubr.bf16.gmra.mrb[0].mxu0 %v349
    %v3757 = vpop.f32.mrb[0].mxu0
    %v3758 = vadd.f32 %v3718, %v3757
    %v3759 = vpop.f32.mrb[0].mxu0
    %v3760 = vpop.f32.mrb[0].mxu0
    %v3761 = vpop.f32.mrb[0].mxu0
    %3762 = vdwg.mxu0
    %s3763 = scalar_lea.vmem %s3, 2408
    %v3764 = vld [vmem:[%s3763] sm:$0xf]
    %v3765 = vld [vmem:[%s3763 + $0x4] sm:$0xf]
    %v3766 = vld [vmem:[%s3763 + $0x8] sm:$0xf]
    %v3767 = vld [vmem:[%s3763 + $0xc] sm:$0xf]
    %v3768 = vld [vmem:[%s3763 + $0x10] sm:$0xf]
    %v3769 = vld [vmem:[%s3763 + $0x14] sm:$0xf]
    %v3770 = vld [vmem:[%s3763 + $0x18] sm:$0xf]
    %v3771 = vld [vmem:[%s3763 + $0x1c] sm:$0xf]
    %v3772 = vld [vmem:[%s3763 + $0x20] sm:$0xf]
    %v3773 = vld [vmem:[%s3763 + $0x24] sm:$0xf]
    %v3774 = vld [vmem:[%s3763 + $0x28] sm:$0xf]
    %v3775 = vld [vmem:[%s3763 + $0x2c] sm:$0xf]
    %v3776 = vld [vmem:[%s3763 + $0x30] sm:$0xf]
    %v3777 = vld [vmem:[%s3763 + $0x34] sm:$0xf]
    %v3778 = vld [vmem:[%s3763 + $0x38] sm:$0xf]
    %v3779 = vld [vmem:[%s3763 + $0x3c] sm:$0xf]
    %v3780 = vld [vmem:[%s3763 + $0x40] sm:$0xf]
    %v3781 = vld [vmem:[%s3763 + $0x44] sm:$0xf]
    %v3782 = vld [vmem:[%s3763 + $0x48] sm:$0xf]
    %v3783 = vld [vmem:[%s3763 + $0x4c] sm:$0xf]
    %v3784 = vld [vmem:[%s3763 + $0x50] sm:$0xf]
    %v3785 = vld [vmem:[%s3763 + $0x54] sm:$0xf]
    %v3786 = vld [vmem:[%s3763 + $0x58] sm:$0xf]
    %v3787 = vld [vmem:[%s3763 + $0x5c] sm:$0xf]
    %v3788 = vld [vmem:[%s3763 + $0x60] sm:$0xf]
    %v3789 = vld [vmem:[%s3763 + $0x64] sm:$0xf]
    %v3790 = vld [vmem:[%s3763 + $0x68] sm:$0xf]
    %v3791 = vld [vmem:[%s3763 + $0x6c] sm:$0xf]
    %v3792 = vld [vmem:[%s3763 + $0x70] sm:$0xf]
    %v3793 = vld [vmem:[%s3763 + $0x74] sm:$0xf]
    %v3794 = vld [vmem:[%s3763 + $0x78] sm:$0xf]
    %v3795 = vld [vmem:[%s3763 + $0x7c] sm:$0xf]
    %v3796 = vld [vmem:[%s3763 + $0x80] sm:$0xf]
    %v3797 = vld [vmem:[%s3763 + $0x84] sm:$0xf]
    %v3798 = vld [vmem:[%s3763 + $0x88] sm:$0xf]
    %v3799 = vld [vmem:[%s3763 + $0x8c] sm:$0xf]
    %v3800 = vld [vmem:[%s3763 + $0x90] sm:$0xf]
    %v3801 = vld [vmem:[%s3763 + $0x94] sm:$0xf]
    %v3802 = vld [vmem:[%s3763 + $0x98] sm:$0xf]
    %v3803 = vld [vmem:[%s3763 + $0x9c] sm:$0xf]
    %v3804 = vld [vmem:[%s3763 + $0xa0] sm:$0xf]
    %v3805 = vld [vmem:[%s3763 + $0xa4] sm:$0xf]
    %v3806 = vld [vmem:[%s3763 + $0xa8] sm:$0x1]
    %v3850 = vunpack.c.l.b16 %v3764
    %v3851 = vunpack.c.l.b16 %v3765
    %v3852 = vunpack.c.l.b16 %v3766
    %v3853 = vunpack.c.l.b16 %v3767
    %v3854 = vunpack.c.l.b16 %v3768
    %v3855 = vunpack.c.l.b16 %v3769
    %v3856 = vunpack.c.l.b16 %v3770
    %v3857 = vunpack.c.l.b16 %v3771
    %v3858 = vunpack.c.l.b16 %v3772
    %v3859 = vunpack.c.l.b16 %v3773
    %v3860 = vunpack.c.l.b16 %v3774
    %v3861 = vunpack.c.l.b16 %v3775
    %v3862 = vunpack.c.l.b16 %v3776
    %v3863 = vunpack.c.l.b16 %v3777
    %v3864 = vunpack.c.l.b16 %v3778
    %v3865 = vunpack.c.l.b16 %v3779
    %v3866 = vunpack.c.l.b16 %v3780
    %v3867 = vunpack.c.l.b16 %v3781
    %v3868 = vunpack.c.l.b16 %v3782
    %v3869 = vunpack.c.l.b16 %v3783
    %v3870 = vunpack.c.l.b16 %v3784
    %v3871 = vunpack.c.l.b16 %v3785
    %v3872 = vunpack.c.l.b16 %v3786
    %v3873 = vunpack.c.l.b16 %v3787
    %v3874 = vunpack.c.l.b16 %v3788
    %v3875 = vunpack.c.l.b16 %v3789
    %v3876 = vunpack.c.l.b16 %v3790
    %v3877 = vunpack.c.l.b16 %v3791
    %v3878 = vunpack.c.l.b16 %v3792
    %v3879 = vunpack.c.l.b16 %v3793
    %v3880 = vunpack.c.l.b16 %v3794
    %v3881 = vunpack.c.l.b16 %v3795
    %v3882 = vunpack.c.l.b16 %v3796
    %v3883 = vunpack.c.l.b16 %v3797
    %v3884 = vunpack.c.l.b16 %v3798
    %v3885 = vunpack.c.l.b16 %v3799
    %v3886 = vunpack.c.l.b16 %v3800
    %v3887 = vunpack.c.l.b16 %v3801
    %v3888 = vunpack.c.l.b16 %v3802
    %v3889 = vunpack.c.l.b16 %v3803
    %v3890 = vunpack.c.l.b16 %v3804
    %v3891 = vunpack.c.l.b16 %v3805
    %v3892 = vunpack.c.l.b16 %v3806
    %v3893 = vpack.c.b16 %v3851, %v3850
    %v3894 = vpack.c.b16 %v3853, %v3852
    %v3895 = vpack.c.b16 %v3855, %v3854
    %v3896 = vpack.c.b16 %v3857, %v3856
    %v3897 = vpack.c.b16 %v3859, %v3858
    %v3898 = vpack.c.b16 %v3861, %v3860
    %v3899 = vpack.c.b16 %v3863, %v3862
    %v3900 = vpack.c.b16 %v3865, %v3864
    %v3901 = vpack.c.b16 %v3867, %v3866
    %v3902 = vpack.c.b16 %v3869, %v3868
    %v3903 = vpack.c.b16 %v3871, %v3870
    %v3904 = vpack.c.b16 %v3873, %v3872
    %v3905 = vpack.c.b16 %v3875, %v3874
    %v3906 = vpack.c.b16 %v3877, %v3876
    %v3907 = vpack.c.b16 %v3879, %v3878
    %v3908 = vpack.c.b16 %v3881, %v3880
    %v3909 = vpack.c.b16 %v3883, %v3882
    %v3910 = vpack.c.b16 %v3885, %v3884
    %v3911 = vpack.c.b16 %v3887, %v3886
    %v3912 = vpack.c.b16 %v3889, %v3888
    %v3913 = vpack.c.b16 %v3891, %v3890
    %v3914 = vpack.c.b16 %v3892, %v3892
    %v3937 = vsel %vm351, %v3914, 0
    %3939 = vmatprep.subr.bf16.mxu0 0
    %3940 = vmatpush1.bf16.msra.mxu0 %v3893
    %3941 = vmatprep.subr.bf16.mxu0 0
    %3942 = vmatpush1.bf16.msra.mxu0 %v3894
    %3943 = vmatprep.subr.bf16.mxu0 0
    %3944 = vmatpush1.bf16.msra.mxu0 %v3895
    %3945 = vmatprep.subr.bf16.mxu0 0
    %3946 = vmatpush1.bf16.msra.mxu0 %v3896
    %3947 = vmatprep.subr.bf16.mxu0 0
    %3948 = vmatpush1.bf16.msra.mxu0 %v3897
    %3949 = vmatprep.subr.bf16.mxu0 0
    %3950 = vmatpush1.bf16.msra.mxu0 %v3898
    %3951 = vmatprep.subr.bf16.mxu0 0
    %3952 = vmatpush1.bf16.msra.mxu0 %v3899
    %3953 = vmatprep.subr.bf16.mxu0 0
    %3954 = vmatpush1.bf16.msra.mxu0 %v3900
    %3955 = vmatprep.subr.bf16.mxu0 0
    %3956 = vmatpush1.bf16.msra.mxu0 %v3901
    %3957 = vmatprep.subr.bf16.mxu0 0
    %3958 = vmatpush1.bf16.msra.mxu0 %v3902
    %3959 = vmatprep.subr.bf16.mxu0 0
    %3960 = vmatpush1.bf16.msra.mxu0 %v3903
    %3961 = vmatprep.subr.bf16.mxu0 0
    %3962 = vmatpush1.bf16.msra.mxu0 %v3904
    %3963 = vmatprep.subr.bf16.mxu0 0
    %3964 = vmatpush1.bf16.msra.mxu0 %v3905
    %3965 = vmatprep.subr.bf16.mxu0 0
    %3966 = vmatpush1.bf16.msra.mxu0 %v3906
    %3967 = vmatprep.subr.bf16.mxu0 0
    %3968 = vmatpush1.bf16.msra.mxu0 %v3907
    %3969 = vmatprep.subr.bf16.mxu0 0
    %3970 = vmatpush1.bf16.msra.mxu0 %v3908
    %3971 = vmatprep.mubr.bf16.mxu0 %v173
    %3972 = vmatmul.mubr.bf16.gmra.mrb[0].mxu0 %v172
    %v3973 = vpop.f32.mrb[0].mxu0
    %v3974 = vadd.f32 0.0, %v3973
    %v3975 = vpop.f32.mrb[0].mxu0
    %v3976 = vpop.f32.mrb[0].mxu0
    %v3977 = vpop.f32.mrb[0].mxu0
    %3978 = vdwg.mxu0
    %3979 = vmatprep.subr.bf16.mxu0 0
    %3980 = vmatpush1.bf16.msra.mxu0 %v3909
    %3981 = vmatprep.subr.bf16.mxu0 0
    %3982 = vmatpush1.bf16.msra.mxu0 %v3910
    %3983 = vmatprep.subr.bf16.mxu0 0
    %3984 = vmatpush1.bf16.msra.mxu0 %v3911
    %3985 = vmatprep.subr.bf16.mxu0 0
    %3986 = vmatpush1.bf16.msra.mxu0 %v3912
    %3987 = vmatprep.subr.bf16.mxu0 0
    %3988 = vmatpush1.bf16.msra.mxu0 %v3913
    %3989 = vmatprep.subr.bf16.mxu0 0
    %3990 = vmatpush1.bf16.msra.mxu0 %v3937
    %3991 = vmatprep.subr.bf16.mxu0 0
    %3992 = vmatpush1.bf16.msra.mxu0 0
    %3993 = vmatprep.subr.bf16.mxu0 0
    %3994 = vmatpush1.bf16.msra.mxu0 0
    %3995 = vmatprep.subr.bf16.mxu0 0
    %3996 = vmatpush1.bf16.msra.mxu0 0
    %3997 = vmatprep.subr.bf16.mxu0 0
    %3998 = vmatpush1.bf16.msra.mxu0 0
    %3999 = vmatprep.subr.bf16.mxu0 0
    %4000 = vmatpush1.bf16.msra.mxu0 0
    %4001 = vmatprep.subr.bf16.mxu0 0
    %4002 = vmatpush1.bf16.msra.mxu0 0
    %4003 = vmatprep.subr.bf16.mxu0 0
    %4004 = vmatpush1.bf16.msra.mxu0 0
    %4005 = vmatprep.subr.bf16.mxu0 0
    %4006 = vmatpush1.bf16.msra.mxu0 0
    %4007 = vmatprep.subr.bf16.mxu0 0
    %4008 = vmatpush1.bf16.msra.mxu0 0
    %4009 = vmatprep.subr.bf16.mxu0 0
    %4010 = vmatpush1.bf16.msra.mxu0 0
    %4011 = vmatprep.mubr.bf16.mxu0 0
    %4012 = vmatmul.mubr.bf16.gmra.mrb[0].mxu0 %v349
    %v4013 = vpop.f32.mrb[0].mxu0
    %v4014 = vadd.f32 %v3974, %v4013
    %v4015 = vpop.f32.mrb[0].mxu0
    %v4016 = vpop.f32.mrb[0].mxu0
    %v4017 = vpop.f32.mrb[0].mxu0
    %4018 = vdwg.mxu0
    %s4019 = scalar_lea.vmem %s3, 2580
    %v4020 = vld [vmem:[%s4019] sm:$0xf]
    %v4021 = vld [vmem:[%s4019 + $0x4] sm:$0xf]
    %v4022 = vld [vmem:[%s4019 + $0x8] sm:$0xf]
    %v4023 = vld [vmem:[%s4019 + $0xc] sm:$0xf]
    %v4024 = vld [vmem:[%s4019 + $0x10] sm:$0xf]
    %v4025 = vld [vmem:[%s4019 + $0x14] sm:$0xf]
    %v4026 = vld [vmem:[%s4019 + $0x18] sm:$0xf]
    %v4027 = vld [vmem:[%s4019 + $0x1c] sm:$0xf]
    %v4028 = vld [vmem:[%s4019 + $0x20] sm:$0xf]
    %v4029 = vld [vmem:[%s4019 + $0x24] sm:$0xf]
    %v4030 = vld [vmem:[%s4019 + $0x28] sm:$0xf]
    %v4031 = vld [vmem:[%s4019 + $0x2c] sm:$0xf]
    %v4032 = vld [vmem:[%s4019 + $0x30] sm:$0xf]
    %v4033 = vld [vmem:[%s4019 + $0x34] sm:$0xf]
    %v4034 = vld [vmem:[%s4019 + $0x38] sm:$0xf]
    %v4035 = vld [vmem:[%s4019 + $0x3c] sm:$0xf]
    %v4036 = vld [vmem:[%s4019 + $0x40] sm:$0xf]
    %v4037 = vld [vmem:[%s4019 + $0x44] sm:$0xf]
    %v4038 = vld [vmem:[%s4019 + $0x48] sm:$0xf]
    %v4039 = vld [vmem:[%s4019 + $0x4c] sm:$0xf]
    %v4040 = vld [vmem:[%s4019 + $0x50] sm:$0xf]
    %v4041 = vld [vmem:[%s4019 + $0x54] sm:$0xf]
    %v4042 = vld [vmem:[%s4019 + $0x58] sm:$0xf]
    %v4043 = vld [vmem:[%s4019 + $0x5c] sm:$0xf]
    %v4044 = vld [vmem:[%s4019 + $0x60] sm:$0xf]
    %v4045 = vld [vmem:[%s4019 + $0x64] sm:$0xf]
    %v4046 = vld [vmem:[%s4019 + $0x68] sm:$0xf]
    %v4047 = vld [vmem:[%s4019 + $0x6c] sm:$0xf]
    %v4048 = vld [vmem:[%s4019 + $0x70] sm:$0xf]
    %v4049 = vld [vmem:[%s4019 + $0x74] sm:$0xf]
    %v4050 = vld [vmem:[%s4019 + $0x78] sm:$0xf]
    %v4051 = vld [vmem:[%s4019 + $0x7c] sm:$0xf]
    %v4052 = vld [vmem:[%s4019 + $0x80] sm:$0xf]
    %v4053 = vld [vmem:[%s4019 + $0x84] sm:$0xf]
    %v4054 = vld [vmem:[%s4019 + $0x88] sm:$0xf]
    %v4055 = vld [vmem:[%s4019 + $0x8c] sm:$0xf]
    %v4056 = vld [vmem:[%s4019 + $0x90] sm:$0xf]
    %v4057 = vld [vmem:[%s4019 + $0x94] sm:$0xf]
    %v4058 = vld [vmem:[%s4019 + $0x98] sm:$0xf]
    %v4059 = vld [vmem:[%s4019 + $0x9c] sm:$0xf]
    %v4060 = vld [vmem:[%s4019 + $0xa0] sm:$0xf]
    %v4061 = vld [vmem:[%s4019 + $0xa4] sm:$0xf]
    %v4062 = vld [vmem:[%s4019 + $0xa8] sm:$0x1]
    %v4106 = vunpack.c.l.b16 %v4020
    %v4107 = vunpack.c.l.b16 %v4021
    %v4108 = vunpack.c.l.b16 %v4022
    %v4109 = vunpack.c.l.b16 %v4023
    %v4110 = vunpack.c.l.b16 %v4024
    %v4111 = vunpack.c.l.b16 %v4025
    %v4112 = vunpack.c.l.b16 %v4026
    %v4113 = vunpack.c.l.b16 %v4027
    %v4114 = vunpack.c.l.b16 %v4028
    %v4115 = vunpack.c.l.b16 %v4029
    %v4116 = vunpack.c.l.b16 %v4030
    %v4117 = vunpack.c.l.b16 %v4031
    %v4118 = vunpack.c.l.b16 %v4032
    %v4119 = vunpack.c.l.b16 %v4033
    %v4120 = vunpack.c.l.b16 %v4034
    %v4121 = vunpack.c.l.b16 %v4035
    %v4122 = vunpack.c.l.b16 %v4036
    %v4123 = vunpack.c.l.b16 %v4037
    %v4124 = vunpack.c.l.b16 %v4038
    %v4125 = vunpack.c.l.b16 %v4039
    %v4126 = vunpack.c.l.b16 %v4040
    %v4127 = vunpack.c.l.b16 %v4041
    %v4128 = vunpack.c.l.b16 %v4042
    %v4129 = vunpack.c.l.b16 %v4043
    %v4130 = vunpack.c.l.b16 %v4044
    %v4131 = vunpack.c.l.b16 %v4045
    %v4132 = vunpack.c.l.b16 %v4046
    %v4133 = vunpack.c.l.b16 %v4047
    %v4134 = vunpack.c.l.b16 %v4048
    %v4135 = vunpack.c.l.b16 %v4049
    %v4136 = vunpack.c.l.b16 %v4050
    %v4137 = vunpack.c.l.b16 %v4051
    %v4138 = vunpack.c.l.b16 %v4052
    %v4139 = vunpack.c.l.b16 %v4053
    %v4140 = vunpack.c.l.b16 %v4054
    %v4141 = vunpack.c.l.b16 %v4055
    %v4142 = vunpack.c.l.b16 %v4056
    %v4143 = vunpack.c.l.b16 %v4057
    %v4144 = vunpack.c.l.b16 %v4058
    %v4145 = vunpack.c.l.b16 %v4059
    %v4146 = vunpack.c.l.b16 %v4060
    %v4147 = vunpack.c.l.b16 %v4061
    %v4148 = vunpack.c.l.b16 %v4062
    %v4149 = vpack.c.b16 %v4107, %v4106
    %v4150 = vpack.c.b16 %v4109, %v4108
    %v4151 = vpack.c.b16 %v4111, %v4110
    %v4152 = vpack.c.b16 %v4113, %v4112
    %v4153 = vpack.c.b16 %v4115, %v4114
    %v4154 = vpack.c.b16 %v4117, %v4116
    %v4155 = vpack.c.b16 %v4119, %v4118
    %v4156 = vpack.c.b16 %v4121, %v4120
    %v4157 = vpack.c.b16 %v4123, %v4122
    %v4158 = vpack.c.b16 %v4125, %v4124
    %v4159 = vpack.c.b16 %v4127, %v4126
    %v4160 = vpack.c.b16 %v4129, %v4128
    %v4161 = vpack.c.b16 %v4131, %v4130
    %v4162 = vpack.c.b16 %v4133, %v4132
    %v4163 = vpack.c.b16 %v4135, %v4134
    %v4164 = vpack.c.b16 %v4137, %v4136
    %v4165 = vpack.c.b16 %v4139, %v4138
    %v4166 = vpack.c.b16 %v4141, %v4140
    %v4167 = vpack.c.b16 %v4143, %v4142
    %v4168 = vpack.c.b16 %v4145, %v4144
    %v4169 = vpack.c.b16 %v4147, %v4146
    %v4170 = vpack.c.b16 %v4148, %v4148
    %v4193 = vsel %vm351, %v4170, 0
    %4195 = vmatprep.subr.bf16.mxu0 0
    %4196 = vmatpush1.bf16.msra.mxu0 %v4149
    %4197 = vmatprep.subr.bf16.mxu0 0
    %4198 = vmatpush1.bf16.msra.mxu0 %v4150
    %4199 = vmatprep.subr.bf16.mxu0 0
    %4200 = vmatpush1.bf16.msra.mxu0 %v4151
    %4201 = vmatprep.subr.bf16.mxu0 0
    %4202 = vmatpush1.bf16.msra.mxu0 %v4152
    %4203 = vmatprep.subr.bf16.mxu0 0
    %4204 = vmatpush1.bf16.msra.mxu0 %v4153
    %4205 = vmatprep.subr.bf16.mxu0 0
    %4206 = vmatpush1.bf16.msra.mxu0 %v4154
    %4207 = vmatprep.subr.bf16.mxu0 0
    %4208 = vmatpush1.bf16.msra.mxu0 %v4155
    %4209 = vmatprep.subr.bf16.mxu0 0
    %4210 = vmatpush1.bf16.msra.mxu0 %v4156
    %4211 = vmatprep.subr.bf16.mxu0 0
    %4212 = vmatpush1.bf16.msra.mxu0 %v4157
    %4213 = vmatprep.subr.bf16.mxu0 0
    %4214 = vmatpush1.bf16.msra.mxu0 %v4158
    %4215 = vmatprep.subr.bf16.mxu0 0
    %4216 = vmatpush1.bf16.msra.mxu0 %v4159
    %4217 = vmatprep.subr.bf16.mxu0 0
    %4218 = vmatpush1.bf16.msra.mxu0 %v4160
    %4219 = vmatprep.subr.bf16.mxu0 0
    %4220 = vmatpush1.bf16.msra.mxu0 %v4161
    %4221 = vmatprep.subr.bf16.mxu0 0
    %4222 = vmatpush1.bf16.msra.mxu0 %v4162
    %4223 = vmatprep.subr.bf16.mxu0 0
    %4224 = vmatpush1.bf16.msra.mxu0 %v4163
    %4225 = vmatprep.subr.bf16.mxu0 0
    %4226 = vmatpush1.bf16.msra.mxu0 %v4164
    %4227 = vmatprep.mubr.bf16.mxu0 %v173
    %4228 = vmatmul.mubr.bf16.gmra.mrb[0].mxu0 %v172
    %v4229 = vpop.f32.mrb[0].mxu0
    %v4230 = vadd.f32 0.0, %v4229
    %v4231 = vpop.f32.mrb[0].mxu0
    %v4232 = vpop.f32.mrb[0].mxu0
    %v4233 = vpop.f32.mrb[0].mxu0
    %4234 = vdwg.mxu0
    %4235 = vmatprep.subr.bf16.mxu0 0
    %4236 = vmatpush1.bf16.msra.mxu0 %v4165
    %4237 = vmatprep.subr.bf16.mxu0 0
    %4238 = vmatpush1.bf16.msra.mxu0 %v4166
    %4239 = vmatprep.subr.bf16.mxu0 0
    %4240 = vmatpush1.bf16.msra.mxu0 %v4167
    %4241 = vmatprep.subr.bf16.mxu0 0
    %4242 = vmatpush1.bf16.msra.mxu0 %v4168
    %4243 = vmatprep.subr.bf16.mxu0 0
    %4244 = vmatpush1.bf16.msra.mxu0 %v4169
    %4245 = vmatprep.subr.bf16.mxu0 0
    %4246 = vmatpush1.bf16.msra.mxu0 %v4193
    %4247 = vmatprep.subr.bf16.mxu0 0
    %4248 = vmatpush1.bf16.msra.mxu0 0
    %4249 = vmatprep.subr.bf16.mxu0 0
    %4250 = vmatpush1.bf16.msra.mxu0 0
    %4251 = vmatprep.subr.bf16.mxu0 0
    %4252 = vmatpush1.bf16.msra.mxu0 0
    %4253 = vmatprep.subr.bf16.mxu0 0
    %4254 = vmatpush1.bf16.msra.mxu0 0
    %4255 = vmatprep.subr.bf16.mxu0 0
    %4256 = vmatpush1.bf16.msra.mxu0 0
    %4257 = vmatprep.subr.bf16.mxu0 0
    %4258 = vmatpush1.bf16.msra.mxu0 0
    %4259 = vmatprep.subr.bf16.mxu0 0
    %4260 = vmatpush1.bf16.msra.mxu0 0
    %4261 = vmatprep.subr.bf16.mxu0 0
    %4262 = vmatpush1.bf16.msra.mxu0 0
    %4263 = vmatprep.subr.bf16.mxu0 0
    %4264 = vmatpush1.bf16.msra.mxu0 0
    %4265 = vmatprep.subr.bf16.mxu0 0
    %4266 = vmatpush1.bf16.msra.mxu0 0
    %4267 = vmatprep.mubr.bf16.mxu0 0
    %4268 = vmatmul.mubr.bf16.gmra.mrb[0].mxu0 %v349
    %v4269 = vpop.f32.mrb[0].mxu0
    %v4270 = vadd.f32 %v4230, %v4269
    %v4271 = vpop.f32.mrb[0].mxu0
    %v4272 = vpop.f32.mrb[0].mxu0
    %v4273 = vpop.f32.mrb[0].mxu0
    %4274 = vdwg.mxu0
    %v4275 = vpack.c.bf16 %v686, %v430
    %v4276 = vpack.c.bf16 %v1198, %v942
    %v4277 = vpack.c.bf16 %v1710, %v1454
    %v4278 = vpack.c.bf16 %v2222, %v1966
    %v4279 = vpack.c.bf16 %v2734, %v2478
    %v4280 = vpack.c.bf16 %v3246, %v2990
    %v4281 = vpack.c.bf16 %v3758, %v3502
    %v4282 = vpack.c.bf16 %v4270, %v4014
    %v4283 = vld [vmem:[%s2] sm:$0xf]
    %v4284 = vld [vmem:[%s2 + $0x4] sm:$0xf]
    %4286 = vset.pattern.permute.xlu0 0
    %4287 = vperm.xlu0 %4286, %v29
    %v4288 = vpop.permute.xlu0 %4287
    %4291 = vset.pattern.permute.xlu0 0
    %4292 = vperm.xlu0 %4291, %v30
    %v4293 = vpop.permute.xlu0 %4292
    %v4297 = vunpack.c.l.b16 %v4283
    %v4298 = vunpack.c.l.b16 %v4284
    %v4299 = vpack.c.b16 %v4298, %v4297
    %4301 = vmatprep.subr.bf16.mxu0 0
    %4302 = vmatpush1.bf16.msra.mxu0 %v4275
    %4303 = vmatprep.subr.bf16.mxu0 0
    %4304 = vmatpush1.bf16.msra.mxu0 %v4276
    %4305 = vmatprep.subr.bf16.mxu0 0
    %4306 = vmatpush1.bf16.msra.mxu0 %v4277
    %4307 = vmatprep.subr.bf16.mxu0 0
    %4308 = vmatpush1.bf16.msra.mxu0 %v4278
    %4309 = vmatprep.subr.bf16.mxu0 0
    %4310 = vmatpush1.bf16.msra.mxu0 %v4279
    %4311 = vmatprep.subr.bf16.mxu0 0
    %4312 = vmatpush1.bf16.msra.mxu0 %v4280
    %4313 = vmatprep.subr.bf16.mxu0 0
    %4314 = vmatpush1.bf16.msra.mxu0 %v4281
    %4315 = vmatprep.subr.bf16.mxu0 0
    %4316 = vmatpush1.bf16.msra.mxu0 %v4282
    %4317 = vmatprep.subr.bf16.mxu0 0
    %4318 = vmatpush1.bf16.msra.mxu0 0
    %4319 = vmatprep.subr.bf16.mxu0 0
    %4320 = vmatpush1.bf16.msra.mxu0 0
    %4321 = vmatprep.subr.bf16.mxu0 0
    %4322 = vmatpush1.bf16.msra.mxu0 0
    %4323 = vmatprep.subr.bf16.mxu0 0
    %4324 = vmatpush1.bf16.msra.mxu0 0
    %4325 = vmatprep.subr.bf16.mxu0 0
    %4326 = vmatpush1.bf16.msra.mxu0 0
    %4327 = vmatprep.subr.bf16.mxu0 0
    %4328 = vmatpush1.bf16.msra.mxu0 0
    %4329 = vmatprep.subr.bf16.mxu0 0
    %4330 = vmatpush1.bf16.msra.mxu0 0
    %4331 = vmatprep.subr.bf16.mxu0 0
    %4332 = vmatpush1.bf16.msra.mxu0 0
    %4333 = vmatprep.mubr.bf16.mxu0 0
    %4334 = vmatmul.mubr.bf16.gmra.mrb[0].mxu0 %v4299
    %v4335 = vpop.f32.mrb[0].mxu0
    %v4336 = vadd.f32 %v4288, %v4335
    %v4337 = vpop.f32.mrb[0].mxu0
    %v4338 = vpop.f32.mrb[0].mxu0
    %v4339 = vadd.f32 %v4293, %v4338
    %v4340 = vpop.f32.mrb[0].mxu0
    %4341 = vdwg.mxu0
    %vm4342 = vcmask 408576
    %v4343 = vsel %vm4342, %v4336, 0.0
    %4344 = vadd.xlane.f32.xlu0 %v4343
    %v4345 = vpop.xlane.xlu0 %4344
    %v4346 = vsel %vm4342, %v4339, 0.0
    %4347 = vadd.xlane.f32.xlu0 %v4346
    %v4348 = vpop.xlane.xlu0 %4347
    %v4349 = vrcp.pop 50.0
    %v4350 = vmul.f32 %v4345, %v4349
    %v4351 = vmul.f32 %v4348, %v4349
    %v4352 = vsub.f32 %v4336, %v4350
    %v4353 = vsub.f32 %v4339, %v4351
    %v4354 = vmul.f32 %v4352, %v4352
    %v4355 = vmul.f32 %v4353, %v4353
    %v4356 = vsel %vm4342, %v4354, 0.0
    %4357 = vadd.xlane.f32.xlu0 %v4356
    %v4358 = vpop.xlane.xlu0 %4357
    %v4359 = vsel %vm4342, %v4355, 0.0
    %4360 = vadd.xlane.f32.xlu0 %v4359
    %v4361 = vpop.xlane.xlu0 %4360
    %v4362 = vmul.f32 %v4358, %v4349
    %v4363 = vmul.f32 %v4361, %v4349
    %v4364 = vadd.f32 %v4362, 1e-05
    %v4365 = vadd.f32 %v4363, 1e-05
    %v4366 = vrsqrt.pop %v4364
    %v4367 = vrsqrt.pop %v4365
    %v4368 = vmul.f32 %v4352, %v4366
    %v4369 = vmul.f32 %v4353, %v4367
    %4371 = vset.pattern.permute.xlu0 0
    %4372 = vperm.xlu0 %4371, %v31
    %v4373 = vpop.permute.xlu0 %4372
    %4376 = vset.pattern.permute.xlu0 0
    %4377 = vperm.xlu0 %4376, %v32
    %v4378 = vpop.permute.xlu0 %4377
    %v4380 = vmul.f32 %v4368, %v4373
    %v4381 = vmul.f32 %v4369, %v4378
    %4383 = vset.pattern.permute.xlu0 0
    %4384 = vperm.xlu0 %4383, %v33
    %v4385 = vpop.permute.xlu0 %4384
    %4388 = vset.pattern.permute.xlu0 0
    %4389 = vperm.xlu0 %4388, %v34
    %v4390 = vpop.permute.xlu0 %4389
    %v4392 = vadd.f32 %v4380, %v4385
    %v4393 = vadd.f32 %v4381, %v4390
    %vm4394 = vcmp.ge.f32.partialorder %v4392, 0.0
    %vm4395 = vcmp.ge.f32.partialorder %v4393, 0.0
    %v4396 = vmul.f32 %v4392, 0.2
    %v4397 = vmul.f32 %v4393, 0.2
    %v4398 = vsel %vm4394, %v4392, %v4396
    %v4399 = vsel %vm4395, %v4393, %v4397
    %v4400 = vpack.c.bf16 %v4399, %v4398
    %v4401 = vld [vmem:[%s5] sm:$0xf]
    %v4402 = vld [vmem:[%s5 + $0x4] sm:$0xf]
    %v4403 = vld [vmem:[%s5 + $0x8] sm:$0xf]
    %v4404 = vld [vmem:[%s5 + $0xc] sm:$0xf]
    %v4405 = vld [vmem:[%s5 + $0x10] sm:$0xf]
    %v4406 = vld [vmem:[%s5 + $0x14] sm:$0xf]
    %v4407 = vld [vmem:[%s5 + $0x18] sm:$0x1]
    %v4415 = vunpack.c.l.b16 %v4401
    %v4416 = vunpack.c.l.b16 %v4402
    %v4417 = vunpack.c.l.b16 %v4403
    %v4418 = vunpack.c.l.b16 %v4404
    %v4419 = vunpack.c.l.b16 %v4405
    %v4420 = vunpack.c.l.b16 %v4406
    %v4421 = vunpack.c.l.b16 %v4407
    %v4422 = vpack.c.b16 %v4416, %v4415
    %v4423 = vpack.c.b16 %v4418, %v4417
    %v4424 = vpack.c.b16 %v4420, %v4419
    %v4425 = vpack.c.b16 %v4421, %v4421
    %v4430 = vsel %vm4342, %v4400, 0
    %v4433 = vsel %vm351, %v4425, 0
    %4435 = vmatprep.subr.bf16.mxu0 0
    %4436 = vmatpush1.bf16.msra.mxu0 %v4422
    %4437 = vmatprep.subr.bf16.mxu0 0
    %4438 = vmatpush1.bf16.msra.mxu0 %v4423
    %4439 = vmatprep.subr.bf16.mxu0 0
    %4440 = vmatpush1.bf16.msra.mxu0 %v4424
    %4441 = vmatprep.subr.bf16.mxu0 0
    %4442 = vmatpush1.bf16.msra.mxu0 %v4433
    %4443 = vmatprep.subr.bf16.mxu0 0
    %4444 = vmatpush1.bf16.msra.mxu0 0
    %4445 = vmatprep.subr.bf16.mxu0 0
    %4446 = vmatpush1.bf16.msra.mxu0 0
    %4447 = vmatprep.subr.bf16.mxu0 0
    %4448 = vmatpush1.bf16.msra.mxu0 0
    %4449 = vmatprep.subr.bf16.mxu0 0
    %4450 = vmatpush1.bf16.msra.mxu0 0
    %4451 = vmatprep.subr.bf16.mxu0 0
    %4452 = vmatpush1.bf16.msra.mxu0 0
    %4453 = vmatprep.subr.bf16.mxu0 0
    %4454 = vmatpush1.bf16.msra.mxu0 0
    %4455 = vmatprep.subr.bf16.mxu0 0
    %4456 = vmatpush1.bf16.msra.mxu0 0
    %4457 = vmatprep.subr.bf16.mxu0 0
    %4458 = vmatpush1.bf16.msra.mxu0 0
    %4459 = vmatprep.subr.bf16.mxu0 0
    %4460 = vmatpush1.bf16.msra.mxu0 0
    %4461 = vmatprep.subr.bf16.mxu0 0
    %4462 = vmatpush1.bf16.msra.mxu0 0
    %4463 = vmatprep.subr.bf16.mxu0 0
    %4464 = vmatpush1.bf16.msra.mxu0 0
    %4465 = vmatprep.subr.bf16.mxu0 0
    %4466 = vmatpush1.bf16.msra.mxu0 0
    %4467 = vmatprep.mubr.bf16.mxu0 0
    %4468 = vmatmul.mubr.bf16.gmra.mrb[0].mxu0 %v4430
    %v4469 = vpop.f32.mrb[0].mxu0
    %v4470 = vadd.f32 0.0, %v4469
    %v4471 = vpop.f32.mrb[0].mxu0
    %v4472 = vpop.f32.mrb[0].mxu0
    %v4473 = vadd.f32 0.0, %v4472
    %v4474 = vpop.f32.mrb[0].mxu0
    %4475 = vdwg.mxu0
    %s4476 = scalar_lea.vmem %s5, 28
    %v4477 = vld [vmem:[%s4476] sm:$0xf]
    %v4478 = vld [vmem:[%s4476 + $0x4] sm:$0xf]
    %v4479 = vld [vmem:[%s4476 + $0x8] sm:$0xf]
    %v4480 = vld [vmem:[%s4476 + $0xc] sm:$0xf]
    %v4481 = vld [vmem:[%s4476 + $0x10] sm:$0xf]
    %v4482 = vld [vmem:[%s4476 + $0x14] sm:$0xf]
    %v4483 = vld [vmem:[%s4476 + $0x18] sm:$0x1]
    %v4491 = vunpack.c.l.b16 %v4477
    %v4492 = vunpack.c.l.b16 %v4478
    %v4493 = vunpack.c.l.b16 %v4479
    %v4494 = vunpack.c.l.b16 %v4480
    %v4495 = vunpack.c.l.b16 %v4481
    %v4496 = vunpack.c.l.b16 %v4482
    %v4497 = vunpack.c.l.b16 %v4483
    %v4498 = vpack.c.b16 %v4492, %v4491
    %v4499 = vpack.c.b16 %v4494, %v4493
    %v4500 = vpack.c.b16 %v4496, %v4495
    %v4501 = vpack.c.b16 %v4497, %v4497
    %v4506 = vsel %vm351, %v4501, 0
    %4508 = vmatprep.subr.bf16.mxu0 0
    %4509 = vmatpush1.bf16.msra.mxu0 %v4498
    %4510 = vmatprep.subr.bf16.mxu0 0
    %4511 = vmatpush1.bf16.msra.mxu0 %v4499
    %4512 = vmatprep.subr.bf16.mxu0 0
    %4513 = vmatpush1.bf16.msra.mxu0 %v4500
    %4514 = vmatprep.subr.bf16.mxu0 0
    %4515 = vmatpush1.bf16.msra.mxu0 %v4506
    %4516 = vmatprep.subr.bf16.mxu0 0
    %4517 = vmatpush1.bf16.msra.mxu0 0
    %4518 = vmatprep.subr.bf16.mxu0 0
    %4519 = vmatpush1.bf16.msra.mxu0 0
    %4520 = vmatprep.subr.bf16.mxu0 0
    %4521 = vmatpush1.bf16.msra.mxu0 0
    %4522 = vmatprep.subr.bf16.mxu0 0
    %4523 = vmatpush1.bf16.msra.mxu0 0
    %4524 = vmatprep.subr.bf16.mxu0 0
    %4525 = vmatpush1.bf16.msra.mxu0 0
    %4526 = vmatprep.subr.bf16.mxu0 0
    %4527 = vmatpush1.bf16.msra.mxu0 0
    %4528 = vmatprep.subr.bf16.mxu0 0
    %4529 = vmatpush1.bf16.msra.mxu0 0
    %4530 = vmatprep.subr.bf16.mxu0 0
    %4531 = vmatpush1.bf16.msra.mxu0 0
    %4532 = vmatprep.subr.bf16.mxu0 0
    %4533 = vmatpush1.bf16.msra.mxu0 0
    %4534 = vmatprep.subr.bf16.mxu0 0
    %4535 = vmatpush1.bf16.msra.mxu0 0
    %4536 = vmatprep.subr.bf16.mxu0 0
    %4537 = vmatpush1.bf16.msra.mxu0 0
    %4538 = vmatprep.subr.bf16.mxu0 0
    %4539 = vmatpush1.bf16.msra.mxu0 0
    %4540 = vmatprep.mubr.bf16.mxu0 0
    %4541 = vmatmul.mubr.bf16.gmra.mrb[0].mxu0 %v4430
    %v4542 = vpop.f32.mrb[0].mxu0
    %v4543 = vadd.f32 0.0, %v4542
    %v4544 = vpop.f32.mrb[0].mxu0
    %v4545 = vpop.f32.mrb[0].mxu0
    %v4546 = vadd.f32 0.0, %v4545
    %v4547 = vpop.f32.mrb[0].mxu0
    %4548 = vdwg.mxu0
    %s4549 = scalar_lea.vmem %s5, 56
    %v4550 = vld [vmem:[%s4549] sm:$0xf]
    %v4551 = vld [vmem:[%s4549 + $0x4] sm:$0xf]
    %v4552 = vld [vmem:[%s4549 + $0x8] sm:$0xf]
    %v4553 = vld [vmem:[%s4549 + $0xc] sm:$0xf]
    %v4554 = vld [vmem:[%s4549 + $0x10] sm:$0xf]
    %v4555 = vld [vmem:[%s4549 + $0x14] sm:$0xf]
    %v4556 = vld [vmem:[%s4549 + $0x18] sm:$0x1]
    %v4564 = vunpack.c.l.b16 %v4550
    %v4565 = vunpack.c.l.b16 %v4551
    %v4566 = vunpack.c.l.b16 %v4552
    %v4567 = vunpack.c.l.b16 %v4553
    %v4568 = vunpack.c.l.b16 %v4554
    %v4569 = vunpack.c.l.b16 %v4555
    %v4570 = vunpack.c.l.b16 %v4556
    %v4571 = vpack.c.b16 %v4565, %v4564
    %v4572 = vpack.c.b16 %v4567, %v4566
    %v4573 = vpack.c.b16 %v4569, %v4568
    %v4574 = vpack.c.b16 %v4570, %v4570
    %v4579 = vsel %vm351, %v4574, 0
    %4581 = vmatprep.subr.bf16.mxu0 0
    %4582 = vmatpush1.bf16.msra.mxu0 %v4571
    %4583 = vmatprep.subr.bf16.mxu0 0
    %4584 = vmatpush1.bf16.msra.mxu0 %v4572
    %4585 = vmatprep.subr.bf16.mxu0 0
    %4586 = vmatpush1.bf16.msra.mxu0 %v4573
    %4587 = vmatprep.subr.bf16.mxu0 0
    %4588 = vmatpush1.bf16.msra.mxu0 %v4579
    %4589 = vmatprep.subr.bf16.mxu0 0
    %4590 = vmatpush1.bf16.msra.mxu0 0
    %4591 = vmatprep.subr.bf16.mxu0 0
    %4592 = vmatpush1.bf16.msra.mxu0 0
    %4593 = vmatprep.subr.bf16.mxu0 0
    %4594 = vmatpush1.bf16.msra.mxu0 0
    %4595 = vmatprep.subr.bf16.mxu0 0
    %4596 = vmatpush1.bf16.msra.mxu0 0
    %4597 = vmatprep.subr.bf16.mxu0 0
    %4598 = vmatpush1.bf16.msra.mxu0 0
    %4599 = vmatprep.subr.bf16.mxu0 0
    %4600 = vmatpush1.bf16.msra.mxu0 0
    %4601 = vmatprep.subr.bf16.mxu0 0
    %4602 = vmatpush1.bf16.msra.mxu0 0
    %4603 = vmatprep.subr.bf16.mxu0 0
    %4604 = vmatpush1.bf16.msra.mxu0 0
    %4605 = vmatprep.subr.bf16.mxu0 0
    %4606 = vmatpush1.bf16.msra.mxu0 0
    %4607 = vmatprep.subr.bf16.mxu0 0
    %4608 = vmatpush1.bf16.msra.mxu0 0
    %4609 = vmatprep.subr.bf16.mxu0 0
    %4610 = vmatpush1.bf16.msra.mxu0 0
    %4611 = vmatprep.subr.bf16.mxu0 0
    %4612 = vmatpush1.bf16.msra.mxu0 0
    %4613 = vmatprep.mubr.bf16.mxu0 0
    %4614 = vmatmul.mubr.bf16.gmra.mrb[0].mxu0 %v4430
    %v4615 = vpop.f32.mrb[0].mxu0
    %v4616 = vadd.f32 0.0, %v4615
    %v4617 = vpop.f32.mrb[0].mxu0
    %v4618 = vpop.f32.mrb[0].mxu0
    %v4619 = vadd.f32 0.0, %v4618
    %v4620 = vpop.f32.mrb[0].mxu0
    %4621 = vdwg.mxu0
    %s4622 = scalar_lea.vmem %s5, 84
    %v4623 = vld [vmem:[%s4622] sm:$0xf]
    %v4624 = vld [vmem:[%s4622 + $0x4] sm:$0xf]
    %v4625 = vld [vmem:[%s4622 + $0x8] sm:$0xf]
    %v4626 = vld [vmem:[%s4622 + $0xc] sm:$0xf]
    %v4627 = vld [vmem:[%s4622 + $0x10] sm:$0xf]
    %v4628 = vld [vmem:[%s4622 + $0x14] sm:$0xf]
    %v4629 = vld [vmem:[%s4622 + $0x18] sm:$0x1]
    %v4637 = vunpack.c.l.b16 %v4623
    %v4638 = vunpack.c.l.b16 %v4624
    %v4639 = vunpack.c.l.b16 %v4625
    %v4640 = vunpack.c.l.b16 %v4626
    %v4641 = vunpack.c.l.b16 %v4627
    %v4642 = vunpack.c.l.b16 %v4628
    %v4643 = vunpack.c.l.b16 %v4629
    %v4644 = vpack.c.b16 %v4638, %v4637
    %v4645 = vpack.c.b16 %v4640, %v4639
    %v4646 = vpack.c.b16 %v4642, %v4641
    %v4647 = vpack.c.b16 %v4643, %v4643
    %v4652 = vsel %vm351, %v4647, 0
    %4654 = vmatprep.subr.bf16.mxu0 0
    %4655 = vmatpush1.bf16.msra.mxu0 %v4644
    %4656 = vmatprep.subr.bf16.mxu0 0
    %4657 = vmatpush1.bf16.msra.mxu0 %v4645
    %4658 = vmatprep.subr.bf16.mxu0 0
    %4659 = vmatpush1.bf16.msra.mxu0 %v4646
    %4660 = vmatprep.subr.bf16.mxu0 0
    %4661 = vmatpush1.bf16.msra.mxu0 %v4652
    %4662 = vmatprep.subr.bf16.mxu0 0
    %4663 = vmatpush1.bf16.msra.mxu0 0
    %4664 = vmatprep.subr.bf16.mxu0 0
    %4665 = vmatpush1.bf16.msra.mxu0 0
    %4666 = vmatprep.subr.bf16.mxu0 0
    %4667 = vmatpush1.bf16.msra.mxu0 0
    %4668 = vmatprep.subr.bf16.mxu0 0
    %4669 = vmatpush1.bf16.msra.mxu0 0
    %4670 = vmatprep.subr.bf16.mxu0 0
    %4671 = vmatpush1.bf16.msra.mxu0 0
    %4672 = vmatprep.subr.bf16.mxu0 0
    %4673 = vmatpush1.bf16.msra.mxu0 0
    %4674 = vmatprep.subr.bf16.mxu0 0
    %4675 = vmatpush1.bf16.msra.mxu0 0
    %4676 = vmatprep.subr.bf16.mxu0 0
    %4677 = vmatpush1.bf16.msra.mxu0 0
    %4678 = vmatprep.subr.bf16.mxu0 0
    %4679 = vmatpush1.bf16.msra.mxu0 0
    %4680 = vmatprep.subr.bf16.mxu0 0
    %4681 = vmatpush1.bf16.msra.mxu0 0
    %4682 = vmatprep.subr.bf16.mxu0 0
    %4683 = vmatpush1.bf16.msra.mxu0 0
    %4684 = vmatprep.subr.bf16.mxu0 0
    %4685 = vmatpush1.bf16.msra.mxu0 0
    %4686 = vmatprep.mubr.bf16.mxu0 0
    %4687 = vmatmul.mubr.bf16.gmra.mrb[0].mxu0 %v4430
    %v4688 = vpop.f32.mrb[0].mxu0
    %v4689 = vadd.f32 0.0, %v4688
    %v4690 = vpop.f32.mrb[0].mxu0
    %v4691 = vpop.f32.mrb[0].mxu0
    %v4692 = vadd.f32 0.0, %v4691
    %v4693 = vpop.f32.mrb[0].mxu0
    %4694 = vdwg.mxu0
    %s4695 = scalar_lea.vmem %s5, 112
    %v4696 = vld [vmem:[%s4695] sm:$0xf]
    %v4697 = vld [vmem:[%s4695 + $0x4] sm:$0xf]
    %v4698 = vld [vmem:[%s4695 + $0x8] sm:$0xf]
    %v4699 = vld [vmem:[%s4695 + $0xc] sm:$0xf]
    %v4700 = vld [vmem:[%s4695 + $0x10] sm:$0xf]
    %v4701 = vld [vmem:[%s4695 + $0x14] sm:$0xf]
    %v4702 = vld [vmem:[%s4695 + $0x18] sm:$0x1]
    %v4710 = vunpack.c.l.b16 %v4696
    %v4711 = vunpack.c.l.b16 %v4697
    %v4712 = vunpack.c.l.b16 %v4698
    %v4713 = vunpack.c.l.b16 %v4699
    %v4714 = vunpack.c.l.b16 %v4700
    %v4715 = vunpack.c.l.b16 %v4701
    %v4716 = vunpack.c.l.b16 %v4702
    %v4717 = vpack.c.b16 %v4711, %v4710
    %v4718 = vpack.c.b16 %v4713, %v4712
    %v4719 = vpack.c.b16 %v4715, %v4714
    %v4720 = vpack.c.b16 %v4716, %v4716
    %v4725 = vsel %vm351, %v4720, 0
    %4727 = vmatprep.subr.bf16.mxu0 0
    %4728 = vmatpush1.bf16.msra.mxu0 %v4717
    %4729 = vmatprep.subr.bf16.mxu0 0
    %4730 = vmatpush1.bf16.msra.mxu0 %v4718
    %4731 = vmatprep.subr.bf16.mxu0 0
    %4732 = vmatpush1.bf16.msra.mxu0 %v4719
    %4733 = vmatprep.subr.bf16.mxu0 0
    %4734 = vmatpush1.bf16.msra.mxu0 %v4725
    %4735 = vmatprep.subr.bf16.mxu0 0
    %4736 = vmatpush1.bf16.msra.mxu0 0
    %4737 = vmatprep.subr.bf16.mxu0 0
    %4738 = vmatpush1.bf16.msra.mxu0 0
    %4739 = vmatprep.subr.bf16.mxu0 0
    %4740 = vmatpush1.bf16.msra.mxu0 0
    %4741 = vmatprep.subr.bf16.mxu0 0
    %4742 = vmatpush1.bf16.msra.mxu0 0
    %4743 = vmatprep.subr.bf16.mxu0 0
    %4744 = vmatpush1.bf16.msra.mxu0 0
    %4745 = vmatprep.subr.bf16.mxu0 0
    %4746 = vmatpush1.bf16.msra.mxu0 0
    %4747 = vmatprep.subr.bf16.mxu0 0
    %4748 = vmatpush1.bf16.msra.mxu0 0
    %4749 = vmatprep.subr.bf16.mxu0 0
    %4750 = vmatpush1.bf16.msra.mxu0 0
    %4751 = vmatprep.subr.bf16.mxu0 0
    %4752 = vmatpush1.bf16.msra.mxu0 0
    %4753 = vmatprep.subr.bf16.mxu0 0
    %4754 = vmatpush1.bf16.msra.mxu0 0
    %4755 = vmatprep.subr.bf16.mxu0 0
    %4756 = vmatpush1.bf16.msra.mxu0 0
    %4757 = vmatprep.subr.bf16.mxu0 0
    %4758 = vmatpush1.bf16.msra.mxu0 0
    %4759 = vmatprep.mubr.bf16.mxu0 0
    %4760 = vmatmul.mubr.bf16.gmra.mrb[0].mxu0 %v4430
    %v4761 = vpop.f32.mrb[0].mxu0
    %v4762 = vadd.f32 0.0, %v4761
    %v4763 = vpop.f32.mrb[0].mxu0
    %v4764 = vpop.f32.mrb[0].mxu0
    %v4765 = vadd.f32 0.0, %v4764
    %v4766 = vpop.f32.mrb[0].mxu0
    %4767 = vdwg.mxu0
    %s4768 = scalar_lea.vmem %s5, 140
    %v4769 = vld [vmem:[%s4768] sm:$0xf]
    %v4770 = vld [vmem:[%s4768 + $0x4] sm:$0xf]
    %v4771 = vld [vmem:[%s4768 + $0x8] sm:$0xf]
    %v4772 = vld [vmem:[%s4768 + $0xc] sm:$0xf]
    %v4773 = vld [vmem:[%s4768 + $0x10] sm:$0xf]
    %v4774 = vld [vmem:[%s4768 + $0x14] sm:$0xf]
    %v4775 = vld [vmem:[%s4768 + $0x18] sm:$0x1]
    %v4783 = vunpack.c.l.b16 %v4769
    %v4784 = vunpack.c.l.b16 %v4770
    %v4785 = vunpack.c.l.b16 %v4771
    %v4786 = vunpack.c.l.b16 %v4772
    %v4787 = vunpack.c.l.b16 %v4773
    %v4788 = vunpack.c.l.b16 %v4774
    %v4789 = vunpack.c.l.b16 %v4775
    %v4790 = vpack.c.b16 %v4784, %v4783
    %v4791 = vpack.c.b16 %v4786, %v4785
    %v4792 = vpack.c.b16 %v4788, %v4787
    %v4793 = vpack.c.b16 %v4789, %v4789
    %v4798 = vsel %vm351, %v4793, 0
    %4800 = vmatprep.subr.bf16.mxu0 0
    %4801 = vmatpush1.bf16.msra.mxu0 %v4790
    %4802 = vmatprep.subr.bf16.mxu0 0
    %4803 = vmatpush1.bf16.msra.mxu0 %v4791
    %4804 = vmatprep.subr.bf16.mxu0 0
    %4805 = vmatpush1.bf16.msra.mxu0 %v4792
    %4806 = vmatprep.subr.bf16.mxu0 0
    %4807 = vmatpush1.bf16.msra.mxu0 %v4798
    %4808 = vmatprep.subr.bf16.mxu0 0
    %4809 = vmatpush1.bf16.msra.mxu0 0
    %4810 = vmatprep.subr.bf16.mxu0 0
    %4811 = vmatpush1.bf16.msra.mxu0 0
    %4812 = vmatprep.subr.bf16.mxu0 0
    %4813 = vmatpush1.bf16.msra.mxu0 0
    %4814 = vmatprep.subr.bf16.mxu0 0
    %4815 = vmatpush1.bf16.msra.mxu0 0
    %4816 = vmatprep.subr.bf16.mxu0 0
    %4817 = vmatpush1.bf16.msra.mxu0 0
    %4818 = vmatprep.subr.bf16.mxu0 0
    %4819 = vmatpush1.bf16.msra.mxu0 0
    %4820 = vmatprep.subr.bf16.mxu0 0
    %4821 = vmatpush1.bf16.msra.mxu0 0
    %4822 = vmatprep.subr.bf16.mxu0 0
    %4823 = vmatpush1.bf16.msra.mxu0 0
    %4824 = vmatprep.subr.bf16.mxu0 0
    %4825 = vmatpush1.bf16.msra.mxu0 0
    %4826 = vmatprep.subr.bf16.mxu0 0
    %4827 = vmatpush1.bf16.msra.mxu0 0
    %4828 = vmatprep.subr.bf16.mxu0 0
    %4829 = vmatpush1.bf16.msra.mxu0 0
    %4830 = vmatprep.subr.bf16.mxu0 0
    %4831 = vmatpush1.bf16.msra.mxu0 0
    %4832 = vmatprep.mubr.bf16.mxu0 0
    %4833 = vmatmul.mubr.bf16.gmra.mrb[0].mxu0 %v4430
    %v4834 = vpop.f32.mrb[0].mxu0
    %v4835 = vadd.f32 0.0, %v4834
    %v4836 = vpop.f32.mrb[0].mxu0
    %v4837 = vpop.f32.mrb[0].mxu0
    %v4838 = vadd.f32 0.0, %v4837
    %v4839 = vpop.f32.mrb[0].mxu0
    %4840 = vdwg.mxu0
    %s4841 = scalar_lea.vmem %s5, 168
    %v4842 = vld [vmem:[%s4841] sm:$0xf]
    %v4843 = vld [vmem:[%s4841 + $0x4] sm:$0xf]
    %v4844 = vld [vmem:[%s4841 + $0x8] sm:$0xf]
    %v4845 = vld [vmem:[%s4841 + $0xc] sm:$0xf]
    %v4846 = vld [vmem:[%s4841 + $0x10] sm:$0xf]
    %v4847 = vld [vmem:[%s4841 + $0x14] sm:$0xf]
    %v4848 = vld [vmem:[%s4841 + $0x18] sm:$0x1]
    %v4856 = vunpack.c.l.b16 %v4842
    %v4857 = vunpack.c.l.b16 %v4843
    %v4858 = vunpack.c.l.b16 %v4844
    %v4859 = vunpack.c.l.b16 %v4845
    %v4860 = vunpack.c.l.b16 %v4846
    %v4861 = vunpack.c.l.b16 %v4847
    %v4862 = vunpack.c.l.b16 %v4848
    %v4863 = vpack.c.b16 %v4857, %v4856
    %v4864 = vpack.c.b16 %v4859, %v4858
    %v4865 = vpack.c.b16 %v4861, %v4860
    %v4866 = vpack.c.b16 %v4862, %v4862
    %v4871 = vsel %vm351, %v4866, 0
    %4873 = vmatprep.subr.bf16.mxu0 0
    %4874 = vmatpush1.bf16.msra.mxu0 %v4863
    %4875 = vmatprep.subr.bf16.mxu0 0
    %4876 = vmatpush1.bf16.msra.mxu0 %v4864
    %4877 = vmatprep.subr.bf16.mxu0 0
    %4878 = vmatpush1.bf16.msra.mxu0 %v4865
    %4879 = vmatprep.subr.bf16.mxu0 0
    %4880 = vmatpush1.bf16.msra.mxu0 %v4871
    %4881 = vmatprep.subr.bf16.mxu0 0
    %4882 = vmatpush1.bf16.msra.mxu0 0
    %4883 = vmatprep.subr.bf16.mxu0 0
    %4884 = vmatpush1.bf16.msra.mxu0 0
    %4885 = vmatprep.subr.bf16.mxu0 0
    %4886 = vmatpush1.bf16.msra.mxu0 0
    %4887 = vmatprep.subr.bf16.mxu0 0
    %4888 = vmatpush1.bf16.msra.mxu0 0
    %4889 = vmatprep.subr.bf16.mxu0 0
    %4890 = vmatpush1.bf16.msra.mxu0 0
    %4891 = vmatprep.subr.bf16.mxu0 0
    %4892 = vmatpush1.bf16.msra.mxu0 0
    %4893 = vmatprep.subr.bf16.mxu0 0
    %4894 = vmatpush1.bf16.msra.mxu0 0
    %4895 = vmatprep.subr.bf16.mxu0 0
    %4896 = vmatpush1.bf16.msra.mxu0 0
    %4897 = vmatprep.subr.bf16.mxu0 0
    %4898 = vmatpush1.bf16.msra.mxu0 0
    %4899 = vmatprep.subr.bf16.mxu0 0
    %4900 = vmatpush1.bf16.msra.mxu0 0
    %4901 = vmatprep.subr.bf16.mxu0 0
    %4902 = vmatpush1.bf16.msra.mxu0 0
    %4903 = vmatprep.subr.bf16.mxu0 0
    %4904 = vmatpush1.bf16.msra.mxu0 0
    %4905 = vmatprep.mubr.bf16.mxu0 0
    %4906 = vmatmul.mubr.bf16.gmra.mrb[0].mxu0 %v4430
    %v4907 = vpop.f32.mrb[0].mxu0
    %v4908 = vadd.f32 0.0, %v4907
    %v4909 = vpop.f32.mrb[0].mxu0
    %v4910 = vpop.f32.mrb[0].mxu0
    %v4911 = vadd.f32 0.0, %v4910
    %v4912 = vpop.f32.mrb[0].mxu0
    %4913 = vdwg.mxu0
    %s4914 = scalar_lea.vmem %s5, 196
    %v4915 = vld [vmem:[%s4914] sm:$0xf]
    %v4916 = vld [vmem:[%s4914 + $0x4] sm:$0xf]
    %v4917 = vld [vmem:[%s4914 + $0x8] sm:$0xf]
    %v4918 = vld [vmem:[%s4914 + $0xc] sm:$0xf]
    %v4919 = vld [vmem:[%s4914 + $0x10] sm:$0xf]
    %v4920 = vld [vmem:[%s4914 + $0x14] sm:$0xf]
    %v4921 = vld [vmem:[%s4914 + $0x18] sm:$0x1]
    %v4929 = vunpack.c.l.b16 %v4915
    %v4930 = vunpack.c.l.b16 %v4916
    %v4931 = vunpack.c.l.b16 %v4917
    %v4932 = vunpack.c.l.b16 %v4918
    %v4933 = vunpack.c.l.b16 %v4919
    %v4934 = vunpack.c.l.b16 %v4920
    %v4935 = vunpack.c.l.b16 %v4921
    %v4936 = vpack.c.b16 %v4930, %v4929
    %v4937 = vpack.c.b16 %v4932, %v4931
    %v4938 = vpack.c.b16 %v4934, %v4933
    %v4939 = vpack.c.b16 %v4935, %v4935
    %v4944 = vsel %vm351, %v4939, 0
    %4946 = vmatprep.subr.bf16.mxu0 0
    %4947 = vmatpush1.bf16.msra.mxu0 %v4936
    %4948 = vmatprep.subr.bf16.mxu0 0
    %4949 = vmatpush1.bf16.msra.mxu0 %v4937
    %4950 = vmatprep.subr.bf16.mxu0 0
    %4951 = vmatpush1.bf16.msra.mxu0 %v4938
    %4952 = vmatprep.subr.bf16.mxu0 0
    %4953 = vmatpush1.bf16.msra.mxu0 %v4944
    %4954 = vmatprep.subr.bf16.mxu0 0
    %4955 = vmatpush1.bf16.msra.mxu0 0
    %4956 = vmatprep.subr.bf16.mxu0 0
    %4957 = vmatpush1.bf16.msra.mxu0 0
    %4958 = vmatprep.subr.bf16.mxu0 0
    %4959 = vmatpush1.bf16.msra.mxu0 0
    %4960 = vmatprep.subr.bf16.mxu0 0
    %4961 = vmatpush1.bf16.msra.mxu0 0
    %4962 = vmatprep.subr.bf16.mxu0 0
    %4963 = vmatpush1.bf16.msra.mxu0 0
    %4964 = vmatprep.subr.bf16.mxu0 0
    %4965 = vmatpush1.bf16.msra.mxu0 0
    %4966 = vmatprep.subr.bf16.mxu0 0
    %4967 = vmatpush1.bf16.msra.mxu0 0
    %4968 = vmatprep.subr.bf16.mxu0 0
    %4969 = vmatpush1.bf16.msra.mxu0 0
    %4970 = vmatprep.subr.bf16.mxu0 0
    %4971 = vmatpush1.bf16.msra.mxu0 0
    %4972 = vmatprep.subr.bf16.mxu0 0
    %4973 = vmatpush1.bf16.msra.mxu0 0
    %4974 = vmatprep.subr.bf16.mxu0 0
    %4975 = vmatpush1.bf16.msra.mxu0 0
    %4976 = vmatprep.subr.bf16.mxu0 0
    %4977 = vmatpush1.bf16.msra.mxu0 0
    %4978 = vmatprep.mubr.bf16.mxu0 0
    %4979 = vmatmul.mubr.bf16.gmra.mrb[0].mxu0 %v4430
    %v4980 = vpop.f32.mrb[0].mxu0
    %v4981 = vadd.f32 0.0, %v4980
    %v4982 = vpop.f32.mrb[0].mxu0
    %v4983 = vpop.f32.mrb[0].mxu0
    %v4984 = vadd.f32 0.0, %v4983
    %v4985 = vpop.f32.mrb[0].mxu0
    %4986 = vdwg.mxu0
    %s4987 = scalar_lea.vmem %s5, 224
    %v4988 = vld [vmem:[%s4987] sm:$0xf]
    %v4989 = vld [vmem:[%s4987 + $0x4] sm:$0xf]
    %v4990 = vld [vmem:[%s4987 + $0x8] sm:$0xf]
    %v4991 = vld [vmem:[%s4987 + $0xc] sm:$0xf]
    %v4992 = vld [vmem:[%s4987 + $0x10] sm:$0xf]
    %v4993 = vld [vmem:[%s4987 + $0x14] sm:$0xf]
    %v4994 = vld [vmem:[%s4987 + $0x18] sm:$0x1]
    %v5002 = vunpack.c.l.b16 %v4988
    %v5003 = vunpack.c.l.b16 %v4989
    %v5004 = vunpack.c.l.b16 %v4990
    %v5005 = vunpack.c.l.b16 %v4991
    %v5006 = vunpack.c.l.b16 %v4992
    %v5007 = vunpack.c.l.b16 %v4993
    %v5008 = vunpack.c.l.b16 %v4994
    %v5009 = vpack.c.b16 %v5003, %v5002
    %v5010 = vpack.c.b16 %v5005, %v5004
    %v5011 = vpack.c.b16 %v5007, %v5006
    %v5012 = vpack.c.b16 %v5008, %v5008
    %v5017 = vsel %vm351, %v5012, 0
    %5019 = vmatprep.subr.bf16.mxu0 0
    %5020 = vmatpush1.bf16.msra.mxu0 %v5009
    %5021 = vmatprep.subr.bf16.mxu0 0
    %5022 = vmatpush1.bf16.msra.mxu0 %v5010
    %5023 = vmatprep.subr.bf16.mxu0 0
    %5024 = vmatpush1.bf16.msra.mxu0 %v5011
    %5025 = vmatprep.subr.bf16.mxu0 0
    %5026 = vmatpush1.bf16.msra.mxu0 %v5017
    %5027 = vmatprep.subr.bf16.mxu0 0
    %5028 = vmatpush1.bf16.msra.mxu0 0
    %5029 = vmatprep.subr.bf16.mxu0 0
    %5030 = vmatpush1.bf16.msra.mxu0 0
    %5031 = vmatprep.subr.bf16.mxu0 0
    %5032 = vmatpush1.bf16.msra.mxu0 0
    %5033 = vmatprep.subr.bf16.mxu0 0
    %5034 = vmatpush1.bf16.msra.mxu0 0
    %5035 = vmatprep.subr.bf16.mxu0 0
    %5036 = vmatpush1.bf16.msra.mxu0 0
    %5037 = vmatprep.subr.bf16.mxu0 0
    %5038 = vmatpush1.bf16.msra.mxu0 0
    %5039 = vmatprep.subr.bf16.mxu0 0
    %5040 = vmatpush1.bf16.msra.mxu0 0
    %5041 = vmatprep.subr.bf16.mxu0 0
    %5042 = vmatpush1.bf16.msra.mxu0 0
    %5043 = vmatprep.subr.bf16.mxu0 0
    %5044 = vmatpush1.bf16.msra.mxu0 0
    %5045 = vmatprep.subr.bf16.mxu0 0
    %5046 = vmatpush1.bf16.msra.mxu0 0
    %5047 = vmatprep.subr.bf16.mxu0 0
    %5048 = vmatpush1.bf16.msra.mxu0 0
    %5049 = vmatprep.subr.bf16.mxu0 0
    %5050 = vmatpush1.bf16.msra.mxu0 0
    %5051 = vmatprep.mubr.bf16.mxu0 0
    %5052 = vmatmul.mubr.bf16.gmra.mrb[0].mxu0 %v4430
    %v5053 = vpop.f32.mrb[0].mxu0
    %v5054 = vadd.f32 0.0, %v5053
    %v5055 = vpop.f32.mrb[0].mxu0
    %v5056 = vpop.f32.mrb[0].mxu0
    %v5057 = vadd.f32 0.0, %v5056
    %v5058 = vpop.f32.mrb[0].mxu0
    %5059 = vdwg.mxu0
    %s5060 = scalar_lea.vmem %s5, 252
    %v5061 = vld [vmem:[%s5060] sm:$0xf]
    %v5062 = vld [vmem:[%s5060 + $0x4] sm:$0xf]
    %v5063 = vld [vmem:[%s5060 + $0x8] sm:$0xf]
    %v5064 = vld [vmem:[%s5060 + $0xc] sm:$0xf]
    %v5065 = vld [vmem:[%s5060 + $0x10] sm:$0xf]
    %v5066 = vld [vmem:[%s5060 + $0x14] sm:$0xf]
    %v5067 = vld [vmem:[%s5060 + $0x18] sm:$0x1]
    %v5075 = vunpack.c.l.b16 %v5061
    %v5076 = vunpack.c.l.b16 %v5062
    %v5077 = vunpack.c.l.b16 %v5063
    %v5078 = vunpack.c.l.b16 %v5064
    %v5079 = vunpack.c.l.b16 %v5065
    %v5080 = vunpack.c.l.b16 %v5066
    %v5081 = vunpack.c.l.b16 %v5067
    %v5082 = vpack.c.b16 %v5076, %v5075
    %v5083 = vpack.c.b16 %v5078, %v5077
    %v5084 = vpack.c.b16 %v5080, %v5079
    %v5085 = vpack.c.b16 %v5081, %v5081
    %v5090 = vsel %vm351, %v5085, 0
    %5092 = vmatprep.subr.bf16.mxu0 0
    %5093 = vmatpush1.bf16.msra.mxu0 %v5082
    %5094 = vmatprep.subr.bf16.mxu0 0
    %5095 = vmatpush1.bf16.msra.mxu0 %v5083
    %5096 = vmatprep.subr.bf16.mxu0 0
    %5097 = vmatpush1.bf16.msra.mxu0 %v5084
    %5098 = vmatprep.subr.bf16.mxu0 0
    %5099 = vmatpush1.bf16.msra.mxu0 %v5090
    %5100 = vmatprep.subr.bf16.mxu0 0
    %5101 = vmatpush1.bf16.msra.mxu0 0
    %5102 = vmatprep.subr.bf16.mxu0 0
    %5103 = vmatpush1.bf16.msra.mxu0 0
    %5104 = vmatprep.subr.bf16.mxu0 0
    %5105 = vmatpush1.bf16.msra.mxu0 0
    %5106 = vmatprep.subr.bf16.mxu0 0
    %5107 = vmatpush1.bf16.msra.mxu0 0
    %5108 = vmatprep.subr.bf16.mxu0 0
    %5109 = vmatpush1.bf16.msra.mxu0 0
    %5110 = vmatprep.subr.bf16.mxu0 0
    %5111 = vmatpush1.bf16.msra.mxu0 0
    %5112 = vmatprep.subr.bf16.mxu0 0
    %5113 = vmatpush1.bf16.msra.mxu0 0
    %5114 = vmatprep.subr.bf16.mxu0 0
    %5115 = vmatpush1.bf16.msra.mxu0 0
    %5116 = vmatprep.subr.bf16.mxu0 0
    %5117 = vmatpush1.bf16.msra.mxu0 0
    %5118 = vmatprep.subr.bf16.mxu0 0
    %5119 = vmatpush1.bf16.msra.mxu0 0
    %5120 = vmatprep.subr.bf16.mxu0 0
    %5121 = vmatpush1.bf16.msra.mxu0 0
    %5122 = vmatprep.subr.bf16.mxu0 0
    %5123 = vmatpush1.bf16.msra.mxu0 0
    %5124 = vmatprep.mubr.bf16.mxu0 0
    %5125 = vmatmul.mubr.bf16.gmra.mrb[0].mxu0 %v4430
    %v5126 = vpop.f32.mrb[0].mxu0
    %v5127 = vadd.f32 0.0, %v5126
    %v5128 = vpop.f32.mrb[0].mxu0
    %v5129 = vpop.f32.mrb[0].mxu0
    %v5130 = vadd.f32 0.0, %v5129
    %v5131 = vpop.f32.mrb[0].mxu0
    %5132 = vdwg.mxu0
    %s5133 = scalar_lea.vmem %s5, 280
    %v5134 = vld [vmem:[%s5133] sm:$0xf]
    %v5135 = vld [vmem:[%s5133 + $0x4] sm:$0xf]
    %v5136 = vld [vmem:[%s5133 + $0x8] sm:$0xf]
    %v5137 = vld [vmem:[%s5133 + $0xc] sm:$0xf]
    %v5138 = vld [vmem:[%s5133 + $0x10] sm:$0xf]
    %v5139 = vld [vmem:[%s5133 + $0x14] sm:$0xf]
    %v5140 = vld [vmem:[%s5133 + $0x18] sm:$0x1]
    %v5148 = vunpack.c.l.b16 %v5134
    %v5149 = vunpack.c.l.b16 %v5135
    %v5150 = vunpack.c.l.b16 %v5136
    %v5151 = vunpack.c.l.b16 %v5137
    %v5152 = vunpack.c.l.b16 %v5138
    %v5153 = vunpack.c.l.b16 %v5139
    %v5154 = vunpack.c.l.b16 %v5140
    %v5155 = vpack.c.b16 %v5149, %v5148
    %v5156 = vpack.c.b16 %v5151, %v5150
    %v5157 = vpack.c.b16 %v5153, %v5152
    %v5158 = vpack.c.b16 %v5154, %v5154
    %v5163 = vsel %vm351, %v5158, 0
    %5165 = vmatprep.subr.bf16.mxu0 0
    %5166 = vmatpush1.bf16.msra.mxu0 %v5155
    %5167 = vmatprep.subr.bf16.mxu0 0
    %5168 = vmatpush1.bf16.msra.mxu0 %v5156
    %5169 = vmatprep.subr.bf16.mxu0 0
    %5170 = vmatpush1.bf16.msra.mxu0 %v5157
    %5171 = vmatprep.subr.bf16.mxu0 0
    %5172 = vmatpush1.bf16.msra.mxu0 %v5163
    %5173 = vmatprep.subr.bf16.mxu0 0
    %5174 = vmatpush1.bf16.msra.mxu0 0
    %5175 = vmatprep.subr.bf16.mxu0 0
    %5176 = vmatpush1.bf16.msra.mxu0 0
    %5177 = vmatprep.subr.bf16.mxu0 0
    %5178 = vmatpush1.bf16.msra.mxu0 0
    %5179 = vmatprep.subr.bf16.mxu0 0
    %5180 = vmatpush1.bf16.msra.mxu0 0
    %5181 = vmatprep.subr.bf16.mxu0 0
    %5182 = vmatpush1.bf16.msra.mxu0 0
    %5183 = vmatprep.subr.bf16.mxu0 0
    %5184 = vmatpush1.bf16.msra.mxu0 0
    %5185 = vmatprep.subr.bf16.mxu0 0
    %5186 = vmatpush1.bf16.msra.mxu0 0
    %5187 = vmatprep.subr.bf16.mxu0 0
    %5188 = vmatpush1.bf16.msra.mxu0 0
    %5189 = vmatprep.subr.bf16.mxu0 0
    %5190 = vmatpush1.bf16.msra.mxu0 0
    %5191 = vmatprep.subr.bf16.mxu0 0
    %5192 = vmatpush1.bf16.msra.mxu0 0
    %5193 = vmatprep.subr.bf16.mxu0 0
    %5194 = vmatpush1.bf16.msra.mxu0 0
    %5195 = vmatprep.subr.bf16.mxu0 0
    %5196 = vmatpush1.bf16.msra.mxu0 0
    %5197 = vmatprep.mubr.bf16.mxu0 0
    %5198 = vmatmul.mubr.bf16.gmra.mrb[0].mxu0 %v4430
    %v5199 = vpop.f32.mrb[0].mxu0
    %v5200 = vadd.f32 0.0, %v5199
    %v5201 = vpop.f32.mrb[0].mxu0
    %v5202 = vpop.f32.mrb[0].mxu0
    %v5203 = vadd.f32 0.0, %v5202
    %v5204 = vpop.f32.mrb[0].mxu0
    %5205 = vdwg.mxu0
    %s5206 = scalar_lea.vmem %s5, 308
    %v5207 = vld [vmem:[%s5206] sm:$0xf]
    %v5208 = vld [vmem:[%s5206 + $0x4] sm:$0xf]
    %v5209 = vld [vmem:[%s5206 + $0x8] sm:$0xf]
    %v5210 = vld [vmem:[%s5206 + $0xc] sm:$0xf]
    %v5211 = vld [vmem:[%s5206 + $0x10] sm:$0xf]
    %v5212 = vld [vmem:[%s5206 + $0x14] sm:$0xf]
    %v5213 = vld [vmem:[%s5206 + $0x18] sm:$0x1]
    %v5221 = vunpack.c.l.b16 %v5207
    %v5222 = vunpack.c.l.b16 %v5208
    %v5223 = vunpack.c.l.b16 %v5209
    %v5224 = vunpack.c.l.b16 %v5210
    %v5225 = vunpack.c.l.b16 %v5211
    %v5226 = vunpack.c.l.b16 %v5212
    %v5227 = vunpack.c.l.b16 %v5213
    %v5228 = vpack.c.b16 %v5222, %v5221
    %v5229 = vpack.c.b16 %v5224, %v5223
    %v5230 = vpack.c.b16 %v5226, %v5225
    %v5231 = vpack.c.b16 %v5227, %v5227
    %v5236 = vsel %vm351, %v5231, 0
    %5238 = vmatprep.subr.bf16.mxu0 0
    %5239 = vmatpush1.bf16.msra.mxu0 %v5228
    %5240 = vmatprep.subr.bf16.mxu0 0
    %5241 = vmatpush1.bf16.msra.mxu0 %v5229
    %5242 = vmatprep.subr.bf16.mxu0 0
    %5243 = vmatpush1.bf16.msra.mxu0 %v5230
    %5244 = vmatprep.subr.bf16.mxu0 0
    %5245 = vmatpush1.bf16.msra.mxu0 %v5236
    %5246 = vmatprep.subr.bf16.mxu0 0
    %5247 = vmatpush1.bf16.msra.mxu0 0
    %5248 = vmatprep.subr.bf16.mxu0 0
    %5249 = vmatpush1.bf16.msra.mxu0 0
    %5250 = vmatprep.subr.bf16.mxu0 0
    %5251 = vmatpush1.bf16.msra.mxu0 0
    %5252 = vmatprep.subr.bf16.mxu0 0
    %5253 = vmatpush1.bf16.msra.mxu0 0
    %5254 = vmatprep.subr.bf16.mxu0 0
    %5255 = vmatpush1.bf16.msra.mxu0 0
    %5256 = vmatprep.subr.bf16.mxu0 0
    %5257 = vmatpush1.bf16.msra.mxu0 0
    %5258 = vmatprep.subr.bf16.mxu0 0
    %5259 = vmatpush1.bf16.msra.mxu0 0
    %5260 = vmatprep.subr.bf16.mxu0 0
    %5261 = vmatpush1.bf16.msra.mxu0 0
    %5262 = vmatprep.subr.bf16.mxu0 0
    %5263 = vmatpush1.bf16.msra.mxu0 0
    %5264 = vmatprep.subr.bf16.mxu0 0
    %5265 = vmatpush1.bf16.msra.mxu0 0
    %5266 = vmatprep.subr.bf16.mxu0 0
    %5267 = vmatpush1.bf16.msra.mxu0 0
    %5268 = vmatprep.subr.bf16.mxu0 0
    %5269 = vmatpush1.bf16.msra.mxu0 0
    %5270 = vmatprep.mubr.bf16.mxu0 0
    %5271 = vmatmul.mubr.bf16.gmra.mrb[0].mxu0 %v4430
    %v5272 = vpop.f32.mrb[0].mxu0
    %v5273 = vadd.f32 0.0, %v5272
    %v5274 = vpop.f32.mrb[0].mxu0
    %v5275 = vpop.f32.mrb[0].mxu0
    %v5276 = vadd.f32 0.0, %v5275
    %v5277 = vpop.f32.mrb[0].mxu0
    %5278 = vdwg.mxu0
    %s5279 = scalar_lea.vmem %s5, 336
    %v5280 = vld [vmem:[%s5279] sm:$0xf]
    %v5281 = vld [vmem:[%s5279 + $0x4] sm:$0xf]
    %v5282 = vld [vmem:[%s5279 + $0x8] sm:$0xf]
    %v5283 = vld [vmem:[%s5279 + $0xc] sm:$0xf]
    %v5284 = vld [vmem:[%s5279 + $0x10] sm:$0xf]
    %v5285 = vld [vmem:[%s5279 + $0x14] sm:$0xf]
    %v5286 = vld [vmem:[%s5279 + $0x18] sm:$0x1]
    %v5294 = vunpack.c.l.b16 %v5280
    %v5295 = vunpack.c.l.b16 %v5281
    %v5296 = vunpack.c.l.b16 %v5282
    %v5297 = vunpack.c.l.b16 %v5283
    %v5298 = vunpack.c.l.b16 %v5284
    %v5299 = vunpack.c.l.b16 %v5285
    %v5300 = vunpack.c.l.b16 %v5286
    %v5301 = vpack.c.b16 %v5295, %v5294
    %v5302 = vpack.c.b16 %v5297, %v5296
    %v5303 = vpack.c.b16 %v5299, %v5298
    %v5304 = vpack.c.b16 %v5300, %v5300
    %v5309 = vsel %vm351, %v5304, 0
    %5311 = vmatprep.subr.bf16.mxu0 0
    %5312 = vmatpush1.bf16.msra.mxu0 %v5301
    %5313 = vmatprep.subr.bf16.mxu0 0
    %5314 = vmatpush1.bf16.msra.mxu0 %v5302
    %5315 = vmatprep.subr.bf16.mxu0 0
    %5316 = vmatpush1.bf16.msra.mxu0 %v5303
    %5317 = vmatprep.subr.bf16.mxu0 0
    %5318 = vmatpush1.bf16.msra.mxu0 %v5309
    %5319 = vmatprep.subr.bf16.mxu0 0
    %5320 = vmatpush1.bf16.msra.mxu0 0
    %5321 = vmatprep.subr.bf16.mxu0 0
    %5322 = vmatpush1.bf16.msra.mxu0 0
    %5323 = vmatprep.subr.bf16.mxu0 0
    %5324 = vmatpush1.bf16.msra.mxu0 0
    %5325 = vmatprep.subr.bf16.mxu0 0
    %5326 = vmatpush1.bf16.msra.mxu0 0
    %5327 = vmatprep.subr.bf16.mxu0 0
    %5328 = vmatpush1.bf16.msra.mxu0 0
    %5329 = vmatprep.subr.bf16.mxu0 0
    %5330 = vmatpush1.bf16.msra.mxu0 0
    %5331 = vmatprep.subr.bf16.mxu0 0
    %5332 = vmatpush1.bf16.msra.mxu0 0
    %5333 = vmatprep.subr.bf16.mxu0 0
    %5334 = vmatpush1.bf16.msra.mxu0 0
    %5335 = vmatprep.subr.bf16.mxu0 0
    %5336 = vmatpush1.bf16.msra.mxu0 0
    %5337 = vmatprep.subr.bf16.mxu0 0
    %5338 = vmatpush1.bf16.msra.mxu0 0
    %5339 = vmatprep.subr.bf16.mxu0 0
    %5340 = vmatpush1.bf16.msra.mxu0 0
    %5341 = vmatprep.subr.bf16.mxu0 0
    %5342 = vmatpush1.bf16.msra.mxu0 0
    %5343 = vmatprep.mubr.bf16.mxu0 0
    %5344 = vmatmul.mubr.bf16.gmra.mrb[0].mxu0 %v4430
    %v5345 = vpop.f32.mrb[0].mxu0
    %v5346 = vadd.f32 0.0, %v5345
    %v5347 = vpop.f32.mrb[0].mxu0
    %v5348 = vpop.f32.mrb[0].mxu0
    %v5349 = vadd.f32 0.0, %v5348
    %v5350 = vpop.f32.mrb[0].mxu0
    %5351 = vdwg.mxu0
    %s5352 = scalar_lea.vmem %s5, 364
    %v5353 = vld [vmem:[%s5352] sm:$0xf]
    %v5354 = vld [vmem:[%s5352 + $0x4] sm:$0xf]
    %v5355 = vld [vmem:[%s5352 + $0x8] sm:$0xf]
    %v5356 = vld [vmem:[%s5352 + $0xc] sm:$0xf]
    %v5357 = vld [vmem:[%s5352 + $0x10] sm:$0xf]
    %v5358 = vld [vmem:[%s5352 + $0x14] sm:$0xf]
    %v5359 = vld [vmem:[%s5352 + $0x18] sm:$0x1]
    %v5367 = vunpack.c.l.b16 %v5353
    %v5368 = vunpack.c.l.b16 %v5354
    %v5369 = vunpack.c.l.b16 %v5355
    %v5370 = vunpack.c.l.b16 %v5356
    %v5371 = vunpack.c.l.b16 %v5357
    %v5372 = vunpack.c.l.b16 %v5358
    %v5373 = vunpack.c.l.b16 %v5359
    %v5374 = vpack.c.b16 %v5368, %v5367
    %v5375 = vpack.c.b16 %v5370, %v5369
    %v5376 = vpack.c.b16 %v5372, %v5371
    %v5377 = vpack.c.b16 %v5373, %v5373
    %v5382 = vsel %vm351, %v5377, 0
    %5384 = vmatprep.subr.bf16.mxu0 0
    %5385 = vmatpush1.bf16.msra.mxu0 %v5374
    %5386 = vmatprep.subr.bf16.mxu0 0
    %5387 = vmatpush1.bf16.msra.mxu0 %v5375
    %5388 = vmatprep.subr.bf16.mxu0 0
    %5389 = vmatpush1.bf16.msra.mxu0 %v5376
    %5390 = vmatprep.subr.bf16.mxu0 0
    %5391 = vmatpush1.bf16.msra.mxu0 %v5382
    %5392 = vmatprep.subr.bf16.mxu0 0
    %5393 = vmatpush1.bf16.msra.mxu0 0
    %5394 = vmatprep.subr.bf16.mxu0 0
    %5395 = vmatpush1.bf16.msra.mxu0 0
    %5396 = vmatprep.subr.bf16.mxu0 0
    %5397 = vmatpush1.bf16.msra.mxu0 0
    %5398 = vmatprep.subr.bf16.mxu0 0
    %5399 = vmatpush1.bf16.msra.mxu0 0
    %5400 = vmatprep.subr.bf16.mxu0 0
    %5401 = vmatpush1.bf16.msra.mxu0 0
    %5402 = vmatprep.subr.bf16.mxu0 0
    %5403 = vmatpush1.bf16.msra.mxu0 0
    %5404 = vmatprep.subr.bf16.mxu0 0
    %5405 = vmatpush1.bf16.msra.mxu0 0
    %5406 = vmatprep.subr.bf16.mxu0 0
    %5407 = vmatpush1.bf16.msra.mxu0 0
    %5408 = vmatprep.subr.bf16.mxu0 0
    %5409 = vmatpush1.bf16.msra.mxu0 0
    %5410 = vmatprep.subr.bf16.mxu0 0
    %5411 = vmatpush1.bf16.msra.mxu0 0
    %5412 = vmatprep.subr.bf16.mxu0 0
    %5413 = vmatpush1.bf16.msra.mxu0 0
    %5414 = vmatprep.subr.bf16.mxu0 0
    %5415 = vmatpush1.bf16.msra.mxu0 0
    %5416 = vmatprep.mubr.bf16.mxu0 0
    %5417 = vmatmul.mubr.bf16.gmra.mrb[0].mxu0 %v4430
    %v5418 = vpop.f32.mrb[0].mxu0
    %v5419 = vadd.f32 0.0, %v5418
    %v5420 = vpop.f32.mrb[0].mxu0
    %v5421 = vpop.f32.mrb[0].mxu0
    %v5422 = vadd.f32 0.0, %v5421
    %v5423 = vpop.f32.mrb[0].mxu0
    %5424 = vdwg.mxu0
    %s5425 = scalar_lea.vmem %s5, 392
    %v5426 = vld [vmem:[%s5425] sm:$0xf]
    %v5427 = vld [vmem:[%s5425 + $0x4] sm:$0xf]
    %v5428 = vld [vmem:[%s5425 + $0x8] sm:$0xf]
    %v5429 = vld [vmem:[%s5425 + $0xc] sm:$0xf]
    %v5430 = vld [vmem:[%s5425 + $0x10] sm:$0xf]
    %v5431 = vld [vmem:[%s5425 + $0x14] sm:$0xf]
    %v5432 = vld [vmem:[%s5425 + $0x18] sm:$0x1]
    %v5440 = vunpack.c.l.b16 %v5426
    %v5441 = vunpack.c.l.b16 %v5427
    %v5442 = vunpack.c.l.b16 %v5428
    %v5443 = vunpack.c.l.b16 %v5429
    %v5444 = vunpack.c.l.b16 %v5430
    %v5445 = vunpack.c.l.b16 %v5431
    %v5446 = vunpack.c.l.b16 %v5432
    %v5447 = vpack.c.b16 %v5441, %v5440
    %v5448 = vpack.c.b16 %v5443, %v5442
    %v5449 = vpack.c.b16 %v5445, %v5444
    %v5450 = vpack.c.b16 %v5446, %v5446
    %v5455 = vsel %vm351, %v5450, 0
    %5457 = vmatprep.subr.bf16.mxu0 0
    %5458 = vmatpush1.bf16.msra.mxu0 %v5447
    %5459 = vmatprep.subr.bf16.mxu0 0
    %5460 = vmatpush1.bf16.msra.mxu0 %v5448
    %5461 = vmatprep.subr.bf16.mxu0 0
    %5462 = vmatpush1.bf16.msra.mxu0 %v5449
    %5463 = vmatprep.subr.bf16.mxu0 0
    %5464 = vmatpush1.bf16.msra.mxu0 %v5455
    %5465 = vmatprep.subr.bf16.mxu0 0
    %5466 = vmatpush1.bf16.msra.mxu0 0
    %5467 = vmatprep.subr.bf16.mxu0 0
    %5468 = vmatpush1.bf16.msra.mxu0 0
    %5469 = vmatprep.subr.bf16.mxu0 0
    %5470 = vmatpush1.bf16.msra.mxu0 0
    %5471 = vmatprep.subr.bf16.mxu0 0
    %5472 = vmatpush1.bf16.msra.mxu0 0
    %5473 = vmatprep.subr.bf16.mxu0 0
    %5474 = vmatpush1.bf16.msra.mxu0 0
    %5475 = vmatprep.subr.bf16.mxu0 0
    %5476 = vmatpush1.bf16.msra.mxu0 0
    %5477 = vmatprep.subr.bf16.mxu0 0
    %5478 = vmatpush1.bf16.msra.mxu0 0
    %5479 = vmatprep.subr.bf16.mxu0 0
    %5480 = vmatpush1.bf16.msra.mxu0 0
    %5481 = vmatprep.subr.bf16.mxu0 0
    %5482 = vmatpush1.bf16.msra.mxu0 0
    %5483 = vmatprep.subr.bf16.mxu0 0
    %5484 = vmatpush1.bf16.msra.mxu0 0
    %5485 = vmatprep.subr.bf16.mxu0 0
    %5486 = vmatpush1.bf16.msra.mxu0 0
    %5487 = vmatprep.subr.bf16.mxu0 0
    %5488 = vmatpush1.bf16.msra.mxu0 0
    %5489 = vmatprep.mubr.bf16.mxu0 0
    %5490 = vmatmul.mubr.bf16.gmra.mrb[0].mxu0 %v4430
    %v5491 = vpop.f32.mrb[0].mxu0
    %v5492 = vadd.f32 0.0, %v5491
    %v5493 = vpop.f32.mrb[0].mxu0
    %v5494 = vpop.f32.mrb[0].mxu0
    %v5495 = vadd.f32 0.0, %v5494
    %v5496 = vpop.f32.mrb[0].mxu0
    %5497 = vdwg.mxu0
    %s5498 = scalar_lea.vmem %s5, 420
    %v5499 = vld [vmem:[%s5498] sm:$0xf]
    %v5500 = vld [vmem:[%s5498 + $0x4] sm:$0xf]
    %v5501 = vld [vmem:[%s5498 + $0x8] sm:$0xf]
    %v5502 = vld [vmem:[%s5498 + $0xc] sm:$0xf]
    %v5503 = vld [vmem:[%s5498 + $0x10] sm:$0xf]
    %v5504 = vld [vmem:[%s5498 + $0x14] sm:$0xf]
    %v5505 = vld [vmem:[%s5498 + $0x18] sm:$0x1]
    %v5513 = vunpack.c.l.b16 %v5499
    %v5514 = vunpack.c.l.b16 %v5500
    %v5515 = vunpack.c.l.b16 %v5501
    %v5516 = vunpack.c.l.b16 %v5502
    %v5517 = vunpack.c.l.b16 %v5503
    %v5518 = vunpack.c.l.b16 %v5504
    %v5519 = vunpack.c.l.b16 %v5505
    %v5520 = vpack.c.b16 %v5514, %v5513
    %v5521 = vpack.c.b16 %v5516, %v5515
    %v5522 = vpack.c.b16 %v5518, %v5517
    %v5523 = vpack.c.b16 %v5519, %v5519
    %v5528 = vsel %vm351, %v5523, 0
    %5530 = vmatprep.subr.bf16.mxu0 0
    %5531 = vmatpush1.bf16.msra.mxu0 %v5520
    %5532 = vmatprep.subr.bf16.mxu0 0
    %5533 = vmatpush1.bf16.msra.mxu0 %v5521
    %5534 = vmatprep.subr.bf16.mxu0 0
    %5535 = vmatpush1.bf16.msra.mxu0 %v5522
    %5536 = vmatprep.subr.bf16.mxu0 0
    %5537 = vmatpush1.bf16.msra.mxu0 %v5528
    %5538 = vmatprep.subr.bf16.mxu0 0
    %5539 = vmatpush1.bf16.msra.mxu0 0
    %5540 = vmatprep.subr.bf16.mxu0 0
    %5541 = vmatpush1.bf16.msra.mxu0 0
    %5542 = vmatprep.subr.bf16.mxu0 0
    %5543 = vmatpush1.bf16.msra.mxu0 0
    %5544 = vmatprep.subr.bf16.mxu0 0
    %5545 = vmatpush1.bf16.msra.mxu0 0
    %5546 = vmatprep.subr.bf16.mxu0 0
    %5547 = vmatpush1.bf16.msra.mxu0 0
    %5548 = vmatprep.subr.bf16.mxu0 0
    %5549 = vmatpush1.bf16.msra.mxu0 0
    %5550 = vmatprep.subr.bf16.mxu0 0
    %5551 = vmatpush1.bf16.msra.mxu0 0
    %5552 = vmatprep.subr.bf16.mxu0 0
    %5553 = vmatpush1.bf16.msra.mxu0 0
    %5554 = vmatprep.subr.bf16.mxu0 0
    %5555 = vmatpush1.bf16.msra.mxu0 0
    %5556 = vmatprep.subr.bf16.mxu0 0
    %5557 = vmatpush1.bf16.msra.mxu0 0
    %5558 = vmatprep.subr.bf16.mxu0 0
    %5559 = vmatpush1.bf16.msra.mxu0 0
    %5560 = vmatprep.subr.bf16.mxu0 0
    %5561 = vmatpush1.bf16.msra.mxu0 0
    %5562 = vmatprep.mubr.bf16.mxu0 0
    %5563 = vmatmul.mubr.bf16.gmra.mrb[0].mxu0 %v4430
    %v5564 = vpop.f32.mrb[0].mxu0
    %v5565 = vadd.f32 0.0, %v5564
    %v5566 = vpop.f32.mrb[0].mxu0
    %v5567 = vpop.f32.mrb[0].mxu0
    %v5568 = vadd.f32 0.0, %v5567
    %v5569 = vpop.f32.mrb[0].mxu0
    %5570 = vdwg.mxu0
    %v5571 = vpack.c.bf16 %v4473, %v4470
    %v5572 = vpack.c.bf16 %v4546, %v4543
    %v5573 = vpack.c.bf16 %v4619, %v4616
    %v5574 = vpack.c.bf16 %v4692, %v4689
    %v5575 = vpack.c.bf16 %v4765, %v4762
    %v5576 = vpack.c.bf16 %v4838, %v4835
    %v5577 = vpack.c.bf16 %v4911, %v4908
    %v5578 = vpack.c.bf16 %v4984, %v4981
    %v5579 = vpack.c.bf16 %v5057, %v5054
    %v5580 = vpack.c.bf16 %v5130, %v5127
    %v5581 = vpack.c.bf16 %v5203, %v5200
    %v5582 = vpack.c.bf16 %v5276, %v5273
    %v5583 = vpack.c.bf16 %v5349, %v5346
    %v5584 = vpack.c.bf16 %v5422, %v5419
    %v5585 = vpack.c.bf16 %v5495, %v5492
    %v5586 = vpack.c.bf16 %v5568, %v5565
    %v5587 = vld [vmem:[%s4] sm:$0xff]
    %v5588 = vld [vmem:[%s4 + $0x8] sm:$0xff]
    %v5589 = vld [vmem:[%s4 + $0x10] sm:$0xff]
    %v5590 = vld [vmem:[%s4 + $0x18] sm:$0xff]
    %5592 = vset.pattern.permute.xlu0 0
    %5593 = vperm.xlu0 %5592, %v35
    %v5594 = vpop.permute.xlu0 %5593
    %5597 = vset.pattern.permute.xlu0 0
    %5598 = vperm.xlu0 %5597, %v36
    %v5599 = vpop.permute.xlu0 %5598
    %5602 = vset.pattern.permute.xlu0 0
    %5603 = vperm.xlu0 %5602, %v37
    %v5604 = vpop.permute.xlu0 %5603
    %5607 = vset.pattern.permute.xlu0 0
    %5608 = vperm.xlu0 %5607, %v38
    %v5609 = vpop.permute.xlu0 %5608
    %v5615 = vunpack.c.l.b16 %v5587
    %v5616 = vunpack.c.h.b16 %v5587
    %v5617 = vunpack.c.l.b16 %v5588
    %v5618 = vunpack.c.h.b16 %v5588
    %v5619 = vunpack.c.l.b16 %v5589
    %v5620 = vunpack.c.h.b16 %v5589
    %v5621 = vunpack.c.l.b16 %v5590
    %v5622 = vunpack.c.h.b16 %v5590
    %v5623 = vpack.c.b16 %v5617, %v5615
    %v5624 = vpack.c.b16 %v5618, %v5616
    %v5625 = vpack.c.b16 %v5621, %v5619
    %v5626 = vpack.c.b16 %v5622, %v5620
    %5631 = vmatprep.subr.bf16.mxu0 0
    %5632 = vmatpush1.bf16.msra.mxu0 %v5571
    %5633 = vmatprep.subr.bf16.mxu0 0
    %5634 = vmatpush1.bf16.msra.mxu0 %v5572
    %5635 = vmatprep.subr.bf16.mxu0 0
    %5636 = vmatpush1.bf16.msra.mxu0 %v5573
    %5637 = vmatprep.subr.bf16.mxu0 0
    %5638 = vmatpush1.bf16.msra.mxu0 %v5574
    %5639 = vmatprep.subr.bf16.mxu0 0
    %5640 = vmatpush1.bf16.msra.mxu0 %v5575
    %5641 = vmatprep.subr.bf16.mxu0 0
    %5642 = vmatpush1.bf16.msra.mxu0 %v5576
    %5643 = vmatprep.subr.bf16.mxu0 0
    %5644 = vmatpush1.bf16.msra.mxu0 %v5577
    %5645 = vmatprep.subr.bf16.mxu0 0
    %5646 = vmatpush1.bf16.msra.mxu0 %v5578
    %5647 = vmatprep.subr.bf16.mxu0 0
    %5648 = vmatpush1.bf16.msra.mxu0 %v5579
    %5649 = vmatprep.subr.bf16.mxu0 0
    %5650 = vmatpush1.bf16.msra.mxu0 %v5580
    %5651 = vmatprep.subr.bf16.mxu0 0
    %5652 = vmatpush1.bf16.msra.mxu0 %v5581
    %5653 = vmatprep.subr.bf16.mxu0 0
    %5654 = vmatpush1.bf16.msra.mxu0 %v5582
    %5655 = vmatprep.subr.bf16.mxu0 0
    %5656 = vmatpush1.bf16.msra.mxu0 %v5583
    %5657 = vmatprep.subr.bf16.mxu0 0
    %5658 = vmatpush1.bf16.msra.mxu0 %v5584
    %5659 = vmatprep.subr.bf16.mxu0 0
    %5660 = vmatpush1.bf16.msra.mxu0 %v5585
    %5661 = vmatprep.subr.bf16.mxu0 0
    %5662 = vmatpush1.bf16.msra.mxu0 %v5586
    %5663 = vmatprep.mubr.bf16.mxu0 %v5624
    %5664 = vmatmul.mubr.bf16.gmra.mrb[0].mxu0 %v5623
    %v5665 = vpop.f32.mrb[0].mxu0
    %v5666 = vadd.f32 %v5594, %v5665
    %v5667 = vpop.f32.mrb[0].mxu0
    %v5668 = vpop.f32.mrb[0].mxu0
    %v5669 = vadd.f32 %v5599, %v5668
    %v5670 = vpop.f32.mrb[0].mxu0
    %5671 = vmatprep.mubr.bf16.mxu0 %v5626
    %5672 = vmatmul.mubr.bf16.gmra.mrb[0].mxu0 %v5625
    %v5673 = vpop.f32.mrb[0].mxu0
    %v5674 = vadd.f32 %v5604, %v5673
    %v5675 = vpop.f32.mrb[0].mxu0
    %v5676 = vpop.f32.mrb[0].mxu0
    %v5677 = vadd.f32 %v5609, %v5676
    %v5678 = vpop.f32.mrb[0].mxu0
    %5679 = vdwg.mxu0
    %vm5680 = vcmask 15360
    %v5681 = vsel %vm5680, %v5666, 0.0
    %5682 = vadd.xlane.f32.xlu0 %v5681
    %v5683 = vpop.xlane.xlu0 %5682
    %v5684 = vsel %vm5680, %v5669, 0.0
    %5685 = vadd.xlane.f32.xlu0 %v5684
    %v5686 = vpop.xlane.xlu0 %5685
    %v5687 = vsel %vm5680, %v5674, 0.0
    %5688 = vadd.xlane.f32.xlu0 %v5687
    %v5689 = vpop.xlane.xlu0 %5688
    %v5690 = vsel %vm5680, %v5677, 0.0
    %5691 = vadd.xlane.f32.xlu0 %v5690
    %v5692 = vpop.xlane.xlu0 %5691
    %v5693 = vrcp.pop 2.0
    %v5694 = vmul.f32 %v5683, %v5693
    %v5695 = vmul.f32 %v5686, %v5693
    %v5696 = vmul.f32 %v5689, %v5693
    %v5697 = vmul.f32 %v5692, %v5693
    %v5698 = vsub.f32 %v5666, %v5694
    %v5699 = vsub.f32 %v5669, %v5695
    %v5700 = vsub.f32 %v5674, %v5696
    %v5701 = vsub.f32 %v5677, %v5697
    %v5702 = vmul.f32 %v5698, %v5698
    %v5703 = vmul.f32 %v5699, %v5699
    %v5704 = vmul.f32 %v5700, %v5700
    %v5705 = vmul.f32 %v5701, %v5701
    %v5706 = vsel %vm5680, %v5702, 0.0
    %5707 = vadd.xlane.f32.xlu0 %v5706
    %v5708 = vpop.xlane.xlu0 %5707
    %v5709 = vsel %vm5680, %v5703, 0.0
    %5710 = vadd.xlane.f32.xlu0 %v5709
    %v5711 = vpop.xlane.xlu0 %5710
    %v5712 = vsel %vm5680, %v5704, 0.0
    %5713 = vadd.xlane.f32.xlu0 %v5712
    %v5714 = vpop.xlane.xlu0 %5713
    %v5715 = vsel %vm5680, %v5705, 0.0
    %5716 = vadd.xlane.f32.xlu0 %v5715
    %v5717 = vpop.xlane.xlu0 %5716
    %v5718 = vmul.f32 %v5708, %v5693
    %v5719 = vmul.f32 %v5711, %v5693
    %v5720 = vmul.f32 %v5714, %v5693
    %v5721 = vmul.f32 %v5717, %v5693
    %v5722 = vadd.f32 %v5718, 1e-05
    %v5723 = vadd.f32 %v5719, 1e-05
    %v5724 = vadd.f32 %v5720, 1e-05
    %v5725 = vadd.f32 %v5721, 1e-05
    %v5726 = vrsqrt.pop %v5722
    %v5727 = vrsqrt.pop %v5723
    %v5728 = vrsqrt.pop %v5724
    %v5729 = vrsqrt.pop %v5725
    %v5730 = vmul.f32 %v5698, %v5726
    %v5731 = vmul.f32 %v5699, %v5727
    %v5732 = vmul.f32 %v5700, %v5728
    %v5733 = vmul.f32 %v5701, %v5729
    %5735 = vset.pattern.permute.xlu0 0
    %5736 = vperm.xlu0 %5735, %v39
    %v5737 = vpop.permute.xlu0 %5736
    %5740 = vset.pattern.permute.xlu0 0
    %5741 = vperm.xlu0 %5740, %v40
    %v5742 = vpop.permute.xlu0 %5741
    %5745 = vset.pattern.permute.xlu0 0
    %5746 = vperm.xlu0 %5745, %v41
    %v5747 = vpop.permute.xlu0 %5746
    %5750 = vset.pattern.permute.xlu0 0
    %5751 = vperm.xlu0 %5750, %v42
    %v5752 = vpop.permute.xlu0 %5751
    %v5754 = vmul.f32 %v5730, %v5737
    %v5755 = vmul.f32 %v5731, %v5742
    %v5756 = vmul.f32 %v5732, %v5747
    %v5757 = vmul.f32 %v5733, %v5752
    %5759 = vset.pattern.permute.xlu0 0
    %5760 = vperm.xlu0 %5759, %v43
    %v5761 = vpop.permute.xlu0 %5760
    %5764 = vset.pattern.permute.xlu0 0
    %5765 = vperm.xlu0 %5764, %v44
    %v5766 = vpop.permute.xlu0 %5765
    %5769 = vset.pattern.permute.xlu0 0
    %5770 = vperm.xlu0 %5769, %v45
    %v5771 = vpop.permute.xlu0 %5770
    %5774 = vset.pattern.permute.xlu0 0
    %5775 = vperm.xlu0 %5774, %v46
    %v5776 = vpop.permute.xlu0 %5775
    %v5778 = vadd.f32 %v5754, %v5761
    %v5779 = vadd.f32 %v5755, %v5766
    %v5780 = vadd.f32 %v5756, %v5771
    %v5781 = vadd.f32 %v5757, %v5776
    %vm5782 = vcmp.ge.f32.partialorder %v5778, 0.0
    %vm5783 = vcmp.ge.f32.partialorder %v5779, 0.0
    %vm5784 = vcmp.ge.f32.partialorder %v5780, 0.0
    %vm5785 = vcmp.ge.f32.partialorder %v5781, 0.0
    %v5786 = vmul.f32 %v5778, 0.2
    %v5787 = vmul.f32 %v5779, 0.2
    %v5788 = vmul.f32 %v5780, 0.2
    %v5789 = vmul.f32 %v5781, 0.2
    %v5790 = vsel %vm5782, %v5778, %v5786
    %v5791 = vsel %vm5783, %v5779, %v5787
    %v5792 = vsel %vm5784, %v5780, %v5788
    %v5793 = vsel %vm5785, %v5781, %v5789
    %5795 = vset.pattern.permute.xlu0 0
    %5796 = vperm.xlu0 %5795, %v47
    %v5797 = vpop.permute.xlu0 %5796
    %5800 = vset.pattern.permute.xlu0 0
    %5801 = vperm.xlu0 %5800, %v48
    %v5802 = vpop.permute.xlu0 %5801
    %5805 = vset.pattern.permute.xlu0 0
    %5806 = vperm.xlu0 %5805, %v49
    %v5807 = vpop.permute.xlu0 %5806
    %5810 = vset.pattern.permute.xlu0 0
    %5811 = vperm.xlu0 %5810, %v50
    %v5812 = vpop.permute.xlu0 %5811
    %v5814 = vmul.f32 %v5790, %v5797
    %v5815 = vmul.f32 %v5791, %v5802
    %v5816 = vmul.f32 %v5792, %v5807
    %v5817 = vmul.f32 %v5793, %v5812
    %v5818 = vsel %vm5680, %v5814, 0.0
    %v5819 = vsel %vm5680, %v5815, 0.0
    %v5820 = vadd.f32 %v5818, %v5819
    %v5821 = vsel %vm5680, %v5816, 0.0
    %v5822 = vadd.f32 %v5820, %v5821
    %v5823 = vsel %vm5680, %v5817, 0.0
    %v5824 = vadd.f32 %v5822, %v5823
    %v5825 = vrot.slane %v5824, 4
    %v5826 = vadd.f32 %v5824, %v5825
    %v5827 = vrot.slane %v5826, 2
    %v5828 = vadd.f32 %v5826, %v5827
    %v5829 = vrot.slane %v5828, 1
    %v5830 = vadd.f32 %v5828, %v5829
    %5832 = vset.pattern.permute.xlu0 0
    %5833 = vperm.xlu0 %5832, %v51
    %v5834 = vpop.permute.xlu0 %5833
    %v5836 = vadd.f32 %v5830, %v5834
    %v5837 = vand.u32 2147483647, %v5836
    %v5838 = vsub.f32 0.0, %v5837
    %v5839 = vmul.f32 %v5838, 1.442695
    %v5840 = vpow.pop %v5839
    %v5841 = vadd.f32 %v5840, 1.0
    %v5842 = vrcp.pop %v5841
    %v5843 = vmul.f32 1.0, %v5842
    %vm5844 = vcmp.ge.f32.partialorder %v5836, 0.0
    %v5845 = vmul.f32 %v5840, %v5843
    %v5846 = vsel %vm5844, %v5843, %v5845
    %vm5847 = vcmask 8192
    %5848 = vst.msk [vmem:[#allocation2] sm:$0x1] %vm5847, %v5846
    // Predicated region
    $region30: #{discriminator_forward.1} parent=1 // pred_check
      _
    $region31: #{discriminator_forward.1} parent=1 // pred_check_branch
      %5850 = sbr.rel (0) target = $region33
    $region32: #{discriminator_forward.1} parent=1 // pred_region
      %s5852 = ssub.s32 16, 16
      %5853 = vsyncadd [#allocation3], %s5852
      %s5855 = sshll.u32 [#allocation2], 4
      %s5856 = int_to_ptr.vmem [resolvable:$true] %s5855
      %5858 = dma.vmem_to_hbm [thread:$0]  %s5856, 16, %s7, [#allocation3]
    $region33: #{discriminator_forward.1} parent=1 // pred_fallthru
      _
    // Predicated region
    $region34: #{discriminator_forward.1} parent=1 // pred_check
      _
    $region35: #{discriminator_forward.1} parent=1 // pred_check_branch
      %5860 = sbr.rel (0) target = $region37
    $region36: #{discriminator_forward.1} parent=1 // pred_region
      %5861 = dma.done [#allocation3], 16
    $region37: #{discriminator_forward.1} parent=1 // pred_fallthru
      _
    %5862 = vsyncpa [#allocation3], 1

</llo_original>
